<compile_context>
chip_gen: v6e
topology: v6e:2x2x1
jax: 0.10.0
libtpu: 0.0.40
codegen_flags: <defaults>
</compile_context>

<pallas_src>
import math
from functools import partial

import jax
import jax.numpy as jnp
from jax import lax
from jax.experimental import pallas as pl
from jax.experimental.pallas import tpu as pltpu

# ---------------- config (the `args` of TSD.__init__) ----------------
PATCH_LEN = 8
WINDOW = 64
HIDDEN = 32
LAYERS = 2
CHANNELS = 4
HEADS = 4
DROPOUT = 0.0            # eval mode -> dropout is identity
POS_ENC = True
PREPROCESS = "fft"
TASK = ["classification"]
N_CLASSES = 3

SEQ_LEN = WINDOW // PATCH_LEN          # 8
DIM = PATCH_LEN // 2                   # 4   (fft preprocess: dim = patch_len // 2)
CDIM = CHANNELS * DIM                  # 16
S_TOT = SEQ_LEN + 1                    # 9   (+ cls token)
S_PAD = 16                             # token axis padded to a sublane-friendly size
FF = 4 * HIDDEN                        # 128
DH = HIDDEN // HEADS                   # 8
OUT_PAD = 128                          # lane-dense decoder output width
NEG_INF = -1e9
LN_EPS = 1e-5

_VMEM = pl.BlockSpec(memory_space=pltpu.MemorySpace.VMEM)


# ---------------- fused Pallas kernel ----------------
def _layernorm(x, gamma, beta, eps=LN_EPS):
    mu = jnp.mean(x, axis=-1, keepdims=True)
    var = jnp.mean((x - mu) ** 2, axis=-1, keepdims=True)
    return (x - mu) * lax.rsqrt(var + eps) * gamma + beta


def tsd_fused_kernel(
    x_ref,            # (B*S_PAD, CDIM)  f32  zero rows at cls/pad token positions
    fcw_ref,          # (CDIM, H)        bf16
    base_ref,         # (S_PAD, H)       f32  pos_emb + fc_b (tokens), pos_emb + cls (cls row), 0 (pad)
    wqkv_ref,         # (L, H, 3H)       bf16
    bqkv_ref,         # (L, 1, 3H)       f32
    wo_ref,           # (L, H, H)        bf16
    bo_ref,           # (L, 1, H)        f32
    g1_ref, be1_ref,  # (L, 1, H)        f32
    w1_ref,           # (L, H, FF)       bf16
    bf1_ref,          # (L, 1, FF)       f32
    w2_ref,           # (L, FF, H)       bf16
    bf2_ref,          # (L, 1, H)        f32
    g2_ref, be2_ref,  # (L, 1, H)        f32
    decw_ref,         # (H, OUT_PAD)     bf16 (zero-padded beyond n_classes)
    decb_ref,         # (1, OUT_PAD)     f32
    o_ref,            # (B, OUT_PAD)     f32
    *, batch, num_heads, num_layers,
):
    B = batch
    H = HIDDEN
    scale = 1.0 / math.sqrt(DH)

    # Causal additive mask on the padded token axis, built ONCE per call.
    # Pad key columns (>= S_TOT) are automatically masked for every real query row
    # because col > row there.
    row = lax.broadcasted_iota(jnp.int32, (S_PAD, S_PAD), 0)
    col = lax.broadcasted_iota(jnp.int32, (S_PAD, S_PAD), 1)
    causal = jnp.where(col > row, NEG_INF, 0.0).astype(jnp.float32)

    # fc(x) + cls token + positional embedding (fc bias / cls / pos folded into `base`)
    fcx = jnp.dot(x_ref[...].astype(jnp.bfloat16), fcw_ref[...],
                  preferred_element_type=jnp.float32)                    # (B*S_PAD, H)
    h = (fcx.reshape(B, S_PAD, H) + base_ref[...][None]).reshape(B * S_PAD, H)

    for l in range(num_layers):
        # ---- multi-head self attention (post-norm layer, causal mask) ----
        qkv = (jnp.dot(h.astype(jnp.bfloat16), wqkv_ref[l],
                       preferred_element_type=jnp.float32)
               + bqkv_ref[l]).reshape(B, S_PAD, 3 * H)
        q = qkv[:, :, 0 * H:1 * H]
        k = qkv[:, :, 1 * H:2 * H]
        v = qkv[:, :, 2 * H:3 * H]

        wo_l = wo_ref[l]                                                 # (H, H) bf16
        attn = jnp.zeros((B * S_PAD, H), jnp.float32)
        for hh in range(num_heads):
            sl = slice(hh * DH, (hh + 1) * DH)
            qh = q[:, :, sl].astype(jnp.bfloat16)
            kh = k[:, :, sl].astype(jnp.bfloat16)
            vh = v[:, :, sl].astype(jnp.bfloat16)

            s = jnp.einsum("bqd,bkd->bqk", qh, kh,
                           preferred_element_type=jnp.float32) * scale   # (B, S_PAD, S_PAD)
            s = s + causal[None, :, :]
            s = s - jnp.max(s, axis=-1, keepdims=True)
            p = jnp.exp(s)
            p = p * pl.reciprocal(jnp.sum(p, axis=-1, keepdims=True), approx=True)

            oh = jnp.einsum("bqk,bkd->bqd", p.astype(jnp.bfloat16), vh,
                            preferred_element_type=jnp.float32)          # (B, S_PAD, DH)
            # fold the head-concat into the output projection:
            #   concat_h(o_h) @ Wo == sum_h o_h @ Wo[h*DH:(h+1)*DH, :]
            attn = attn + jnp.dot(
                oh.reshape(B * S_PAD, DH).astype(jnp.bfloat16),
                wo_l[sl, :],
                preferred_element_type=jnp.float32)
        attn = attn + bo_ref[l]

        # ---- residual + LN1 ----
        h1 = _layernorm(h + attn, g1_ref[l], be1_ref[l])

        # ---- feed-forward (ReLU) ----
        ff = jnp.maximum(
            jnp.dot(h1.astype(jnp.bfloat16), w1_ref[l],
                    preferred_element_type=jnp.float32) + bf1_ref[l],
            0.0)
        ff = jnp.dot(ff.astype(jnp.bfloat16), w2_ref[l],
                     preferred_element_type=jnp.float32) + bf2_ref[l]

        # ---- residual + LN2 ----
        h = _layernorm(h1 + ff, g2_ref[l], be2_ref[l])

    # cls token is the last REAL token (index SEQ_LEN); decoder into a lane-dense slab.
    z = h.reshape(B, S_PAD, H)[:, SEQ_LEN:SEQ_LEN + 1, :].reshape(B, H)
    o_ref[...] = (jnp.dot(z.astype(jnp.bfloat16), decw_ref[...],
                          preferred_element_type=jnp.float32) + decb_ref[...])


# ---------------- parameter init (deterministic, synthetic) ----------------
def init_params(key):
    ks = iter(jax.random.split(key, 64))
    p = {}
    p["fc_w"] = 0.05 * jax.random.normal(next(ks), (CDIM, HIDDEN), jnp.float32)
    p["fc_b"] = jnp.zeros((1, HIDDEN), jnp.float32)
    p["pos_emb"] = jax.random.normal(next(ks), (S_TOT, HIDDEN), jnp.float32)
    p["cls_token"] = jax.random.normal(next(ks), (1, 1, HIDDEN), jnp.float32)
    p["dec_w"] = 0.05 * jax.random.normal(next(ks), (HIDDEN, N_CLASSES), jnp.float32)
    p["dec_b"] = jnp.zeros((1, N_CLASSES), jnp.float32)
    layers = []
    for _ in range(LAYERS):
        lp = {
            "wqkv": 0.05 * jax.random.normal(next(ks), (HIDDEN, 3 * HIDDEN), jnp.float32),
            "bqkv": jnp.zeros((1, 3 * HIDDEN), jnp.float32),
            "wo": 0.05 * jax.random.normal(next(ks), (HIDDEN, HIDDEN), jnp.float32),
            "bo": jnp.zeros((1, HIDDEN), jnp.float32),
            "ln1_g": jnp.ones((1, HIDDEN), jnp.float32),
            "ln1_b": jnp.zeros((1, HIDDEN), jnp.float32),
            "w1": 0.05 * jax.random.normal(next(ks), (HIDDEN, FF), jnp.float32),
            "b1": jnp.zeros((1, FF), jnp.float32),
            "w2": 0.05 * jax.random.normal(next(ks), (FF, HIDDEN), jnp.float32),
            "b2": jnp.zeros((1, HIDDEN), jnp.float32),
            "ln2_g": jnp.ones((1, HIDDEN), jnp.float32),
            "ln2_b": jnp.zeros((1, HIDDEN), jnp.float32),
        }
        layers.append(lp)
    p["layers"] = layers
    return p


# ---------------- host-side param folding (layout plumbing, no compute hoisting) ----------------
def _fold_params(params):
    bf = jnp.bfloat16
    pos = params["pos_emb"] if POS_ENC else jnp.zeros((S_TOT, HIDDEN), jnp.float32)

    # base slab over the padded token axis:
    #   rows 0..SEQ_LEN-1 : pos_emb + fc bias (fc bias folded here since pad/cls x-rows are 0)
    #   row  SEQ_LEN      : pos_emb + cls_token
    #   rows SEQ_LEN+1..  : 0 (never read by real rows)
    base = jnp.zeros((S_PAD, HIDDEN), jnp.float32)
    base = base.at[:SEQ_LEN, :].set(pos[:SEQ_LEN] + params["fc_b"])
    base = base.at[SEQ_LEN, :].set(pos[SEQ_LEN] + params["cls_token"][0, 0])

    L = params["layers"]
    stk = lambda name: jnp.stack([lp[name] for lp in L])

    decw = jnp.zeros((HIDDEN, OUT_PAD), jnp.float32).at[:, :N_CLASSES].set(params["dec_w"])
    decb = jnp.zeros((1, OUT_PAD), jnp.float32).at[:, :N_CLASSES].set(params["dec_b"])

    return dict(
        fcw=params["fc_w"].astype(bf),
        base=base,
        wqkv=stk("wqkv").astype(bf), bqkv=stk("bqkv"),
        wo=stk("wo").astype(bf),     bo=stk("bo"),
        g1=stk("ln1_g"), be1=stk("ln1_b"),
        w1=stk("w1").astype(bf),     bf1=stk("b1"),
        w2=stk("w2").astype(bf),     bf2=stk("b2"),
        g2=stk("ln2_g"), be2=stk("ln2_b"),
        decw=decw.astype(bf), decb=decb,
    )


# ---------------- forward ----------------
def tsd_forward(params, x, p=None, y=None):
    """x: (B, seq_len, channels, dim) float32.  Returns {'prob': (B, n_classes)}."""
    bs = x.shape[0]
    fp = _fold_params(params)

    # preprocess == 'fft': fc(x.reshape(bs, seq_len, channels*dim)); zero-pad the token
    # axis to S_PAD so the in-kernel slabs are (8,128)-tile aligned (pad rows are inert).
    x2 = x.reshape(bs, SEQ_LEN, CDIM)
    x_pad = jnp.zeros((bs, S_PAD, CDIM), jnp.float32).at[:, :SEQ_LEN, :].set(x2)
    x_pad = x_pad.reshape(bs * S_PAD, CDIM)

    kern = partial(tsd_fused_kernel, batch=bs, num_heads=HEADS, num_layers=LAYERS)
    prob_pad = pl.pallas_call(
        kern,
        out_shape=jax.ShapeDtypeStruct((bs, OUT_PAD), jnp.float32),
        in_specs=[_VMEM] * 17,
        out_specs=_VMEM,
    )(
        x_pad, fp["fcw"], fp["base"],
        fp["wqkv"], fp["bqkv"], fp["wo"], fp["bo"],
        fp["g1"], fp["be1"], fp["w1"], fp["bf1"], fp["w2"], fp["bf2"],
        fp["g2"], fp["be2"], fp["decw"], fp["decb"],
    )

    prob = prob_pad[:, :N_CLASSES]
    if N_CLASSES == 1:
        prob = prob[..., 0]                                  # .squeeze(dim=-1)
    # TODO(synk): 'onset_detection' loop and 'prediction' TransformerDecoder branch are
    # not exercised for task=['classification'] and are omitted here.
    return {"prob": prob}


tsd_forward_jit = jax.jit(tsd_forward)


if __name__ == "__main__":
    key = jax.random.PRNGKey(0)
    pkey, xkey = jax.random.split(key)
    params = init_params(pkey)

    B = 2
    x = jax.random.normal(xkey, (B, SEQ_LEN, CHANNELS, DIM), jnp.float32)
    p_dummy = jnp.zeros((B,), jnp.float32)   # unused by this task
    y_dummy = jnp.zeros((B,), jnp.float32)   # unused by this task

    out = tsd_forward_jit(params, x, p_dummy, y_dummy)
    jax.block_until_ready(out["prob"])
    assert out["prob"].shape == (B, N_CLASSES)
    print("KERNEL_OK")
</pallas_src>

<mosaic_0001>
module attributes {stable_mosaic.version = 11 : i64} {
  func.func @tsd_fused_kernel(%arg0: memref<32x16xf32, #tpu.memory_space<vmem>>, %arg1: memref<16x32xbf16, #tpu.memory_space<vmem>>, %arg2: memref<16x32xf32, #tpu.memory_space<vmem>>, %arg3: memref<2x32x96xbf16, #tpu.memory_space<vmem>>, %arg4: memref<2x1x96xf32, #tpu.memory_space<vmem>>, %arg5: memref<2x32x32xbf16, #tpu.memory_space<vmem>>, %arg6: memref<2x1x32xf32, #tpu.memory_space<vmem>>, %arg7: memref<2x1x32xf32, #tpu.memory_space<vmem>>, %arg8: memref<2x1x32xf32, #tpu.memory_space<vmem>>, %arg9: memref<2x32x128xbf16, #tpu.memory_space<vmem>>, %arg10: memref<2x1x128xf32, #tpu.memory_space<vmem>>, %arg11: memref<2x128x32xbf16, #tpu.memory_space<vmem>>, %arg12: memref<2x1x32xf32, #tpu.memory_space<vmem>>, %arg13: memref<2x1x32xf32, #tpu.memory_space<vmem>>, %arg14: memref<2x1x32xf32, #tpu.memory_space<vmem>>, %arg15: memref<32x128xbf16, #tpu.memory_space<vmem>>, %arg16: memref<1x128xf32, #tpu.memory_space<vmem>>, %arg17: memref<2x128xf32, #tpu.memory_space<vmem>>) attributes {dimension_semantics = [], scalar_prefetch = 0 : i64, scratch_operands = 0 : i64, tpu.core_type = #tpu.core_type<tc>} {
    %0 = tpu.iota {dimensions = array<i32: 0>} : vector<16x16xi32>
    %1 = tpu.iota {dimensions = array<i32: 1>} : vector<16x16xi32>
    %2 = arith.cmpi sgt, %1, %0 : vector<16x16xi32>
    %cst = arith.constant -1.000000e+09 : f32
    %cst_0 = arith.constant 0.000000e+00 : f32
    %3 = vector.broadcast %cst : f32 to vector<16x16xf32>
    %4 = vector.broadcast %cst_0 : f32 to vector<16x16xf32>
    %5 = arith.select %2, %3, %4 : vector<16x16xi1>, vector<16x16xf32>
    %c0 = arith.constant 0 : index
    %c0_1 = arith.constant 0 : index
    %6 = vector.load %arg0[%c0, %c0_1] : memref<32x16xf32, #tpu.memory_space<vmem>>, vector<32x16xf32>
    %7 = arith.truncf %6 : vector<32x16xf32> to vector<32x16xbf16>
    %c0_2 = arith.constant 0 : index
    %c0_3 = arith.constant 0 : index
    %8 = vector.load %arg1[%c0_2, %c0_3] : memref<16x32xbf16, #tpu.memory_space<vmem>>, vector<16x32xbf16>
    %cst_4 = arith.constant dense<0.000000e+00> : vector<32x32xf32>
    %9 = tpu.matmul %7, %8, %cst_4 {dimension_numbers = #tpu.dot_dimension_numbers<[1], [0], [0], [1], [0, 0, 1, 1], [], []>} : vector<32x16xbf16>, vector<16x32xbf16>, vector<32x32xf32> -> vector<32x32xf32>
    %10 = vector.shape_cast %9 : vector<32x32xf32> to vector<2x16x32xf32>
    %c0_5 = arith.constant 0 : index
    %c0_6 = arith.constant 0 : index
    %11 = vector.load %arg2[%c0_5, %c0_6] : memref<16x32xf32, #tpu.memory_space<vmem>>, vector<16x32xf32>
    %12 = vector.shape_cast %11 : vector<16x32xf32> to vector<1x16x32xf32>
    %13 = vector.broadcast %12 : vector<1x16x32xf32> to vector<2x16x32xf32>
    %14 = arith.addf %10, %13 : vector<2x16x32xf32>
    %15 = vector.shape_cast %14 : vector<2x16x32xf32> to vector<32x32xf32>
    %16 = arith.truncf %15 : vector<32x32xf32> to vector<32x32xbf16>
    %c0_7 = arith.constant 0 : index
    %c0_8 = arith.constant 0 : index
    %c0_9 = arith.constant 0 : index
    %17 = vector.load %arg3[%c0_7, %c0_8, %c0_9] : memref<2x32x96xbf16, #tpu.memory_space<vmem>>, vector<1x32x96xbf16>
    %18 = vector.shape_cast %17 : vector<1x32x96xbf16> to vector<32x96xbf16>
    %cst_10 = arith.constant dense<0.000000e+00> : vector<32x96xf32>
    %19 = tpu.matmul %16, %18, %cst_10 {dimension_numbers = #tpu.dot_dimension_numbers<[1], [0], [0], [1], [0, 0, 1, 1], [], []>} : vector<32x32xbf16>, vector<32x96xbf16>, vector<32x96xf32> -> vector<32x96xf32>
    %c0_11 = arith.constant 0 : index
    %c0_12 = arith.constant 0 : index
    %c0_13 = arith.constant 0 : index
    %20 = vector.load %arg4[%c0_11, %c0_12, %c0_13] : memref<2x1x96xf32, #tpu.memory_space<vmem>>, vector<1x1x96xf32>
    %21 = vector.shape_cast %20 : vector<1x1x96xf32> to vector<1x96xf32>
    %22 = vector.broadcast %21 : vector<1x96xf32> to vector<32x96xf32>
    %23 = arith.addf %19, %22 : vector<32x96xf32>
    %24 = vector.shape_cast %23 : vector<32x96xf32> to vector<2x16x96xf32>
    %25 = vector.extract_strided_slice %24 {offsets = [0, 0, 0], sizes = [2, 16, 32], strides = [1, 1, 1]} : vector<2x16x96xf32> to vector<2x16x32xf32>
    %26 = vector.extract_strided_slice %24 {offsets = [0, 0, 32], sizes = [2, 16, 32], strides = [1, 1, 1]} : vector<2x16x96xf32> to vector<2x16x32xf32>
    %27 = vector.extract_strided_slice %24 {offsets = [0, 0, 64], sizes = [2, 16, 32], strides = [1, 1, 1]} : vector<2x16x96xf32> to vector<2x16x32xf32>
    %c0_14 = arith.constant 0 : index
    %c0_15 = arith.constant 0 : index
    %c0_16 = arith.constant 0 : index
    %28 = vector.load %arg5[%c0_14, %c0_15, %c0_16] : memref<2x32x32xbf16, #tpu.memory_space<vmem>>, vector<1x32x32xbf16>
    %29 = vector.shape_cast %28 : vector<1x32x32xbf16> to vector<32x32xbf16>
    %cst_17 = arith.constant 0.000000e+00 : f32
    %30 = vector.broadcast %cst_17 : f32 to vector<32x32xf32>
    %31 = vector.extract_strided_slice %25 {offsets = [0, 0, 0], sizes = [2, 16, 8], strides = [1, 1, 1]} : vector<2x16x32xf32> to vector<2x16x8xf32>
    %32 = arith.truncf %31 : vector<2x16x8xf32> to vector<2x16x8xbf16>
    %33 = vector.extract_strided_slice %26 {offsets = [0, 0, 0], sizes = [2, 16, 8], strides = [1, 1, 1]} : vector<2x16x32xf32> to vector<2x16x8xf32>
    %34 = arith.truncf %33 : vector<2x16x8xf32> to vector<2x16x8xbf16>
    %35 = vector.extract_strided_slice %27 {offsets = [0, 0, 0], sizes = [2, 16, 8], strides = [1, 1, 1]} : vector<2x16x32xf32> to vector<2x16x8xf32>
    %36 = arith.truncf %35 : vector<2x16x8xf32> to vector<2x16x8xbf16>
    "tpu.trace_start"() <{level = 10 : i32, message = "bqd,bkd->bqk"}> : () -> ()
    %cst_18 = arith.constant dense<0.000000e+00> : vector<2x16x16xf32>
    %37 = tpu.matmul %32, %34, %cst_18 {dimension_numbers = #tpu.dot_dimension_numbers<[2], [2], [1], [1], [0, 0, 0, 1, 1, 1], [0], [0]>} : vector<2x16x8xbf16>, vector<2x16x8xbf16>, vector<2x16x16xf32> -> vector<2x16x16xf32>
    "tpu.trace_stop"() : () -> ()
    %cst_19 = arith.constant 0.353553385 : f32
    %38 = vector.broadcast %cst_19 : f32 to vector<2x16x16xf32>
    %39 = arith.mulf %37, %38 : vector<2x16x16xf32>
    %40 = vector.shape_cast %5 : vector<16x16xf32> to vector<1x16x16xf32>
    %41 = vector.broadcast %40 : vector<1x16x16xf32> to vector<2x16x16xf32>
    %42 = arith.addf %39, %41 : vector<2x16x16xf32>
    %cst_20 = arith.constant dense<0xFF800000> : vector<2x16xf32>
    %43 = vector.multi_reduction <maximumf>, %42, %cst_20 [2] : vector<2x16x16xf32> to vector<2x16xf32>
    %44 = vector.shape_cast %43 : vector<2x16xf32> to vector<2x16x1xf32>
    %45 = vector.broadcast %44 : vector<2x16x1xf32> to vector<2x16x16xf32>
    %46 = arith.subf %42, %45 : vector<2x16x16xf32>
    %47 = math.exp %46 : vector<2x16x16xf32>
    %cst_21 = arith.constant dense<0.000000e+00> : vector<2x16xf32>
    %48 = vector.multi_reduction <add>, %47, %cst_21 [2] : vector<2x16x16xf32> to vector<2x16xf32>
    %49 = vector.shape_cast %48 : vector<2x16xf32> to vector<2x16x1xf32>
    %50 = tpu.reciprocal %49 {approx = true} : vector<2x16x1xf32> -> vector<2x16x1xf32>
    %51 = vector.broadcast %50 : vector<2x16x1xf32> to vector<2x16x16xf32>
    %52 = arith.mulf %47, %51 : vector<2x16x16xf32>
    %53 = arith.truncf %52 : vector<2x16x16xf32> to vector<2x16x16xbf16>
    "tpu.trace_start"() <{level = 10 : i32, message = "bqk,bkd->bqd"}> : () -> ()
    %cst_22 = arith.constant dense<0.000000e+00> : vector<2x16x8xf32>
    %54 = tpu.matmul %53, %36, %cst_22 {dimension_numbers = #tpu.dot_dimension_numbers<[2], [1], [1], [2], [0, 0, 0, 1, 1, 2], [0], [0]>} : vector<2x16x16xbf16>, vector<2x16x8xbf16>, vector<2x16x8xf32> -> vector<2x16x8xf32>
    "tpu.trace_stop"() : () -> ()
    %55 = vector.shape_cast %54 : vector<2x16x8xf32> to vector<32x8xf32>
    %56 = arith.truncf %55 : vector<32x8xf32> to vector<32x8xbf16>
    %57 = vector.extract_strided_slice %29 {offsets = [0, 0], sizes = [8, 32], strides = [1, 1]} : vector<32x32xbf16> to vector<8x32xbf16>
    %cst_23 = arith.constant dense<0.000000e+00> : vector<32x32xf32>
    %58 = tpu.matmul %56, %57, %cst_23 {dimension_numbers = #tpu.dot_dimension_numbers<[1], [0], [0], [1], [0, 0, 1, 1], [], []>} : vector<32x8xbf16>, vector<8x32xbf16>, vector<32x32xf32> -> vector<32x32xf32>
    %59 = arith.addf %30, %58 : vector<32x32xf32>
    %60 = vector.extract_strided_slice %25 {offsets = [0, 0, 8], sizes = [2, 16, 8], strides = [1, 1, 1]} : vector<2x16x32xf32> to vector<2x16x8xf32>
    %61 = arith.truncf %60 : vector<2x16x8xf32> to vector<2x16x8xbf16>
    %62 = vector.extract_strided_slice %26 {offsets = [0, 0, 8], sizes = [2, 16, 8], strides = [1, 1, 1]} : vector<2x16x32xf32> to vector<2x16x8xf32>
    %63 = arith.truncf %62 : vector<2x16x8xf32> to vector<2x16x8xbf16>
    %64 = vector.extract_strided_slice %27 {offsets = [0, 0, 8], sizes = [2, 16, 8], strides = [1, 1, 1]} : vector<2x16x32xf32> to vector<2x16x8xf32>
    %65 = arith.truncf %64 : vector<2x16x8xf32> to vector<2x16x8xbf16>
    "tpu.trace_start"() <{level = 10 : i32, message = "bqd,bkd->bqk"}> : () -> ()
    %cst_24 = arith.constant dense<0.000000e+00> : vector<2x16x16xf32>
    %66 = tpu.matmul %61, %63, %cst_24 {dimension_numbers = #tpu.dot_dimension_numbers<[2], [2], [1], [1], [0, 0, 0, 1, 1, 1], [0], [0]>} : vector<2x16x8xbf16>, vector<2x16x8xbf16>, vector<2x16x16xf32> -> vector<2x16x16xf32>
    "tpu.trace_stop"() : () -> ()
    %cst_25 = arith.constant 0.353553385 : f32
    %67 = vector.broadcast %cst_25 : f32 to vector<2x16x16xf32>
    %68 = arith.mulf %66, %67 : vector<2x16x16xf32>
    %69 = vector.shape_cast %5 : vector<16x16xf32> to vector<1x16x16xf32>
    %70 = vector.broadcast %69 : vector<1x16x16xf32> to vector<2x16x16xf32>
    %71 = arith.addf %68, %70 : vector<2x16x16xf32>
    %cst_26 = arith.constant dense<0xFF800000> : vector<2x16xf32>
    %72 = vector.multi_reduction <maximumf>, %71, %cst_26 [2] : vector<2x16x16xf32> to vector<2x16xf32>
    %73 = vector.shape_cast %72 : vector<2x16xf32> to vector<2x16x1xf32>
    %74 = vector.broadcast %73 : vector<2x16x1xf32> to vector<2x16x16xf32>
    %75 = arith.subf %71, %74 : vector<2x16x16xf32>
    %76 = math.exp %75 : vector<2x16x16xf32>
    %cst_27 = arith.constant dense<0.000000e+00> : vector<2x16xf32>
    %77 = vector.multi_reduction <add>, %76, %cst_27 [2] : vector<2x16x16xf32> to vector<2x16xf32>
    %78 = vector.shape_cast %77 : vector<2x16xf32> to vector<2x16x1xf32>
    %79 = tpu.reciprocal %78 {approx = true} : vector<2x16x1xf32> -> vector<2x16x1xf32>
    %80 = vector.broadcast %79 : vector<2x16x1xf32> to vector<2x16x16xf32>
    %81 = arith.mulf %76, %80 : vector<2x16x16xf32>
    %82 = arith.truncf %81 : vector<2x16x16xf32> to vector<2x16x16xbf16>
    "tpu.trace_start"() <{level = 10 : i32, message = "bqk,bkd->bqd"}> : () -> ()
    %cst_28 = arith.constant dense<0.000000e+00> : vector<2x16x8xf32>
    %83 = tpu.matmul %82, %65, %cst_28 {dimension_numbers = #tpu.dot_dimension_numbers<[2], [1], [1], [2], [0, 0, 0, 1, 1, 2], [0], [0]>} : vector<2x16x16xbf16>, vector<2x16x8xbf16>, vector<2x16x8xf32> -> vector<2x16x8xf32>
    "tpu.trace_stop"() : () -> ()
    %84 = vector.shape_cast %83 : vector<2x16x8xf32> to vector<32x8xf32>
    %85 = arith.truncf %84 : vector<32x8xf32> to vector<32x8xbf16>
    %86 = vector.extract_strided_slice %29 {offsets = [8, 0], sizes = [8, 32], strides = [1, 1]} : vector<32x32xbf16> to vector<8x32xbf16>
    %cst_29 = arith.constant dense<0.000000e+00> : vector<32x32xf32>
    %87 = tpu.matmul %85, %86, %cst_29 {dimension_numbers = #tpu.dot_dimension_numbers<[1], [0], [0], [1], [0, 0, 1, 1], [], []>} : vector<32x8xbf16>, vector<8x32xbf16>, vector<32x32xf32> -> vector<32x32xf32>
    %88 = arith.addf %59, %87 : vector<32x32xf32>
    %89 = vector.extract_strided_slice %25 {offsets = [0, 0, 16], sizes = [2, 16, 8], strides = [1, 1, 1]} : vector<2x16x32xf32> to vector<2x16x8xf32>
    %90 = arith.truncf %89 : vector<2x16x8xf32> to vector<2x16x8xbf16>
    %91 = vector.extract_strided_slice %26 {offsets = [0, 0, 16], sizes = [2, 16, 8], strides = [1, 1, 1]} : vector<2x16x32xf32> to vector<2x16x8xf32>
    %92 = arith.truncf %91 : vector<2x16x8xf32> to vector<2x16x8xbf16>
    %93 = vector.extract_strided_slice %27 {offsets = [0, 0, 16], sizes = [2, 16, 8], strides = [1, 1, 1]} : vector<2x16x32xf32> to vector<2x16x8xf32>
    %94 = arith.truncf %93 : vector<2x16x8xf32> to vector<2x16x8xbf16>
    "tpu.trace_start"() <{level = 10 : i32, message = "bqd,bkd->bqk"}> : () -> ()
    %cst_30 = arith.constant dense<0.000000e+00> : vector<2x16x16xf32>
    %95 = tpu.matmul %90, %92, %cst_30 {dimension_numbers = #tpu.dot_dimension_numbers<[2], [2], [1], [1], [0, 0, 0, 1, 1, 1], [0], [0]>} : vector<2x16x8xbf16>, vector<2x16x8xbf16>, vector<2x16x16xf32> -> vector<2x16x16xf32>
    "tpu.trace_stop"() : () -> ()
    %cst_31 = arith.constant 0.353553385 : f32
    %96 = vector.broadcast %cst_31 : f32 to vector<2x16x16xf32>
    %97 = arith.mulf %95, %96 : vector<2x16x16xf32>
    %98 = vector.shape_cast %5 : vector<16x16xf32> to vector<1x16x16xf32>
    %99 = vector.broadcast %98 : vector<1x16x16xf32> to vector<2x16x16xf32>
    %100 = arith.addf %97, %99 : vector<2x16x16xf32>
    %cst_32 = arith.constant dense<0xFF800000> : vector<2x16xf32>
    %101 = vector.multi_reduction <maximumf>, %100, %cst_32 [2] : vector<2x16x16xf32> to vector<2x16xf32>
    %102 = vector.shape_cast %101 : vector<2x16xf32> to vector<2x16x1xf32>
    %103 = vector.broadcast %102 : vector<2x16x1xf32> to vector<2x16x16xf32>
    %104 = arith.subf %100, %103 : vector<2x16x16xf32>
    %105 = math.exp %104 : vector<2x16x16xf32>
    %cst_33 = arith.constant dense<0.000000e+00> : vector<2x16xf32>
    %106 = vector.multi_reduction <add>, %105, %cst_33 [2] : vector<2x16x16xf32> to vector<2x16xf32>
    %107 = vector.shape_cast %106 : vector<2x16xf32> to vector<2x16x1xf32>
    %108 = tpu.reciprocal %107 {approx = true} : vector<2x16x1xf32> -> vector<2x16x1xf32>
    %109 = vector.broadcast %108 : vector<2x16x1xf32> to vector<2x16x16xf32>
    %110 = arith.mulf %105, %109 : vector<2x16x16xf32>
    %111 = arith.truncf %110 : vector<2x16x16xf32> to vector<2x16x16xbf16>
    "tpu.trace_start"() <{level = 10 : i32, message = "bqk,bkd->bqd"}> : () -> ()
    %cst_34 = arith.constant dense<0.000000e+00> : vector<2x16x8xf32>
    %112 = tpu.matmul %111, %94, %cst_34 {dimension_numbers = #tpu.dot_dimension_numbers<[2], [1], [1], [2], [0, 0, 0, 1, 1, 2], [0], [0]>} : vector<2x16x16xbf16>, vector<2x16x8xbf16>, vector<2x16x8xf32> -> vector<2x16x8xf32>
    "tpu.trace_stop"() : () -> ()
    %113 = vector.shape_cast %112 : vector<2x16x8xf32> to vector<32x8xf32>
    %114 = arith.truncf %113 : vector<32x8xf32> to vector<32x8xbf16>
    %115 = vector.extract_strided_slice %29 {offsets = [16, 0], sizes = [8, 32], strides = [1, 1]} : vector<32x32xbf16> to vector<8x32xbf16>
    %cst_35 = arith.constant dense<0.000000e+00> : vector<32x32xf32>
    %116 = tpu.matmul %114, %115, %cst_35 {dimension_numbers = #tpu.dot_dimension_numbers<[1], [0], [0], [1], [0, 0, 1, 1], [], []>} : vector<32x8xbf16>, vector<8x32xbf16>, vector<32x32xf32> -> vector<32x32xf32>
    %117 = arith.addf %88, %116 : vector<32x32xf32>
    %118 = vector.extract_strided_slice %25 {offsets = [0, 0, 24], sizes = [2, 16, 8], strides = [1, 1, 1]} : vector<2x16x32xf32> to vector<2x16x8xf32>
    %119 = arith.truncf %118 : vector<2x16x8xf32> to vector<2x16x8xbf16>
    %120 = vector.extract_strided_slice %26 {offsets = [0, 0, 24], sizes = [2, 16, 8], strides = [1, 1, 1]} : vector<2x16x32xf32> to vector<2x16x8xf32>
    %121 = arith.truncf %120 : vector<2x16x8xf32> to vector<2x16x8xbf16>
    %122 = vector.extract_strided_slice %27 {offsets = [0, 0, 24], sizes = [2, 16, 8], strides = [1, 1, 1]} : vector<2x16x32xf32> to vector<2x16x8xf32>
    %123 = arith.truncf %122 : vector<2x16x8xf32> to vector<2x16x8xbf16>
    "tpu.trace_start"() <{level = 10 : i32, message = "bqd,bkd->bqk"}> : () -> ()
    %cst_36 = arith.constant dense<0.000000e+00> : vector<2x16x16xf32>
    %124 = tpu.matmul %119, %121, %cst_36 {dimension_numbers = #tpu.dot_dimension_numbers<[2], [2], [1], [1], [0, 0, 0, 1, 1, 1], [0], [0]>} : vector<2x16x8xbf16>, vector<2x16x8xbf16>, vector<2x16x16xf32> -> vector<2x16x16xf32>
    "tpu.trace_stop"() : () -> ()
    %cst_37 = arith.constant 0.353553385 : f32
    %125 = vector.broadcast %cst_37 : f32 to vector<2x16x16xf32>
    %126 = arith.mulf %124, %125 : vector<2x16x16xf32>
    %127 = vector.shape_cast %5 : vector<16x16xf32> to vector<1x16x16xf32>
    %128 = vector.broadcast %127 : vector<1x16x16xf32> to vector<2x16x16xf32>
    %129 = arith.addf %126, %128 : vector<2x16x16xf32>
    %cst_38 = arith.constant dense<0xFF800000> : vector<2x16xf32>
    %130 = vector.multi_reduction <maximumf>, %129, %cst_38 [2] : vector<2x16x16xf32> to vector<2x16xf32>
    %131 = vector.shape_cast %130 : vector<2x16xf32> to vector<2x16x1xf32>
    %132 = vector.broadcast %131 : vector<2x16x1xf32> to vector<2x16x16xf32>
    %133 = arith.subf %129, %132 : vector<2x16x16xf32>
    %134 = math.exp %133 : vector<2x16x16xf32>
    %cst_39 = arith.constant dense<0.000000e+00> : vector<2x16xf32>
    %135 = vector.multi_reduction <add>, %134, %cst_39 [2] : vector<2x16x16xf32> to vector<2x16xf32>
    %136 = vector.shape_cast %135 : vector<2x16xf32> to vector<2x16x1xf32>
    %137 = tpu.reciprocal %136 {approx = true} : vector<2x16x1xf32> -> vector<2x16x1xf32>
    %138 = vector.broadcast %137 : vector<2x16x1xf32> to vector<2x16x16xf32>
    %139 = arith.mulf %134, %138 : vector<2x16x16xf32>
    %140 = arith.truncf %139 : vector<2x16x16xf32> to vector<2x16x16xbf16>
    "tpu.trace_start"() <{level = 10 : i32, message = "bqk,bkd->bqd"}> : () -> ()
    %cst_40 = arith.constant dense<0.000000e+00> : vector<2x16x8xf32>
    %141 = tpu.matmul %140, %123, %cst_40 {dimension_numbers = #tpu.dot_dimension_numbers<[2], [1], [1], [2], [0, 0, 0, 1, 1, 2], [0], [0]>} : vector<2x16x16xbf16>, vector<2x16x8xbf16>, vector<2x16x8xf32> -> vector<2x16x8xf32>
    "tpu.trace_stop"() : () -> ()
    %142 = vector.shape_cast %141 : vector<2x16x8xf32> to vector<32x8xf32>
    %143 = arith.truncf %142 : vector<32x8xf32> to vector<32x8xbf16>
    %144 = vector.extract_strided_slice %29 {offsets = [24, 0], sizes = [8, 32], strides = [1, 1]} : vector<32x32xbf16> to vector<8x32xbf16>
    %cst_41 = arith.constant dense<0.000000e+00> : vector<32x32xf32>
    %145 = tpu.matmul %143, %144, %cst_41 {dimension_numbers = #tpu.dot_dimension_numbers<[1], [0], [0], [1], [0, 0, 1, 1], [], []>} : vector<32x8xbf16>, vector<8x32xbf16>, vector<32x32xf32> -> vector<32x32xf32>
    %146 = arith.addf %117, %145 : vector<32x32xf32>
    %c0_42 = arith.constant 0 : index
    %c0_43 = arith.constant 0 : index
    %c0_44 = arith.constant 0 : index
    %147 = vector.load %arg6[%c0_42, %c0_43, %c0_44] : memref<2x1x32xf32, #tpu.memory_space<vmem>>, vector<1x1x32xf32>
    %148 = vector.shape_cast %147 : vector<1x1x32xf32> to vector<1x32xf32>
    %149 = vector.broadcast %148 : vector<1x32xf32> to vector<32x32xf32>
    %150 = arith.addf %146, %149 : vector<32x32xf32>
    %151 = arith.addf %15, %150 : vector<32x32xf32>
    %c0_45 = arith.constant 0 : index
    %c0_46 = arith.constant 0 : index
    %c0_47 = arith.constant 0 : index
    %152 = vector.load %arg7[%c0_45, %c0_46, %c0_47] : memref<2x1x32xf32, #tpu.memory_space<vmem>>, vector<1x1x32xf32>
    %153 = vector.shape_cast %152 : vector<1x1x32xf32> to vector<1x32xf32>
    %c0_48 = arith.constant 0 : index
    %c0_49 = arith.constant 0 : index
    %c0_50 = arith.constant 0 : index
    %154 = vector.load %arg8[%c0_48, %c0_49, %c0_50] : memref<2x1x32xf32, #tpu.memory_space<vmem>>, vector<1x1x32xf32>
    %155 = vector.shape_cast %154 : vector<1x1x32xf32> to vector<1x32xf32>
    %cst_51 = arith.constant dense<0.000000e+00> : vector<32xf32>
    %156 = vector.multi_reduction <add>, %151, %cst_51 [1] : vector<32x32xf32> to vector<32xf32>
    %157 = vector.shape_cast %156 : vector<32xf32> to vector<32x1xf32>
    %cst_52 = arith.constant 3.200000e+01 : f32
    %158 = vector.broadcast %cst_52 : f32 to vector<32x1xf32>
    %159 = arith.divf %157, %158 : vector<32x1xf32>
    %160 = vector.broadcast %159 : vector<32x1xf32> to vector<32x32xf32>
    %161 = arith.subf %151, %160 : vector<32x32xf32>
    %162 = arith.mulf %161, %161 : vector<32x32xf32>
    %cst_53 = arith.constant dense<0.000000e+00> : vector<32xf32>
    %163 = vector.multi_reduction <add>, %162, %cst_53 [1] : vector<32x32xf32> to vector<32xf32>
    %164 = vector.shape_cast %163 : vector<32xf32> to vector<32x1xf32>
    %cst_54 = arith.constant 3.200000e+01 : f32
    %165 = vector.broadcast %cst_54 : f32 to vector<32x1xf32>
    %166 = arith.divf %164, %165 : vector<32x1xf32>
    %167 = vector.broadcast %159 : vector<32x1xf32> to vector<32x32xf32>
    %168 = arith.subf %151, %167 : vector<32x32xf32>
    %cst_55 = arith.constant 9.99999974E-6 : f32
    %169 = vector.broadcast %cst_55 : f32 to vector<32x1xf32>
    %170 = arith.addf %166, %169 : vector<32x1xf32>
    %171 = math.rsqrt %170 : vector<32x1xf32>
    %172 = vector.broadcast %171 : vector<32x1xf32> to vector<32x32xf32>
    %173 = arith.mulf %168, %172 : vector<32x32xf32>
    %174 = vector.broadcast %153 : vector<1x32xf32> to vector<32x32xf32>
    %175 = arith.mulf %173, %174 : vector<32x32xf32>
    %176 = vector.broadcast %155 : vector<1x32xf32> to vector<32x32xf32>
    %177 = arith.addf %175, %176 : vector<32x32xf32>
    %178 = arith.truncf %177 : vector<32x32xf32> to vector<32x32xbf16>
    %c0_56 = arith.constant 0 : index
    %c0_57 = arith.constant 0 : index
    %c0_58 = arith.constant 0 : index
    %179 = vector.load %arg9[%c0_56, %c0_57, %c0_58] : memref<2x32x128xbf16, #tpu.memory_space<vmem>>, vector<1x32x128xbf16>
    %180 = vector.shape_cast %179 : vector<1x32x128xbf16> to vector<32x128xbf16>
    %cst_59 = arith.constant dense<0.000000e+00> : vector<32x128xf32>
    %181 = tpu.matmul %178, %180, %cst_59 {dimension_numbers = #tpu.dot_dimension_numbers<[1], [0], [0], [1], [0, 0, 1, 1], [], []>} : vector<32x32xbf16>, vector<32x128xbf16>, vector<32x128xf32> -> vector<32x128xf32>
    %c0_60 = arith.constant 0 : index
    %c0_61 = arith.constant 0 : index
    %c0_62 = arith.constant 0 : index
    %182 = vector.load %arg10[%c0_60, %c0_61, %c0_62] : memref<2x1x128xf32, #tpu.memory_space<vmem>>, vector<1x1x128xf32>
    %183 = vector.shape_cast %182 : vector<1x1x128xf32> to vector<1x128xf32>
    %184 = vector.broadcast %183 : vector<1x128xf32> to vector<32x128xf32>
    %185 = arith.addf %181, %184 : vector<32x128xf32>
    %cst_63 = arith.constant 0.000000e+00 : f32
    %186 = vector.broadcast %cst_63 : f32 to vector<32x128xf32>
    %187 = arith.maximumf %185, %186 : vector<32x128xf32>
    %188 = arith.truncf %187 : vector<32x128xf32> to vector<32x128xbf16>
    %c0_64 = arith.constant 0 : index
    %c0_65 = arith.constant 0 : index
    %c0_66 = arith.constant 0 : index
    %189 = vector.load %arg11[%c0_64, %c0_65, %c0_66] : memref<2x128x32xbf16, #tpu.memory_space<vmem>>, vector<1x128x32xbf16>
    %190 = vector.shape_cast %189 : vector<1x128x32xbf16> to vector<128x32xbf16>
    %cst_67 = arith.constant dense<0.000000e+00> : vector<32x32xf32>
    %191 = tpu.matmul %188, %190, %cst_67 {dimension_numbers = #tpu.dot_dimension_numbers<[1], [0], [0], [1], [0, 0, 1, 1], [], []>} : vector<32x128xbf16>, vector<128x32xbf16>, vector<32x32xf32> -> vector<32x32xf32>
    %c0_68 = arith.constant 0 : index
    %c0_69 = arith.constant 0 : index
    %c0_70 = arith.constant 0 : index
    %192 = vector.load %arg12[%c0_68, %c0_69, %c0_70] : memref<2x1x32xf32, #tpu.memory_space<vmem>>, vector<1x1x32xf32>
    %193 = vector.shape_cast %192 : vector<1x1x32xf32> to vector<1x32xf32>
    %194 = vector.broadcast %193 : vector<1x32xf32> to vector<32x32xf32>
    %195 = arith.addf %191, %194 : vector<32x32xf32>
    %196 = arith.addf %177, %195 : vector<32x32xf32>
    %c0_71 = arith.constant 0 : index
    %c0_72 = arith.constant 0 : index
    %c0_73 = arith.constant 0 : index
    %197 = vector.load %arg13[%c0_71, %c0_72, %c0_73] : memref<2x1x32xf32, #tpu.memory_space<vmem>>, vector<1x1x32xf32>
    %198 = vector.shape_cast %197 : vector<1x1x32xf32> to vector<1x32xf32>
    %c0_74 = arith.constant 0 : index
    %c0_75 = arith.constant 0 : index
    %c0_76 = arith.constant 0 : index
    %199 = vector.load %arg14[%c0_74, %c0_75, %c0_76] : memref<2x1x32xf32, #tpu.memory_space<vmem>>, vector<1x1x32xf32>
    %200 = vector.shape_cast %199 : vector<1x1x32xf32> to vector<1x32xf32>
    %cst_77 = arith.constant dense<0.000000e+00> : vector<32xf32>
    %201 = vector.multi_reduction <add>, %196, %cst_77 [1] : vector<32x32xf32> to vector<32xf32>
    %202 = vector.shape_cast %201 : vector<32xf32> to vector<32x1xf32>
    %cst_78 = arith.constant 3.200000e+01 : f32
    %203 = vector.broadcast %cst_78 : f32 to vector<32x1xf32>
    %204 = arith.divf %202, %203 : vector<32x1xf32>
    %205 = vector.broadcast %204 : vector<32x1xf32> to vector<32x32xf32>
    %206 = arith.subf %196, %205 : vector<32x32xf32>
    %207 = arith.mulf %206, %206 : vector<32x32xf32>
    %cst_79 = arith.constant dense<0.000000e+00> : vector<32xf32>
    %208 = vector.multi_reduction <add>, %207, %cst_79 [1] : vector<32x32xf32> to vector<32xf32>
    %209 = vector.shape_cast %208 : vector<32xf32> to vector<32x1xf32>
    %cst_80 = arith.constant 3.200000e+01 : f32
    %210 = vector.broadcast %cst_80 : f32 to vector<32x1xf32>
    %211 = arith.divf %209, %210 : vector<32x1xf32>
    %212 = vector.broadcast %204 : vector<32x1xf32> to vector<32x32xf32>
    %213 = arith.subf %196, %212 : vector<32x32xf32>
    %cst_81 = arith.constant 9.99999974E-6 : f32
    %214 = vector.broadcast %cst_81 : f32 to vector<32x1xf32>
    %215 = arith.addf %211, %214 : vector<32x1xf32>
    %216 = math.rsqrt %215 : vector<32x1xf32>
    %217 = vector.broadcast %216 : vector<32x1xf32> to vector<32x32xf32>
    %218 = arith.mulf %213, %217 : vector<32x32xf32>
    %219 = vector.broadcast %198 : vector<1x32xf32> to vector<32x32xf32>
    %220 = arith.mulf %218, %219 : vector<32x32xf32>
    %221 = vector.broadcast %200 : vector<1x32xf32> to vector<32x32xf32>
    %222 = arith.addf %220, %221 : vector<32x32xf32>
    %223 = arith.truncf %222 : vector<32x32xf32> to vector<32x32xbf16>
    %c1 = arith.constant 1 : index
    %c0_82 = arith.constant 0 : index
    %c0_83 = arith.constant 0 : index
    %224 = vector.load %arg3[%c1, %c0_82, %c0_83] : memref<2x32x96xbf16, #tpu.memory_space<vmem>>, vector<1x32x96xbf16>
    %225 = vector.shape_cast %224 : vector<1x32x96xbf16> to vector<32x96xbf16>
    %cst_84 = arith.constant dense<0.000000e+00> : vector<32x96xf32>
    %226 = tpu.matmul %223, %225, %cst_84 {dimension_numbers = #tpu.dot_dimension_numbers<[1], [0], [0], [1], [0, 0, 1, 1], [], []>} : vector<32x32xbf16>, vector<32x96xbf16>, vector<32x96xf32> -> vector<32x96xf32>
    %c1_85 = arith.constant 1 : index
    %c0_86 = arith.constant 0 : index
    %c0_87 = arith.constant 0 : index
    %227 = vector.load %arg4[%c1_85, %c0_86, %c0_87] : memref<2x1x96xf32, #tpu.memory_space<vmem>>, vector<1x1x96xf32>
    %228 = vector.shape_cast %227 : vector<1x1x96xf32> to vector<1x96xf32>
    %229 = vector.broadcast %228 : vector<1x96xf32> to vector<32x96xf32>
    %230 = arith.addf %226, %229 : vector<32x96xf32>
    %231 = vector.shape_cast %230 : vector<32x96xf32> to vector<2x16x96xf32>
    %232 = vector.extract_strided_slice %231 {offsets = [0, 0, 0], sizes = [2, 16, 32], strides = [1, 1, 1]} : vector<2x16x96xf32> to vector<2x16x32xf32>
    %233 = vector.extract_strided_slice %231 {offsets = [0, 0, 32], sizes = [2, 16, 32], strides = [1, 1, 1]} : vector<2x16x96xf32> to vector<2x16x32xf32>
    %234 = vector.extract_strided_slice %231 {offsets = [0, 0, 64], sizes = [2, 16, 32], strides = [1, 1, 1]} : vector<2x16x96xf32> to vector<2x16x32xf32>
    %c1_88 = arith.constant 1 : index
    %c0_89 = arith.constant 0 : index
    %c0_90 = arith.constant 0 : index
    %235 = vector.load %arg5[%c1_88, %c0_89, %c0_90] : memref<2x32x32xbf16, #tpu.memory_space<vmem>>, vector<1x32x32xbf16>
    %236 = vector.shape_cast %235 : vector<1x32x32xbf16> to vector<32x32xbf16>
    %cst_91 = arith.constant 0.000000e+00 : f32
    %237 = vector.broadcast %cst_91 : f32 to vector<32x32xf32>
    %238 = vector.extract_strided_slice %232 {offsets = [0, 0, 0], sizes = [2, 16, 8], strides = [1, 1, 1]} : vector<2x16x32xf32> to vector<2x16x8xf32>
    %239 = arith.truncf %238 : vector<2x16x8xf32> to vector<2x16x8xbf16>
    %240 = vector.extract_strided_slice %233 {offsets = [0, 0, 0], sizes = [2, 16, 8], strides = [1, 1, 1]} : vector<2x16x32xf32> to vector<2x16x8xf32>
    %241 = arith.truncf %240 : vector<2x16x8xf32> to vector<2x16x8xbf16>
    %242 = vector.extract_strided_slice %234 {offsets = [0, 0, 0], sizes = [2, 16, 8], strides = [1, 1, 1]} : vector<2x16x32xf32> to vector<2x16x8xf32>
    %243 = arith.truncf %242 : vector<2x16x8xf32> to vector<2x16x8xbf16>
    "tpu.trace_start"() <{level = 10 : i32, message = "bqd,bkd->bqk"}> : () -> ()
    %cst_92 = arith.constant dense<0.000000e+00> : vector<2x16x16xf32>
    %244 = tpu.matmul %239, %241, %cst_92 {dimension_numbers = #tpu.dot_dimension_numbers<[2], [2], [1], [1], [0, 0, 0, 1, 1, 1], [0], [0]>} : vector<2x16x8xbf16>, vector<2x16x8xbf16>, vector<2x16x16xf32> -> vector<2x16x16xf32>
    "tpu.trace_stop"() : () -> ()
    %cst_93 = arith.constant 0.353553385 : f32
    %245 = vector.broadcast %cst_93 : f32 to vector<2x16x16xf32>
    %246 = arith.mulf %244, %245 : vector<2x16x16xf32>
    %247 = vector.shape_cast %5 : vector<16x16xf32> to vector<1x16x16xf32>
    %248 = vector.broadcast %247 : vector<1x16x16xf32> to vector<2x16x16xf32>
    %249 = arith.addf %246, %248 : vector<2x16x16xf32>
    %cst_94 = arith.constant dense<0xFF800000> : vector<2x16xf32>
    %250 = vector.multi_reduction <maximumf>, %249, %cst_94 [2] : vector<2x16x16xf32> to vector<2x16xf32>
    %251 = vector.shape_cast %250 : vector<2x16xf32> to vector<2x16x1xf32>
    %252 = vector.broadcast %251 : vector<2x16x1xf32> to vector<2x16x16xf32>
    %253 = arith.subf %249, %252 : vector<2x16x16xf32>
    %254 = math.exp %253 : vector<2x16x16xf32>
    %cst_95 = arith.constant dense<0.000000e+00> : vector<2x16xf32>
    %255 = vector.multi_reduction <add>, %254, %cst_95 [2] : vector<2x16x16xf32> to vector<2x16xf32>
    %256 = vector.shape_cast %255 : vector<2x16xf32> to vector<2x16x1xf32>
    %257 = tpu.reciprocal %256 {approx = true} : vector<2x16x1xf32> -> vector<2x16x1xf32>
    %258 = vector.broadcast %257 : vector<2x16x1xf32> to vector<2x16x16xf32>
    %259 = arith.mulf %254, %258 : vector<2x16x16xf32>
    %260 = arith.truncf %259 : vector<2x16x16xf32> to vector<2x16x16xbf16>
    "tpu.trace_start"() <{level = 10 : i32, message = "bqk,bkd->bqd"}> : () -> ()
    %cst_96 = arith.constant dense<0.000000e+00> : vector<2x16x8xf32>
    %261 = tpu.matmul %260, %243, %cst_96 {dimension_numbers = #tpu.dot_dimension_numbers<[2], [1], [1], [2], [0, 0, 0, 1, 1, 2], [0], [0]>} : vector<2x16x16xbf16>, vector<2x16x8xbf16>, vector<2x16x8xf32> -> vector<2x16x8xf32>
    "tpu.trace_stop"() : () -> ()
    %262 = vector.shape_cast %261 : vector<2x16x8xf32> to vector<32x8xf32>
    %263 = arith.truncf %262 : vector<32x8xf32> to vector<32x8xbf16>
    %264 = vector.extract_strided_slice %236 {offsets = [0, 0], sizes = [8, 32], strides = [1, 1]} : vector<32x32xbf16> to vector<8x32xbf16>
    %cst_97 = arith.constant dense<0.000000e+00> : vector<32x32xf32>
    %265 = tpu.matmul %263, %264, %cst_97 {dimension_numbers = #tpu.dot_dimension_numbers<[1], [0], [0], [1], [0, 0, 1, 1], [], []>} : vector<32x8xbf16>, vector<8x32xbf16>, vector<32x32xf32> -> vector<32x32xf32>
    %266 = arith.addf %237, %265 : vector<32x32xf32>
    %267 = vector.extract_strided_slice %232 {offsets = [0, 0, 8], sizes = [2, 16, 8], strides = [1, 1, 1]} : vector<2x16x32xf32> to vector<2x16x8xf32>
    %268 = arith.truncf %267 : vector<2x16x8xf32> to vector<2x16x8xbf16>
    %269 = vector.extract_strided_slice %233 {offsets = [0, 0, 8], sizes = [2, 16, 8], strides = [1, 1, 1]} : vector<2x16x32xf32> to vector<2x16x8xf32>
    %270 = arith.truncf %269 : vector<2x16x8xf32> to vector<2x16x8xbf16>
    %271 = vector.extract_strided_slice %234 {offsets = [0, 0, 8], sizes = [2, 16, 8], strides = [1, 1, 1]} : vector<2x16x32xf32> to vector<2x16x8xf32>
    %272 = arith.truncf %271 : vector<2x16x8xf32> to vector<2x16x8xbf16>
    "tpu.trace_start"() <{level = 10 : i32, message = "bqd,bkd->bqk"}> : () -> ()
    %cst_98 = arith.constant dense<0.000000e+00> : vector<2x16x16xf32>
    %273 = tpu.matmul %268, %270, %cst_98 {dimension_numbers = #tpu.dot_dimension_numbers<[2], [2], [1], [1], [0, 0, 0, 1, 1, 1], [0], [0]>} : vector<2x16x8xbf16>, vector<2x16x8xbf16>, vector<2x16x16xf32> -> vector<2x16x16xf32>
    "tpu.trace_stop"() : () -> ()
    %cst_99 = arith.constant 0.353553385 : f32
    %274 = vector.broadcast %cst_99 : f32 to vector<2x16x16xf32>
    %275 = arith.mulf %273, %274 : vector<2x16x16xf32>
    %276 = vector.shape_cast %5 : vector<16x16xf32> to vector<1x16x16xf32>
    %277 = vector.broadcast %276 : vector<1x16x16xf32> to vector<2x16x16xf32>
    %278 = arith.addf %275, %277 : vector<2x16x16xf32>
    %cst_100 = arith.constant dense<0xFF800000> : vector<2x16xf32>
    %279 = vector.multi_reduction <maximumf>, %278, %cst_100 [2] : vector<2x16x16xf32> to vector<2x16xf32>
    %280 = vector.shape_cast %279 : vector<2x16xf32> to vector<2x16x1xf32>
    %281 = vector.broadcast %280 : vector<2x16x1xf32> to vector<2x16x16xf32>
    %282 = arith.subf %278, %281 : vector<2x16x16xf32>
    %283 = math.exp %282 : vector<2x16x16xf32>
    %cst_101 = arith.constant dense<0.000000e+00> : vector<2x16xf32>
    %284 = vector.multi_reduction <add>, %283, %cst_101 [2] : vector<2x16x16xf32> to vector<2x16xf32>
    %285 = vector.shape_cast %284 : vector<2x16xf32> to vector<2x16x1xf32>
    %286 = tpu.reciprocal %285 {approx = true} : vector<2x16x1xf32> -> vector<2x16x1xf32>
    %287 = vector.broadcast %286 : vector<2x16x1xf32> to vector<2x16x16xf32>
    %288 = arith.mulf %283, %287 : vector<2x16x16xf32>
    %289 = arith.truncf %288 : vector<2x16x16xf32> to vector<2x16x16xbf16>
    "tpu.trace_start"() <{level = 10 : i32, message = "bqk,bkd->bqd"}> : () -> ()
    %cst_102 = arith.constant dense<0.000000e+00> : vector<2x16x8xf32>
    %290 = tpu.matmul %289, %272, %cst_102 {dimension_numbers = #tpu.dot_dimension_numbers<[2], [1], [1], [2], [0, 0, 0, 1, 1, 2], [0], [0]>} : vector<2x16x16xbf16>, vector<2x16x8xbf16>, vector<2x16x8xf32> -> vector<2x16x8xf32>
    "tpu.trace_stop"() : () -> ()
    %291 = vector.shape_cast %290 : vector<2x16x8xf32> to vector<32x8xf32>
    %292 = arith.truncf %291 : vector<32x8xf32> to vector<32x8xbf16>
    %293 = vector.extract_strided_slice %236 {offsets = [8, 0], sizes = [8, 32], strides = [1, 1]} : vector<32x32xbf16> to vector<8x32xbf16>
    %cst_103 = arith.constant dense<0.000000e+00> : vector<32x32xf32>
    %294 = tpu.matmul %292, %293, %cst_103 {dimension_numbers = #tpu.dot_dimension_numbers<[1], [0], [0], [1], [0, 0, 1, 1], [], []>} : vector<32x8xbf16>, vector<8x32xbf16>, vector<32x32xf32> -> vector<32x32xf32>
    %295 = arith.addf %266, %294 : vector<32x32xf32>
    %296 = vector.extract_strided_slice %232 {offsets = [0, 0, 16], sizes = [2, 16, 8], strides = [1, 1, 1]} : vector<2x16x32xf32> to vector<2x16x8xf32>
    %297 = arith.truncf %296 : vector<2x16x8xf32> to vector<2x16x8xbf16>
    %298 = vector.extract_strided_slice %233 {offsets = [0, 0, 16], sizes = [2, 16, 8], strides = [1, 1, 1]} : vector<2x16x32xf32> to vector<2x16x8xf32>
    %299 = arith.truncf %298 : vector<2x16x8xf32> to vector<2x16x8xbf16>
    %300 = vector.extract_strided_slice %234 {offsets = [0, 0, 16], sizes = [2, 16, 8], strides = [1, 1, 1]} : vector<2x16x32xf32> to vector<2x16x8xf32>
    %301 = arith.truncf %300 : vector<2x16x8xf32> to vector<2x16x8xbf16>
    "tpu.trace_start"() <{level = 10 : i32, message = "bqd,bkd->bqk"}> : () -> ()
    %cst_104 = arith.constant dense<0.000000e+00> : vector<2x16x16xf32>
    %302 = tpu.matmul %297, %299, %cst_104 {dimension_numbers = #tpu.dot_dimension_numbers<[2], [2], [1], [1], [0, 0, 0, 1, 1, 1], [0], [0]>} : vector<2x16x8xbf16>, vector<2x16x8xbf16>, vector<2x16x16xf32> -> vector<2x16x16xf32>
    "tpu.trace_stop"() : () -> ()
    %cst_105 = arith.constant 0.353553385 : f32
    %303 = vector.broadcast %cst_105 : f32 to vector<2x16x16xf32>
    %304 = arith.mulf %302, %303 : vector<2x16x16xf32>
    %305 = vector.shape_cast %5 : vector<16x16xf32> to vector<1x16x16xf32>
    %306 = vector.broadcast %305 : vector<1x16x16xf32> to vector<2x16x16xf32>
    %307 = arith.addf %304, %306 : vector<2x16x16xf32>
    %cst_106 = arith.constant dense<0xFF800000> : vector<2x16xf32>
    %308 = vector.multi_reduction <maximumf>, %307, %cst_106 [2] : vector<2x16x16xf32> to vector<2x16xf32>
    %309 = vector.shape_cast %308 : vector<2x16xf32> to vector<2x16x1xf32>
    %310 = vector.broadcast %309 : vector<2x16x1xf32> to vector<2x16x16xf32>
    %311 = arith.subf %307, %310 : vector<2x16x16xf32>
    %312 = math.exp %311 : vector<2x16x16xf32>
    %cst_107 = arith.constant dense<0.000000e+00> : vector<2x16xf32>
    %313 = vector.multi_reduction <add>, %312, %cst_107 [2] : vector<2x16x16xf32> to vector<2x16xf32>
    %314 = vector.shape_cast %313 : vector<2x16xf32> to vector<2x16x1xf32>
    %315 = tpu.reciprocal %314 {approx = true} : vector<2x16x1xf32> -> vector<2x16x1xf32>
    %316 = vector.broadcast %315 : vector<2x16x1xf32> to vector<2x16x16xf32>
    %317 = arith.mulf %312, %316 : vector<2x16x16xf32>
    %318 = arith.truncf %317 : vector<2x16x16xf32> to vector<2x16x16xbf16>
    "tpu.trace_start"() <{level = 10 : i32, message = "bqk,bkd->bqd"}> : () -> ()
    %cst_108 = arith.constant dense<0.000000e+00> : vector<2x16x8xf32>
    %319 = tpu.matmul %318, %301, %cst_108 {dimension_numbers = #tpu.dot_dimension_numbers<[2], [1], [1], [2], [0, 0, 0, 1, 1, 2], [0], [0]>} : vector<2x16x16xbf16>, vector<2x16x8xbf16>, vector<2x16x8xf32> -> vector<2x16x8xf32>
    "tpu.trace_stop"() : () -> ()
    %320 = vector.shape_cast %319 : vector<2x16x8xf32> to vector<32x8xf32>
    %321 = arith.truncf %320 : vector<32x8xf32> to vector<32x8xbf16>
    %322 = vector.extract_strided_slice %236 {offsets = [16, 0], sizes = [8, 32], strides = [1, 1]} : vector<32x32xbf16> to vector<8x32xbf16>
    %cst_109 = arith.constant dense<0.000000e+00> : vector<32x32xf32>
    %323 = tpu.matmul %321, %322, %cst_109 {dimension_numbers = #tpu.dot_dimension_numbers<[1], [0], [0], [1], [0, 0, 1, 1], [], []>} : vector<32x8xbf16>, vector<8x32xbf16>, vector<32x32xf32> -> vector<32x32xf32>
    %324 = arith.addf %295, %323 : vector<32x32xf32>
    %325 = vector.extract_strided_slice %232 {offsets = [0, 0, 24], sizes = [2, 16, 8], strides = [1, 1, 1]} : vector<2x16x32xf32> to vector<2x16x8xf32>
    %326 = arith.truncf %325 : vector<2x16x8xf32> to vector<2x16x8xbf16>
    %327 = vector.extract_strided_slice %233 {offsets = [0, 0, 24], sizes = [2, 16, 8], strides = [1, 1, 1]} : vector<2x16x32xf32> to vector<2x16x8xf32>
    %328 = arith.truncf %327 : vector<2x16x8xf32> to vector<2x16x8xbf16>
    %329 = vector.extract_strided_slice %234 {offsets = [0, 0, 24], sizes = [2, 16, 8], strides = [1, 1, 1]} : vector<2x16x32xf32> to vector<2x16x8xf32>
    %330 = arith.truncf %329 : vector<2x16x8xf32> to vector<2x16x8xbf16>
    "tpu.trace_start"() <{level = 10 : i32, message = "bqd,bkd->bqk"}> : () -> ()
    %cst_110 = arith.constant dense<0.000000e+00> : vector<2x16x16xf32>
    %331 = tpu.matmul %326, %328, %cst_110 {dimension_numbers = #tpu.dot_dimension_numbers<[2], [2], [1], [1], [0, 0, 0, 1, 1, 1], [0], [0]>} : vector<2x16x8xbf16>, vector<2x16x8xbf16>, vector<2x16x16xf32> -> vector<2x16x16xf32>
    "tpu.trace_stop"() : () -> ()
    %cst_111 = arith.constant 0.353553385 : f32
    %332 = vector.broadcast %cst_111 : f32 to vector<2x16x16xf32>
    %333 = arith.mulf %331, %332 : vector<2x16x16xf32>
    %334 = vector.shape_cast %5 : vector<16x16xf32> to vector<1x16x16xf32>
    %335 = vector.broadcast %334 : vector<1x16x16xf32> to vector<2x16x16xf32>
    %336 = arith.addf %333, %335 : vector<2x16x16xf32>
    %cst_112 = arith.constant dense<0xFF800000> : vector<2x16xf32>
    %337 = vector.multi_reduction <maximumf>, %336, %cst_112 [2] : vector<2x16x16xf32> to vector<2x16xf32>
    %338 = vector.shape_cast %337 : vector<2x16xf32> to vector<2x16x1xf32>
    %339 = vector.broadcast %338 : vector<2x16x1xf32> to vector<2x16x16xf32>
    %340 = arith.subf %336, %339 : vector<2x16x16xf32>
    %341 = math.exp %340 : vector<2x16x16xf32>
    %cst_113 = arith.constant dense<0.000000e+00> : vector<2x16xf32>
    %342 = vector.multi_reduction <add>, %341, %cst_113 [2] : vector<2x16x16xf32> to vector<2x16xf32>
    %343 = vector.shape_cast %342 : vector<2x16xf32> to vector<2x16x1xf32>
    %344 = tpu.reciprocal %343 {approx = true} : vector<2x16x1xf32> -> vector<2x16x1xf32>
    %345 = vector.broadcast %344 : vector<2x16x1xf32> to vector<2x16x16xf32>
    %346 = arith.mulf %341, %345 : vector<2x16x16xf32>
    %347 = arith.truncf %346 : vector<2x16x16xf32> to vector<2x16x16xbf16>
    "tpu.trace_start"() <{level = 10 : i32, message = "bqk,bkd->bqd"}> : () -> ()
    %cst_114 = arith.constant dense<0.000000e+00> : vector<2x16x8xf32>
    %348 = tpu.matmul %347, %330, %cst_114 {dimension_numbers = #tpu.dot_dimension_numbers<[2], [1], [1], [2], [0, 0, 0, 1, 1, 2], [0], [0]>} : vector<2x16x16xbf16>, vector<2x16x8xbf16>, vector<2x16x8xf32> -> vector<2x16x8xf32>
    "tpu.trace_stop"() : () -> ()
    %349 = vector.shape_cast %348 : vector<2x16x8xf32> to vector<32x8xf32>
    %350 = arith.truncf %349 : vector<32x8xf32> to vector<32x8xbf16>
    %351 = vector.extract_strided_slice %236 {offsets = [24, 0], sizes = [8, 32], strides = [1, 1]} : vector<32x32xbf16> to vector<8x32xbf16>
    %cst_115 = arith.constant dense<0.000000e+00> : vector<32x32xf32>
    %352 = tpu.matmul %350, %351, %cst_115 {dimension_numbers = #tpu.dot_dimension_numbers<[1], [0], [0], [1], [0, 0, 1, 1], [], []>} : vector<32x8xbf16>, vector<8x32xbf16>, vector<32x32xf32> -> vector<32x32xf32>
    %353 = arith.addf %324, %352 : vector<32x32xf32>
    %c1_116 = arith.constant 1 : index
    %c0_117 = arith.constant 0 : index
    %c0_118 = arith.constant 0 : index
    %354 = vector.load %arg6[%c1_116, %c0_117, %c0_118] : memref<2x1x32xf32, #tpu.memory_space<vmem>>, vector<1x1x32xf32>
    %355 = vector.shape_cast %354 : vector<1x1x32xf32> to vector<1x32xf32>
    %356 = vector.broadcast %355 : vector<1x32xf32> to vector<32x32xf32>
    %357 = arith.addf %353, %356 : vector<32x32xf32>
    %358 = arith.addf %222, %357 : vector<32x32xf32>
    %c1_119 = arith.constant 1 : index
    %c0_120 = arith.constant 0 : index
    %c0_121 = arith.constant 0 : index
    %359 = vector.load %arg7[%c1_119, %c0_120, %c0_121] : memref<2x1x32xf32, #tpu.memory_space<vmem>>, vector<1x1x32xf32>
    %360 = vector.shape_cast %359 : vector<1x1x32xf32> to vector<1x32xf32>
    %c1_122 = arith.constant 1 : index
    %c0_123 = arith.constant 0 : index
    %c0_124 = arith.constant 0 : index
    %361 = vector.load %arg8[%c1_122, %c0_123, %c0_124] : memref<2x1x32xf32, #tpu.memory_space<vmem>>, vector<1x1x32xf32>
    %362 = vector.shape_cast %361 : vector<1x1x32xf32> to vector<1x32xf32>
    %cst_125 = arith.constant dense<0.000000e+00> : vector<32xf32>
    %363 = vector.multi_reduction <add>, %358, %cst_125 [1] : vector<32x32xf32> to vector<32xf32>
    %364 = vector.shape_cast %363 : vector<32xf32> to vector<32x1xf32>
    %cst_126 = arith.constant 3.200000e+01 : f32
    %365 = vector.broadcast %cst_126 : f32 to vector<32x1xf32>
    %366 = arith.divf %364, %365 : vector<32x1xf32>
    %367 = vector.broadcast %366 : vector<32x1xf32> to vector<32x32xf32>
    %368 = arith.subf %358, %367 : vector<32x32xf32>
    %369 = arith.mulf %368, %368 : vector<32x32xf32>
    %cst_127 = arith.constant dense<0.000000e+00> : vector<32xf32>
    %370 = vector.multi_reduction <add>, %369, %cst_127 [1] : vector<32x32xf32> to vector<32xf32>
    %371 = vector.shape_cast %370 : vector<32xf32> to vector<32x1xf32>
    %cst_128 = arith.constant 3.200000e+01 : f32
    %372 = vector.broadcast %cst_128 : f32 to vector<32x1xf32>
    %373 = arith.divf %371, %372 : vector<32x1xf32>
    %374 = vector.broadcast %366 : vector<32x1xf32> to vector<32x32xf32>
    %375 = arith.subf %358, %374 : vector<32x32xf32>
    %cst_129 = arith.constant 9.99999974E-6 : f32
    %376 = vector.broadcast %cst_129 : f32 to vector<32x1xf32>
    %377 = arith.addf %373, %376 : vector<32x1xf32>
    %378 = math.rsqrt %377 : vector<32x1xf32>
    %379 = vector.broadcast %378 : vector<32x1xf32> to vector<32x32xf32>
    %380 = arith.mulf %375, %379 : vector<32x32xf32>
    %381 = vector.broadcast %360 : vector<1x32xf32> to vector<32x32xf32>
    %382 = arith.mulf %380, %381 : vector<32x32xf32>
    %383 = vector.broadcast %362 : vector<1x32xf32> to vector<32x32xf32>
    %384 = arith.addf %382, %383 : vector<32x32xf32>
    %385 = arith.truncf %384 : vector<32x32xf32> to vector<32x32xbf16>
    %c1_130 = arith.constant 1 : index
    %c0_131 = arith.constant 0 : index
    %c0_132 = arith.constant 0 : index
    %386 = vector.load %arg9[%c1_130, %c0_131, %c0_132] : memref<2x32x128xbf16, #tpu.memory_space<vmem>>, vector<1x32x128xbf16>
    %387 = vector.shape_cast %386 : vector<1x32x128xbf16> to vector<32x128xbf16>
    %cst_133 = arith.constant dense<0.000000e+00> : vector<32x128xf32>
    %388 = tpu.matmul %385, %387, %cst_133 {dimension_numbers = #tpu.dot_dimension_numbers<[1], [0], [0], [1], [0, 0, 1, 1], [], []>} : vector<32x32xbf16>, vector<32x128xbf16>, vector<32x128xf32> -> vector<32x128xf32>
    %c1_134 = arith.constant 1 : index
    %c0_135 = arith.constant 0 : index
    %c0_136 = arith.constant 0 : index
    %389 = vector.load %arg10[%c1_134, %c0_135, %c0_136] : memref<2x1x128xf32, #tpu.memory_space<vmem>>, vector<1x1x128xf32>
    %390 = vector.shape_cast %389 : vector<1x1x128xf32> to vector<1x128xf32>
    %391 = vector.broadcast %390 : vector<1x128xf32> to vector<32x128xf32>
    %392 = arith.addf %388, %391 : vector<32x128xf32>
    %cst_137 = arith.constant 0.000000e+00 : f32
    %393 = vector.broadcast %cst_137 : f32 to vector<32x128xf32>
    %394 = arith.maximumf %392, %393 : vector<32x128xf32>
    %395 = arith.truncf %394 : vector<32x128xf32> to vector<32x128xbf16>
    %c1_138 = arith.constant 1 : index
    %c0_139 = arith.constant 0 : index
    %c0_140 = arith.constant 0 : index
    %396 = vector.load %arg11[%c1_138, %c0_139, %c0_140] : memref<2x128x32xbf16, #tpu.memory_space<vmem>>, vector<1x128x32xbf16>
    %397 = vector.shape_cast %396 : vector<1x128x32xbf16> to vector<128x32xbf16>
    %cst_141 = arith.constant dense<0.000000e+00> : vector<32x32xf32>
    %398 = tpu.matmul %395, %397, %cst_141 {dimension_numbers = #tpu.dot_dimension_numbers<[1], [0], [0], [1], [0, 0, 1, 1], [], []>} : vector<32x128xbf16>, vector<128x32xbf16>, vector<32x32xf32> -> vector<32x32xf32>
    %c1_142 = arith.constant 1 : index
    %c0_143 = arith.constant 0 : index
    %c0_144 = arith.constant 0 : index
    %399 = vector.load %arg12[%c1_142, %c0_143, %c0_144] : memref<2x1x32xf32, #tpu.memory_space<vmem>>, vector<1x1x32xf32>
    %400 = vector.shape_cast %399 : vector<1x1x32xf32> to vector<1x32xf32>
    %401 = vector.broadcast %400 : vector<1x32xf32> to vector<32x32xf32>
    %402 = arith.addf %398, %401 : vector<32x32xf32>
    %403 = arith.addf %384, %402 : vector<32x32xf32>
    %c1_145 = arith.constant 1 : index
    %c0_146 = arith.constant 0 : index
    %c0_147 = arith.constant 0 : index
    %404 = vector.load %arg13[%c1_145, %c0_146, %c0_147] : memref<2x1x32xf32, #tpu.memory_space<vmem>>, vector<1x1x32xf32>
    %405 = vector.shape_cast %404 : vector<1x1x32xf32> to vector<1x32xf32>
    %c1_148 = arith.constant 1 : index
    %c0_149 = arith.constant 0 : index
    %c0_150 = arith.constant 0 : index
    %406 = vector.load %arg14[%c1_148, %c0_149, %c0_150] : memref<2x1x32xf32, #tpu.memory_space<vmem>>, vector<1x1x32xf32>
    %407 = vector.shape_cast %406 : vector<1x1x32xf32> to vector<1x32xf32>
    %cst_151 = arith.constant dense<0.000000e+00> : vector<32xf32>
    %408 = vector.multi_reduction <add>, %403, %cst_151 [1] : vector<32x32xf32> to vector<32xf32>
    %409 = vector.shape_cast %408 : vector<32xf32> to vector<32x1xf32>
    %cst_152 = arith.constant 3.200000e+01 : f32
    %410 = vector.broadcast %cst_152 : f32 to vector<32x1xf32>
    %411 = arith.divf %409, %410 : vector<32x1xf32>
    %412 = vector.broadcast %411 : vector<32x1xf32> to vector<32x32xf32>
    %413 = arith.subf %403, %412 : vector<32x32xf32>
    %414 = arith.mulf %413, %413 : vector<32x32xf32>
    %cst_153 = arith.constant dense<0.000000e+00> : vector<32xf32>
    %415 = vector.multi_reduction <add>, %414, %cst_153 [1] : vector<32x32xf32> to vector<32xf32>
    %416 = vector.shape_cast %415 : vector<32xf32> to vector<32x1xf32>
    %cst_154 = arith.constant 3.200000e+01 : f32
    %417 = vector.broadcast %cst_154 : f32 to vector<32x1xf32>
    %418 = arith.divf %416, %417 : vector<32x1xf32>
    %419 = vector.broadcast %411 : vector<32x1xf32> to vector<32x32xf32>
    %420 = arith.subf %403, %419 : vector<32x32xf32>
    %cst_155 = arith.constant 9.99999974E-6 : f32
    %421 = vector.broadcast %cst_155 : f32 to vector<32x1xf32>
    %422 = arith.addf %418, %421 : vector<32x1xf32>
    %423 = math.rsqrt %422 : vector<32x1xf32>
    %424 = vector.broadcast %423 : vector<32x1xf32> to vector<32x32xf32>
    %425 = arith.mulf %420, %424 : vector<32x32xf32>
    %426 = vector.broadcast %405 : vector<1x32xf32> to vector<32x32xf32>
    %427 = arith.mulf %425, %426 : vector<32x32xf32>
    %428 = vector.broadcast %407 : vector<1x32xf32> to vector<32x32xf32>
    %429 = arith.addf %427, %428 : vector<32x32xf32>
    %430 = vector.shape_cast %429 : vector<32x32xf32> to vector<2x16x32xf32>
    %431 = vector.extract_strided_slice %430 {offsets = [0, 8, 0], sizes = [2, 1, 32], strides = [1, 1, 1]} : vector<2x16x32xf32> to vector<2x1x32xf32>
    %432 = vector.shape_cast %431 : vector<2x1x32xf32> to vector<2x32xf32>
    %433 = arith.truncf %432 : vector<2x32xf32> to vector<2x32xbf16>
    %c0_156 = arith.constant 0 : index
    %c0_157 = arith.constant 0 : index
    %434 = vector.load %arg15[%c0_156, %c0_157] : memref<32x128xbf16, #tpu.memory_space<vmem>>, vector<32x128xbf16>
    %cst_158 = arith.constant dense<0.000000e+00> : vector<2x128xf32>
    %435 = tpu.matmul %433, %434, %cst_158 {dimension_numbers = #tpu.dot_dimension_numbers<[1], [0], [0], [1], [0, 0, 1, 1], [], []>} : vector<2x32xbf16>, vector<32x128xbf16>, vector<2x128xf32> -> vector<2x128xf32>
    %c0_159 = arith.constant 0 : index
    %c0_160 = arith.constant 0 : index
    %436 = vector.load %arg16[%c0_159, %c0_160] : memref<1x128xf32, #tpu.memory_space<vmem>>, vector<1x128xf32>
    %437 = vector.broadcast %436 : vector<1x128xf32> to vector<2x128xf32>
    %438 = arith.addf %435, %437 : vector<2x128xf32>
    %c0_161 = arith.constant 0 : index
    %c0_162 = arith.constant 0 : index
    %439 = vector.load %arg17[%c0_161, %c0_162] : memref<2x128xf32, #tpu.memory_space<vmem>>, vector<2x128xf32>
    tpu.vector_store %arg17[%c0_161, %c0_162], %438 {strides = array<i32>} : memref<2x128xf32, #tpu.memory_space<vmem>>, vector<2x128xf32>,
    return
  }
}

</mosaic_0001>

<llo_original>
// kernel: tsd_forward.1
$region0: #{tsd_forward.1}
  #allocation0 [shape = 'u32[]', space=smem, size = 0x4, offset = 0x4, fixed_abs, tag = 'smem constant byte address 0x4 - core index']
  #allocation1 [shape = 'u32[144,128]{1,0:T(1,128)}', space=vmem, size = 0x12000, scoped, tag = 'internal scratch']
  %s0 = inlined_call_operand.vmem [shape: f32[32,16], index: 0, kind: input, shape index: {}]
  %s1 = inlined_call_operand.vmem [shape: bf16[16,32], index: 1, kind: input, shape index: {}]
  %s2 = inlined_call_operand.vmem [shape: f32[16,32], index: 2, kind: input, shape index: {}]
  %s3 = inlined_call_operand.vmem [shape: bf16[2,32,96], index: 3, kind: input, shape index: {}]
  %s4 = inlined_call_operand.vmem [shape: f32[2,1,96], index: 4, kind: input, shape index: {}]
  %s5 = inlined_call_operand.vmem [shape: bf16[2,32,32], index: 5, kind: input, shape index: {}]
  %s6 = inlined_call_operand.vmem [shape: f32[2,1,32], index: 6, kind: input, shape index: {}]
  %s7 = inlined_call_operand.vmem [shape: f32[2,1,32], index: 7, kind: input, shape index: {}]
  %s8 = inlined_call_operand.vmem [shape: f32[2,1,32], index: 8, kind: input, shape index: {}]
  %s9 = inlined_call_operand.vmem [shape: bf16[2,32,128], index: 9, kind: input, shape index: {}]
  %s10 = inlined_call_operand.vmem [shape: f32[2,1,128], index: 10, kind: input, shape index: {}]
  %s11 = inlined_call_operand.vmem [shape: bf16[2,128,32], index: 11, kind: input, shape index: {}]
  %s12 = inlined_call_operand.vmem [shape: f32[2,1,32], index: 12, kind: input, shape index: {}]
  %s13 = inlined_call_operand.vmem [shape: f32[2,1,32], index: 13, kind: input, shape index: {}]
  %s14 = inlined_call_operand.vmem [shape: f32[2,1,32], index: 14, kind: input, shape index: {}]
  %s15 = inlined_call_operand.vmem [shape: bf16[32,128], index: 15, kind: input, shape index: {}]
  %s16 = inlined_call_operand.vmem [shape: f32[1,128], index: 16, kind: input, shape index: {}]
  %s17 = inlined_call_operand.hbm [shape: f32[2,128], index: 17, kind: output, shape index: {}]
  %s18 = sld [smem:[#allocation0]]
  $region78: #{tsd_forward.1} parent=0
    _
  %s20 = ssub.s32 1, %s18
  %s21 = scalar_select 0, %s20, %s18
  $region1: #{tsd_forward.1} parent=0
    #allocation2 [shape = 'u8[1024]{0}', space=vmem, size = 0x400, scoped, tag = 'output window, operand 0, single buffered']
    #allocation3 [shape = 's32[1]{0}', space=sflag, size = 0x4, scoped, tag = 'scoped memory for tsd_forward.1']
    %22 = vsyncpa [#allocation3], 0
    // Predicated region
    $region2: #{tsd_forward.1} parent=1 // pred_check
      _
    $region3: #{tsd_forward.1} parent=1 // pred_check_branch
      %24 = sbr.rel (0) target = $region5
    $region4: #{tsd_forward.1} parent=1 // pred_region
      _
    $region5: #{tsd_forward.1} parent=1 // pred_fallthru
      _
    // Predicated region
    $region6: #{tsd_forward.1} parent=1 // pred_check
      _
    $region7: #{tsd_forward.1} parent=1 // pred_check_branch
      %26 = sbr.rel (0) target = $region9
    $region8: #{tsd_forward.1} parent=1 // pred_region
      _
    $region9: #{tsd_forward.1} parent=1 // pred_fallthru
      _
    // Predicated region
    $region10: #{tsd_forward.1} parent=1 // pred_check
      _
    $region11: #{tsd_forward.1} parent=1 // pred_check_branch
      %28 = sbr.rel (0) target = $region13
    $region12: #{tsd_forward.1} parent=1 // pred_region
      _
    $region13: #{tsd_forward.1} parent=1 // pred_fallthru
      _
    // Predicated region
    $region14: #{tsd_forward.1} parent=1 // pred_check
      _
    $region15: #{tsd_forward.1} parent=1 // pred_check_branch
      %30 = sbr.rel (0) target = $region17
    $region16: #{tsd_forward.1} parent=1 // pred_region
      _
    $region17: #{tsd_forward.1} parent=1 // pred_fallthru
      _
    // Predicated region
    $region18: #{tsd_forward.1} parent=1 // pred_check
      _
    $region19: #{tsd_forward.1} parent=1 // pred_check_branch
      %32 = sbr.rel (0) target = $region21
    $region20: #{tsd_forward.1} parent=1 // pred_region
      _
    $region21: #{tsd_forward.1} parent=1 // pred_fallthru
      _
    // Predicated region
    $region22: #{tsd_forward.1} parent=1 // pred_check
      _
    $region23: #{tsd_forward.1} parent=1 // pred_check_branch
      %34 = sbr.rel (0) target = $region25
    $region24: #{tsd_forward.1} parent=1 // pred_region
      _
    $region25: #{tsd_forward.1} parent=1 // pred_fallthru
      _
    // Predicated region
    $region26: #{tsd_forward.1} parent=1 // pred_check
      _
    $region27: #{tsd_forward.1} parent=1 // pred_check_branch
      %36 = sbr.rel (0) target = $region29
    $region28: #{tsd_forward.1} parent=1 // pred_region
      _
    $region29: #{tsd_forward.1} parent=1 // pred_fallthru
      _
    // Predicated region
    $region30: #{tsd_forward.1} parent=1 // pred_check
      _
    $region31: #{tsd_forward.1} parent=1 // pred_check_branch
      %38 = sbr.rel (0) target = $region33
    $region32: #{tsd_forward.1} parent=1 // pred_region
      _
    $region33: #{tsd_forward.1} parent=1 // pred_fallthru
      _
    // Predicated region
    $region34: #{tsd_forward.1} parent=1 // pred_check
      _
    $region35: #{tsd_forward.1} parent=1 // pred_check_branch
      %40 = sbr.rel (0) target = $region37
    $region36: #{tsd_forward.1} parent=1 // pred_region
      _
    $region37: #{tsd_forward.1} parent=1 // pred_fallthru
      _
    // Predicated region
    $region38: #{tsd_forward.1} parent=1 // pred_check
      _
    $region39: #{tsd_forward.1} parent=1 // pred_check_branch
      %42 = sbr.rel (0) target = $region41
    $region40: #{tsd_forward.1} parent=1 // pred_region
      _
    $region41: #{tsd_forward.1} parent=1 // pred_fallthru
      _
    // Predicated region
    $region42: #{tsd_forward.1} parent=1 // pred_check
      _
    $region43: #{tsd_forward.1} parent=1 // pred_check_branch
      %44 = sbr.rel (0) target = $region45
    $region44: #{tsd_forward.1} parent=1 // pred_region
      _
    $region45: #{tsd_forward.1} parent=1 // pred_fallthru
      _
    // Predicated region
    $region46: #{tsd_forward.1} parent=1 // pred_check
      _
    $region47: #{tsd_forward.1} parent=1 // pred_check_branch
      %46 = sbr.rel (0) target = $region49
    $region48: #{tsd_forward.1} parent=1 // pred_region
      _
    $region49: #{tsd_forward.1} parent=1 // pred_fallthru
      _
    // Predicated region
    $region50: #{tsd_forward.1} parent=1 // pred_check
      _
    $region51: #{tsd_forward.1} parent=1 // pred_check_branch
      %48 = sbr.rel (0) target = $region53
    $region52: #{tsd_forward.1} parent=1 // pred_region
      _
    $region53: #{tsd_forward.1} parent=1 // pred_fallthru
      _
    // Predicated region
    $region54: #{tsd_forward.1} parent=1 // pred_check
      _
    $region55: #{tsd_forward.1} parent=1 // pred_check_branch
      %50 = sbr.rel (0) target = $region57
    $region56: #{tsd_forward.1} parent=1 // pred_region
      _
    $region57: #{tsd_forward.1} parent=1 // pred_fallthru
      _
    // Predicated region
    $region58: #{tsd_forward.1} parent=1 // pred_check
      _
    $region59: #{tsd_forward.1} parent=1 // pred_check_branch
      %52 = sbr.rel (0) target = $region61
    $region60: #{tsd_forward.1} parent=1 // pred_region
      _
    $region61: #{tsd_forward.1} parent=1 // pred_fallthru
      _
    // Predicated region
    $region62: #{tsd_forward.1} parent=1 // pred_check
      _
    $region63: #{tsd_forward.1} parent=1 // pred_check_branch
      %54 = sbr.rel (0) target = $region65
    $region64: #{tsd_forward.1} parent=1 // pred_region
      _
    $region65: #{tsd_forward.1} parent=1 // pred_fallthru
      _
    // Predicated region
    $region66: #{tsd_forward.1} parent=1 // pred_check
      _
    $region67: #{tsd_forward.1} parent=1 // pred_check_branch
      %56 = sbr.rel (0) target = $region69
    $region68: #{tsd_forward.1} parent=1 // pred_region
      _
    $region69: #{tsd_forward.1} parent=1 // pred_fallthru
      _
    %v58 = vlaneseq
    %v59 = vshrl.u32 %v58, 7
    %v60 = vadd.s32 %v59, 8
    %v61 = vlaneseq
    %v62 = vand.u32 %v61, 127
    %vm63 = vcmp.gt.s32.totalorder %v62, %v59
    %vm64 = vcmp.gt.s32.totalorder %v62, %v60
    %v65 = vsel %vm63, -1e+09, 0.0
    %v66 = vsel %vm64, -1e+09, 0.0
    %v67 = vld [vmem:[%s0] sm:$0xff]
    %v68 = vld [vmem:[%s0 + $0x8] sm:$0xff]
    %v69 = vld [vmem:[%s0 + $0x10] sm:$0xff]
    %v70 = vld [vmem:[%s0 + $0x18] sm:$0xff]
    %v71 = vpack.c.bf16 %v68, %v67
    %v72 = vpack.c.bf16 %v70, %v69
    %v73 = vld [vmem:[%s1] sm:$0xf]
    %v74 = vld [vmem:[%s1 + $0x4] sm:$0xf]
    %v77 = vunpack.c.l.b16 %v73
    %v78 = vunpack.c.l.b16 %v74
    %v79 = vpack.c.b16 %v78, %v77
    %vm81 = vcmask 130048
    %v83 = vsel %vm81, %v71, 0
    %v86 = vsel %vm81, %v72, 0
    %88 = vmatprep.subr.bf16.mxu0 0
    %89 = vmatpush1.bf16.msra.mxu0 0
    %90 = vmatprep.subr.bf16.mxu0 0
    %91 = vmatpush1.bf16.msra.mxu0 0
    %92 = vmatprep.subr.bf16.mxu0 0
    %93 = vmatpush1.bf16.msra.mxu0 0
    %94 = vmatprep.subr.bf16.mxu0 0
    %95 = vmatpush1.bf16.msra.mxu0 0
    %96 = vmatprep.subr.bf16.mxu0 0
    %97 = vmatpush1.bf16.msra.mxu0 0
    %98 = vmatprep.subr.bf16.mxu0 0
    %99 = vmatpush1.bf16.msra.mxu0 0
    %100 = vmatprep.subr.bf16.mxu0 0
    %101 = vmatpush1.bf16.msra.mxu0 0
    %102 = vmatprep.subr.bf16.mxu0 0
    %103 = vmatpush1.bf16.msra.mxu0 %v79
    %104 = vmatprep.subr.bf16.mxu0 0
    %105 = vmatpush2.bf16.msra.mxu0 0
    %106 = vmatprep.subr.bf16.mxu0 0
    %107 = vmatpush2.bf16.msra.mxu0 0
    %108 = vmatprep.subr.bf16.mxu0 0
    %109 = vmatpush2.bf16.msra.mxu0 0
    %110 = vmatprep.subr.bf16.mxu0 0
    %111 = vmatpush2.bf16.msra.mxu0 0
    %112 = vmatprep.subr.bf16.mxu0 0
    %113 = vmatpush2.bf16.msra.mxu0 0
    %114 = vmatprep.subr.bf16.mxu0 0
    %115 = vmatpush2.bf16.msra.mxu0 0
    %116 = vmatprep.subr.bf16.mxu0 0
    %117 = vmatpush2.bf16.msra.mxu0 0
    %118 = vmatprep.subr.bf16.mxu0 0
    %119 = vmatpush2.bf16.msra.mxu0 0
    %120 = vmatprep.mubr.bf16.mxu0 0
    %121 = vmatmul.mubr.bf16.gmra.mxu0 %v83
    %v122 = vpop.f32.mrf.mxu0
    %v123 = vadd.f32 0.0, %v122
    %v124 = vpop.f32.mrf.mxu0
    %v125 = vpop.f32.mrf.mxu0
    %v126 = vadd.f32 0.0, %v125
    %v127 = vpop.f32.mrf.mxu0
    %128 = vmatprep.mubr.bf16.mxu0 0
    %129 = vmatmul.mubr.bf16.gmra.mxu0 %v86
    %v130 = vpop.f32.mrf.mxu0
    %v131 = vadd.f32 0.0, %v130
    %v132 = vpop.f32.mrf.mxu0
    %v133 = vpop.f32.mrf.mxu0
    %v134 = vadd.f32 0.0, %v133
    %v135 = vpop.f32.mrf.mxu0
    %136 = vdwg.mxu0
    %v137 = vld [vmem:[%s2] sm:$0xff]
    %v138 = vld [vmem:[%s2 + $0x8] sm:$0xff]
    %v139 = vadd.f32 %v123, %v137
    %v140 = vadd.f32 %v126, %v138
    %v141 = vadd.f32 %v131, %v137
    %v142 = vadd.f32 %v134, %v138
    %v143 = vpack.c.bf16 %v140, %v139
    %v144 = vpack.c.bf16 %v142, %v141
    %v145 = vld [vmem:[%s3] sm:$0xf]
    %v146 = vld [vmem:[%s3 + $0x4] sm:$0xf]
    %v147 = vld [vmem:[%s3 + $0x8] sm:$0xf]
    %v148 = vld [vmem:[%s3 + $0xc] sm:$0xf]
    %v149 = vld [vmem:[%s4] sm:$0x1]
    %v151 = vlaneseq
    %v152 = vshrl.u32 %v151, 7
    %v153 = vsub.s32 0, %v152
    %v154 = vrot.slane %v149, %v153
    %v160 = vunpack.c.l.b16 %v145
    %v161 = vunpack.c.l.b16 %v146
    %v162 = vunpack.c.l.b16 %v147
    %v163 = vunpack.c.l.b16 %v148
    %v164 = vpack.c.b16 %v161, %v160
    %v165 = vpack.c.b16 %v163, %v162
    %vm168 = vcmask 261120
    %v170 = vsel %vm168, %v143, 0
    %v173 = vsel %vm168, %v144, 0
    %175 = vmatprep.subr.bf16.mxu0 0
    %176 = vmatpush1.bf16.msra.mxu0 0
    %177 = vmatprep.subr.bf16.mxu0 0
    %178 = vmatpush1.bf16.msra.mxu0 0
    %179 = vmatprep.subr.bf16.mxu0 0
    %180 = vmatpush1.bf16.msra.mxu0 0
    %181 = vmatprep.subr.bf16.mxu0 0
    %182 = vmatpush1.bf16.msra.mxu0 0
    %183 = vmatprep.subr.bf16.mxu0 0
    %184 = vmatpush1.bf16.msra.mxu0 0
    %185 = vmatprep.subr.bf16.mxu0 0
    %186 = vmatpush1.bf16.msra.mxu0 0
    %187 = vmatprep.subr.bf16.mxu0 0
    %188 = vmatpush1.bf16.msra.mxu0 %v165
    %189 = vmatprep.subr.bf16.mxu0 0
    %190 = vmatpush1.bf16.msra.mxu0 %v164
    %191 = vmatprep.subr.bf16.mxu0 0
    %192 = vmatpush2.bf16.msra.mxu0 0
    %193 = vmatprep.subr.bf16.mxu0 0
    %194 = vmatpush2.bf16.msra.mxu0 0
    %195 = vmatprep.subr.bf16.mxu0 0
    %196 = vmatpush2.bf16.msra.mxu0 0
    %197 = vmatprep.subr.bf16.mxu0 0
    %198 = vmatpush2.bf16.msra.mxu0 0
    %199 = vmatprep.subr.bf16.mxu0 0
    %200 = vmatpush2.bf16.msra.mxu0 0
    %201 = vmatprep.subr.bf16.mxu0 0
    %202 = vmatpush2.bf16.msra.mxu0 0
    %203 = vmatprep.subr.bf16.mxu0 0
    %204 = vmatpush2.bf16.msra.mxu0 0
    %205 = vmatprep.subr.bf16.mxu0 0
    %206 = vmatpush2.bf16.msra.mxu0 0
    %207 = vmatprep.mubr.bf16.mxu0 0
    %208 = vmatmul.mubr.bf16.gmra.mxu0 %v170
    %v209 = vpop.f32.mrf.mxu0
    %v210 = vadd.f32 %v154, %v209
    %v211 = vpop.f32.mrf.mxu0
    %v212 = vpop.f32.mrf.mxu0
    %v213 = vadd.f32 %v154, %v212
    %v214 = vpop.f32.mrf.mxu0
    %215 = vmatprep.mubr.bf16.mxu0 0
    %216 = vmatmul.mubr.bf16.gmra.mxu0 %v173
    %v217 = vpop.f32.mrf.mxu0
    %v218 = vadd.f32 %v154, %v217
    %v219 = vpop.f32.mrf.mxu0
    %v220 = vpop.f32.mrf.mxu0
    %v221 = vadd.f32 %v154, %v220
    %v222 = vpop.f32.mrf.mxu0
    %223 = vdwg.mxu0
    %v224 = vld [vmem:[%s5] sm:$0xf]
    %v225 = vld [vmem:[%s5 + $0x4] sm:$0xf]
    %v226 = vld [vmem:[%s5 + $0x8] sm:$0xf]
    %v227 = vld [vmem:[%s5 + $0xc] sm:$0xf]
    %v228 = vpack.c.bf16 %v213, %v210
    %v229 = vpack.c.bf16 %v221, %v218
    %231 = vrot.lane.b32.xlu0 %v228, 96
    %v232 = vpop.permute.xlu0 %231
    %vm233 = vcmask 64512
    %v235 = vsel %vm233, %v228, 0
    %v238 = vsel %vm233, %v232, 0
    %240 = vmatprep.subr.bf16.mxu0 0
    %241 = vmatpush1.bf16.xpose.msra.mxu0 0
    %242 = vmatprep.subr.bf16.mxu0 0
    %243 = vmatpush1.bf16.xpose.msra.mxu0 0
    %244 = vmatprep.subr.bf16.mxu0 0
    %245 = vmatpush1.bf16.xpose.msra.mxu0 0
    %246 = vmatprep.subr.bf16.mxu0 0
    %247 = vmatpush1.bf16.xpose.msra.mxu0 0
    %248 = vmatprep.subr.bf16.mxu0 0
    %249 = vmatpush1.bf16.xpose.msra.mxu0 0
    %250 = vmatprep.subr.bf16.mxu0 0
    %251 = vmatpush1.bf16.xpose.msra.mxu0 0
    %252 = vmatprep.subr.bf16.mxu0 0
    %253 = vmatpush1.bf16.xpose.msra.mxu0 0
    %254 = vmatprep.subr.bf16.mxu0 0
    %255 = vmatpush1.bf16.xpose.msra.mxu0 %v238
    %256 = vmatprep.subr.bf16.mxu0 0
    %257 = vmatpush2.bf16.xpose.msra.mxu0 0
    %258 = vmatprep.subr.bf16.mxu0 0
    %259 = vmatpush2.bf16.xpose.msra.mxu0 0
    %260 = vmatprep.subr.bf16.mxu0 0
    %261 = vmatpush2.bf16.xpose.msra.mxu0 0
    %262 = vmatprep.subr.bf16.mxu0 0
    %263 = vmatpush2.bf16.xpose.msra.mxu0 0
    %264 = vmatprep.subr.bf16.mxu0 0
    %265 = vmatpush2.bf16.xpose.msra.mxu0 0
    %266 = vmatprep.subr.bf16.mxu0 0
    %267 = vmatpush2.bf16.xpose.msra.mxu0 0
    %268 = vmatprep.subr.bf16.mxu0 0
    %269 = vmatpush2.bf16.xpose.msra.mxu0 0
    %270 = vmatprep.subr.bf16.mxu0 0
    %271 = vmatpush2.bf16.xpose.msra.mxu0 0
    %272 = vmatprep.mubr.bf16.mxu0 0
    %273 = vmatmul.mubr.bf16.gmra.mxu0 %v235
    %v274 = vpop.f32.mrf.mxu0
    %v275 = vadd.f32 0.0, %v274
    %v276 = vpop.f32.mrf.mxu0
    %v277 = vpop.f32.mrf.mxu0
    %v278 = vadd.f32 0.0, %v277
    %v279 = vpop.f32.mrf.mxu0
    %280 = vdwg.mxu0
    %282 = vrot.lane.b32.xlu0 %v229, 96
    %v283 = vpop.permute.xlu0 %282
    %v285 = vsel %vm233, %v229, 0
    %v288 = vsel %vm233, %v283, 0
    %290 = vmatprep.subr.bf16.mxu0 0
    %291 = vmatpush1.bf16.xpose.msra.mxu0 0
    %292 = vmatprep.subr.bf16.mxu0 0
    %293 = vmatpush1.bf16.xpose.msra.mxu0 0
    %294 = vmatprep.subr.bf16.mxu0 0
    %295 = vmatpush1.bf16.xpose.msra.mxu0 0
    %296 = vmatprep.subr.bf16.mxu0 0
    %297 = vmatpush1.bf16.xpose.msra.mxu0 0
    %298 = vmatprep.subr.bf16.mxu0 0
    %299 = vmatpush1.bf16.xpose.msra.mxu0 0
    %300 = vmatprep.subr.bf16.mxu0 0
    %301 = vmatpush1.bf16.xpose.msra.mxu0 0
    %302 = vmatprep.subr.bf16.mxu0 0
    %303 = vmatpush1.bf16.xpose.msra.mxu0 0
    %304 = vmatprep.subr.bf16.mxu0 0
    %305 = vmatpush1.bf16.xpose.msra.mxu0 %v288
    %306 = vmatprep.subr.bf16.mxu0 0
    %307 = vmatpush2.bf16.xpose.msra.mxu0 0
    %308 = vmatprep.subr.bf16.mxu0 0
    %309 = vmatpush2.bf16.xpose.msra.mxu0 0
    %310 = vmatprep.subr.bf16.mxu0 0
    %311 = vmatpush2.bf16.xpose.msra.mxu0 0
    %312 = vmatprep.subr.bf16.mxu0 0
    %313 = vmatpush2.bf16.xpose.msra.mxu0 0
    %314 = vmatprep.subr.bf16.mxu0 0
    %315 = vmatpush2.bf16.xpose.msra.mxu0 0
    %316 = vmatprep.subr.bf16.mxu0 0
    %317 = vmatpush2.bf16.xpose.msra.mxu0 0
    %318 = vmatprep.subr.bf16.mxu0 0
    %319 = vmatpush2.bf16.xpose.msra.mxu0 0
    %320 = vmatprep.subr.bf16.mxu0 0
    %321 = vmatpush2.bf16.xpose.msra.mxu0 0
    %322 = vmatprep.mubr.bf16.mxu0 0
    %323 = vmatmul.mubr.bf16.gmra.mxu0 %v285
    %v324 = vpop.f32.mrf.mxu0
    %v325 = vadd.f32 0.0, %v324
    %v326 = vpop.f32.mrf.mxu0
    %v327 = vpop.f32.mrf.mxu0
    %v328 = vadd.f32 0.0, %v327
    %v329 = vpop.f32.mrf.mxu0
    %330 = vdwg.mxu0
    %v331 = vmul.f32 %v275, 0.35355338
    %v332 = vmul.f32 %v278, 0.35355338
    %v333 = vmul.f32 %v325, 0.35355338
    %v334 = vmul.f32 %v328, 0.35355338
    %v335 = vadd.f32 %v331, %v65
    %v336 = vadd.f32 %v332, %v66
    %v337 = vadd.f32 %v333, %v65
    %v338 = vadd.f32 %v334, %v66
    %v339 = vsel %vm81, %v335, -inf
    %340 = vmax.xlane.f32.xlu0 %v339
    %v341 = vpop.xlane.xlu0 %340
    %v342 = vsel %vm81, %v336, -inf
    %343 = vmax.xlane.f32.xlu0 %v342
    %v344 = vpop.xlane.xlu0 %343
    %v345 = vsel %vm81, %v337, -inf
    %346 = vmax.xlane.f32.xlu0 %v345
    %v347 = vpop.xlane.xlu0 %346
    %v348 = vsel %vm81, %v338, -inf
    %349 = vmax.xlane.f32.xlu0 %v348
    %v350 = vpop.xlane.xlu0 %349
    %v351 = vsub.f32 %v335, %v341
    %v352 = vsub.f32 %v336, %v344
    %v353 = vsub.f32 %v337, %v347
    %v354 = vsub.f32 %v338, %v350
    %v355 = vmul.f32 %v351, 1.442695
    %v356 = vpow.pop %v355
    %v357 = vmul.f32 %v352, 1.442695
    %v358 = vpow.pop %v357
    %v359 = vmul.f32 %v353, 1.442695
    %v360 = vpow.pop %v359
    %v361 = vmul.f32 %v354, 1.442695
    %v362 = vpow.pop %v361
    %v363 = vsel %vm81, %v356, 0.0
    %364 = vadd.xlane.f32.xlu0 %v363
    %v365 = vpop.xlane.xlu0 %364
    %v366 = vsel %vm81, %v358, 0.0
    %367 = vadd.xlane.f32.xlu0 %v366
    %v368 = vpop.xlane.xlu0 %367
    %v369 = vsel %vm81, %v360, 0.0
    %370 = vadd.xlane.f32.xlu0 %v369
    %v371 = vpop.xlane.xlu0 %370
    %v372 = vsel %vm81, %v362, 0.0
    %373 = vadd.xlane.f32.xlu0 %v372
    %v374 = vpop.xlane.xlu0 %373
    %v375 = vrcp.pop %v365
    %v376 = vrcp.pop %v368
    %v377 = vrcp.pop %v371
    %v378 = vrcp.pop %v374
    %v379 = vmul.f32 %v356, %v375
    %v380 = vmul.f32 %v358, %v376
    %v381 = vmul.f32 %v360, %v377
    %v382 = vmul.f32 %v362, %v378
    %v383 = vpack.c.bf16 %v380, %v379
    %v384 = vpack.c.bf16 %v382, %v381
    %385 = vrot.lane.b32.xlu0 %v228, 64
    %v386 = vpop.permute.xlu0 %385
    %v389 = vsel %vm81, %v383, 0
    %391 = vmatprep.subr.bf16.mxu0 0
    %392 = vmatpush1.bf16.msra.mxu0 0
    %393 = vmatprep.subr.bf16.mxu0 0
    %394 = vmatpush1.bf16.msra.mxu0 0
    %395 = vmatprep.subr.bf16.mxu0 0
    %396 = vmatpush1.bf16.msra.mxu0 0
    %397 = vmatprep.subr.bf16.mxu0 0
    %398 = vmatpush1.bf16.msra.mxu0 0
    %399 = vmatprep.subr.bf16.mxu0 0
    %400 = vmatpush1.bf16.msra.mxu0 0
    %401 = vmatprep.subr.bf16.mxu0 0
    %402 = vmatpush1.bf16.msra.mxu0 0
    %403 = vmatprep.subr.bf16.mxu0 0
    %404 = vmatpush1.bf16.msra.mxu0 0
    %405 = vmatprep.subr.bf16.mxu0 0
    %406 = vmatpush1.bf16.msra.mxu0 %v386
    %407 = vmatprep.subr.bf16.mxu0 0
    %408 = vmatpush2.bf16.msra.mxu0 0
    %409 = vmatprep.subr.bf16.mxu0 0
    %410 = vmatpush2.bf16.msra.mxu0 0
    %411 = vmatprep.subr.bf16.mxu0 0
    %412 = vmatpush2.bf16.msra.mxu0 0
    %413 = vmatprep.subr.bf16.mxu0 0
    %414 = vmatpush2.bf16.msra.mxu0 0
    %415 = vmatprep.subr.bf16.mxu0 0
    %416 = vmatpush2.bf16.msra.mxu0 0
    %417 = vmatprep.subr.bf16.mxu0 0
    %418 = vmatpush2.bf16.msra.mxu0 0
    %419 = vmatprep.subr.bf16.mxu0 0
    %420 = vmatpush2.bf16.msra.mxu0 0
    %421 = vmatprep.subr.bf16.mxu0 0
    %422 = vmatpush2.bf16.msra.mxu0 0
    %423 = vmatprep.mubr.bf16.mxu0 0
    %424 = vmatmul.mubr.bf16.gmra.mxu0 %v389
    %v425 = vpop.f32.mrf.mxu0
    %v426 = vadd.f32 0.0, %v425
    %v427 = vpop.f32.mrf.mxu0
    %v428 = vpop.f32.mrf.mxu0
    %v429 = vadd.f32 0.0, %v428
    %v430 = vpop.f32.mrf.mxu0
    %431 = vdwg.mxu0
    %432 = vrot.lane.b32.xlu0 %v229, 64
    %v433 = vpop.permute.xlu0 %432
    %v436 = vsel %vm81, %v384, 0
    %438 = vmatprep.subr.bf16.mxu0 0
    %439 = vmatpush1.bf16.msra.mxu0 0
    %440 = vmatprep.subr.bf16.mxu0 0
    %441 = vmatpush1.bf16.msra.mxu0 0
    %442 = vmatprep.subr.bf16.mxu0 0
    %443 = vmatpush1.bf16.msra.mxu0 0
    %444 = vmatprep.subr.bf16.mxu0 0
    %445 = vmatpush1.bf16.msra.mxu0 0
    %446 = vmatprep.subr.bf16.mxu0 0
    %447 = vmatpush1.bf16.msra.mxu0 0
    %448 = vmatprep.subr.bf16.mxu0 0
    %449 = vmatpush1.bf16.msra.mxu0 0
    %450 = vmatprep.subr.bf16.mxu0 0
    %451 = vmatpush1.bf16.msra.mxu0 0
    %452 = vmatprep.subr.bf16.mxu0 0
    %453 = vmatpush1.bf16.msra.mxu0 %v433
    %454 = vmatprep.subr.bf16.mxu0 0
    %455 = vmatpush2.bf16.msra.mxu0 0
    %456 = vmatprep.subr.bf16.mxu0 0
    %457 = vmatpush2.bf16.msra.mxu0 0
    %458 = vmatprep.subr.bf16.mxu0 0
    %459 = vmatpush2.bf16.msra.mxu0 0
    %460 = vmatprep.subr.bf16.mxu0 0
    %461 = vmatpush2.bf16.msra.mxu0 0
    %462 = vmatprep.subr.bf16.mxu0 0
    %463 = vmatpush2.bf16.msra.mxu0 0
    %464 = vmatprep.subr.bf16.mxu0 0
    %465 = vmatpush2.bf16.msra.mxu0 0
    %466 = vmatprep.subr.bf16.mxu0 0
    %467 = vmatpush2.bf16.msra.mxu0 0
    %468 = vmatprep.subr.bf16.mxu0 0
    %469 = vmatpush2.bf16.msra.mxu0 0
    %470 = vmatprep.mubr.bf16.mxu0 0
    %471 = vmatmul.mubr.bf16.gmra.mxu0 %v436
    %v472 = vpop.f32.mrf.mxu0
    %v473 = vadd.f32 0.0, %v472
    %v474 = vpop.f32.mrf.mxu0
    %v475 = vpop.f32.mrf.mxu0
    %v476 = vadd.f32 0.0, %v475
    %v477 = vpop.f32.mrf.mxu0
    %478 = vdwg.mxu0
    %v479 = vpack.c.bf16 %v429, %v426
    %v480 = vpack.c.bf16 %v476, %v473
    %481 = vrot.lane.b32.xlu0 %v228, 120
    %v482 = vpop.permute.xlu0 %481
    %483 = vrot.lane.b32.xlu0 %v228, 88
    %v484 = vpop.permute.xlu0 %483
    %v486 = vsel %vm233, %v482, 0
    %v489 = vsel %vm233, %v484, 0
    %491 = vmatprep.subr.bf16.mxu0 0
    %492 = vmatpush1.bf16.xpose.msra.mxu0 0
    %493 = vmatprep.subr.bf16.mxu0 0
    %494 = vmatpush1.bf16.xpose.msra.mxu0 0
    %495 = vmatprep.subr.bf16.mxu0 0
    %496 = vmatpush1.bf16.xpose.msra.mxu0 0
    %497 = vmatprep.subr.bf16.mxu0 0
    %498 = vmatpush1.bf16.xpose.msra.mxu0 0
    %499 = vmatprep.subr.bf16.mxu0 0
    %500 = vmatpush1.bf16.xpose.msra.mxu0 0
    %501 = vmatprep.subr.bf16.mxu0 0
    %502 = vmatpush1.bf16.xpose.msra.mxu0 0
    %503 = vmatprep.subr.bf16.mxu0 0
    %504 = vmatpush1.bf16.xpose.msra.mxu0 0
    %505 = vmatprep.subr.bf16.mxu0 0
    %506 = vmatpush1.bf16.xpose.msra.mxu0 %v489
    %507 = vmatprep.subr.bf16.mxu0 0
    %508 = vmatpush2.bf16.xpose.msra.mxu0 0
    %509 = vmatprep.subr.bf16.mxu0 0
    %510 = vmatpush2.bf16.xpose.msra.mxu0 0
    %511 = vmatprep.subr.bf16.mxu0 0
    %512 = vmatpush2.bf16.xpose.msra.mxu0 0
    %513 = vmatprep.subr.bf16.mxu0 0
    %514 = vmatpush2.bf16.xpose.msra.mxu0 0
    %515 = vmatprep.subr.bf16.mxu0 0
    %516 = vmatpush2.bf16.xpose.msra.mxu0 0
    %517 = vmatprep.subr.bf16.mxu0 0
    %518 = vmatpush2.bf16.xpose.msra.mxu0 0
    %519 = vmatprep.subr.bf16.mxu0 0
    %520 = vmatpush2.bf16.xpose.msra.mxu0 0
    %521 = vmatprep.subr.bf16.mxu0 0
    %522 = vmatpush2.bf16.xpose.msra.mxu0 0
    %523 = vmatprep.mubr.bf16.mxu0 0
    %524 = vmatmul.mubr.bf16.gmra.mxu0 %v486
    %v525 = vpop.f32.mrf.mxu0
    %v526 = vadd.f32 0.0, %v525
    %v527 = vpop.f32.mrf.mxu0
    %v528 = vpop.f32.mrf.mxu0
    %v529 = vadd.f32 0.0, %v528
    %v530 = vpop.f32.mrf.mxu0
    %531 = vdwg.mxu0
    %532 = vrot.lane.b32.xlu0 %v229, 120
    %v533 = vpop.permute.xlu0 %532
    %534 = vrot.lane.b32.xlu0 %v229, 88
    %v535 = vpop.permute.xlu0 %534
    %v537 = vsel %vm233, %v533, 0
    %v540 = vsel %vm233, %v535, 0
    %542 = vmatprep.subr.bf16.mxu0 0
    %543 = vmatpush1.bf16.xpose.msra.mxu0 0
    %544 = vmatprep.subr.bf16.mxu0 0
    %545 = vmatpush1.bf16.xpose.msra.mxu0 0
    %546 = vmatprep.subr.bf16.mxu0 0
    %547 = vmatpush1.bf16.xpose.msra.mxu0 0
    %548 = vmatprep.subr.bf16.mxu0 0
    %549 = vmatpush1.bf16.xpose.msra.mxu0 0
    %550 = vmatprep.subr.bf16.mxu0 0
    %551 = vmatpush1.bf16.xpose.msra.mxu0 0
    %552 = vmatprep.subr.bf16.mxu0 0
    %553 = vmatpush1.bf16.xpose.msra.mxu0 0
    %554 = vmatprep.subr.bf16.mxu0 0
    %555 = vmatpush1.bf16.xpose.msra.mxu0 0
    %556 = vmatprep.subr.bf16.mxu0 0
    %557 = vmatpush1.bf16.xpose.msra.mxu0 %v540
    %558 = vmatprep.subr.bf16.mxu0 0
    %559 = vmatpush2.bf16.xpose.msra.mxu0 0
    %560 = vmatprep.subr.bf16.mxu0 0
    %561 = vmatpush2.bf16.xpose.msra.mxu0 0
    %562 = vmatprep.subr.bf16.mxu0 0
    %563 = vmatpush2.bf16.xpose.msra.mxu0 0
    %564 = vmatprep.subr.bf16.mxu0 0
    %565 = vmatpush2.bf16.xpose.msra.mxu0 0
    %566 = vmatprep.subr.bf16.mxu0 0
    %567 = vmatpush2.bf16.xpose.msra.mxu0 0
    %568 = vmatprep.subr.bf16.mxu0 0
    %569 = vmatpush2.bf16.xpose.msra.mxu0 0
    %570 = vmatprep.subr.bf16.mxu0 0
    %571 = vmatpush2.bf16.xpose.msra.mxu0 0
    %572 = vmatprep.subr.bf16.mxu0 0
    %573 = vmatpush2.bf16.xpose.msra.mxu0 0
    %574 = vmatprep.mubr.bf16.mxu0 0
    %575 = vmatmul.mubr.bf16.gmra.mxu0 %v537
    %v576 = vpop.f32.mrf.mxu0
    %v577 = vadd.f32 0.0, %v576
    %v578 = vpop.f32.mrf.mxu0
    %v579 = vpop.f32.mrf.mxu0
    %v580 = vadd.f32 0.0, %v579
    %v581 = vpop.f32.mrf.mxu0
    %582 = vdwg.mxu0
    %v583 = vmul.f32 %v526, 0.35355338
    %v584 = vmul.f32 %v529, 0.35355338
    %v585 = vmul.f32 %v577, 0.35355338
    %v586 = vmul.f32 %v580, 0.35355338
    %v587 = vadd.f32 %v583, %v65
    %v588 = vadd.f32 %v584, %v66
    %v589 = vadd.f32 %v585, %v65
    %v590 = vadd.f32 %v586, %v66
    %v591 = vsel %vm81, %v587, -inf
    %592 = vmax.xlane.f32.xlu0 %v591
    %v593 = vpop.xlane.xlu0 %592
    %v594 = vsel %vm81, %v588, -inf
    %595 = vmax.xlane.f32.xlu0 %v594
    %v596 = vpop.xlane.xlu0 %595
    %v597 = vsel %vm81, %v589, -inf
    %598 = vmax.xlane.f32.xlu0 %v597
    %v599 = vpop.xlane.xlu0 %598
    %v600 = vsel %vm81, %v590, -inf
    %601 = vmax.xlane.f32.xlu0 %v600
    %v602 = vpop.xlane.xlu0 %601
    %v603 = vsub.f32 %v587, %v593
    %v604 = vsub.f32 %v588, %v596
    %v605 = vsub.f32 %v589, %v599
    %v606 = vsub.f32 %v590, %v602
    %v607 = vmul.f32 %v603, 1.442695
    %v608 = vpow.pop %v607
    %v609 = vmul.f32 %v604, 1.442695
    %v610 = vpow.pop %v609
    %v611 = vmul.f32 %v605, 1.442695
    %v612 = vpow.pop %v611
    %v613 = vmul.f32 %v606, 1.442695
    %v614 = vpow.pop %v613
    %v615 = vsel %vm81, %v608, 0.0
    %616 = vadd.xlane.f32.xlu0 %v615
    %v617 = vpop.xlane.xlu0 %616
    %v618 = vsel %vm81, %v610, 0.0
    %619 = vadd.xlane.f32.xlu0 %v618
    %v620 = vpop.xlane.xlu0 %619
    %v621 = vsel %vm81, %v612, 0.0
    %622 = vadd.xlane.f32.xlu0 %v621
    %v623 = vpop.xlane.xlu0 %622
    %v624 = vsel %vm81, %v614, 0.0
    %625 = vadd.xlane.f32.xlu0 %v624
    %v626 = vpop.xlane.xlu0 %625
    %v627 = vrcp.pop %v617
    %v628 = vrcp.pop %v620
    %v629 = vrcp.pop %v623
    %v630 = vrcp.pop %v626
    %v631 = vmul.f32 %v608, %v627
    %v632 = vmul.f32 %v610, %v628
    %v633 = vmul.f32 %v612, %v629
    %v634 = vmul.f32 %v614, %v630
    %v635 = vpack.c.bf16 %v632, %v631
    %v636 = vpack.c.bf16 %v634, %v633
    %637 = vrot.lane.b32.xlu0 %v228, 56
    %v638 = vpop.permute.xlu0 %637
    %v641 = vsel %vm81, %v635, 0
    %643 = vmatprep.subr.bf16.mxu0 0
    %644 = vmatpush1.bf16.msra.mxu0 0
    %645 = vmatprep.subr.bf16.mxu0 0
    %646 = vmatpush1.bf16.msra.mxu0 0
    %647 = vmatprep.subr.bf16.mxu0 0
    %648 = vmatpush1.bf16.msra.mxu0 0
    %649 = vmatprep.subr.bf16.mxu0 0
    %650 = vmatpush1.bf16.msra.mxu0 0
    %651 = vmatprep.subr.bf16.mxu0 0
    %652 = vmatpush1.bf16.msra.mxu0 0
    %653 = vmatprep.subr.bf16.mxu0 0
    %654 = vmatpush1.bf16.msra.mxu0 0
    %655 = vmatprep.subr.bf16.mxu0 0
    %656 = vmatpush1.bf16.msra.mxu0 0
    %657 = vmatprep.subr.bf16.mxu0 0
    %658 = vmatpush1.bf16.msra.mxu0 %v638
    %659 = vmatprep.subr.bf16.mxu0 0
    %660 = vmatpush2.bf16.msra.mxu0 0
    %661 = vmatprep.subr.bf16.mxu0 0
    %662 = vmatpush2.bf16.msra.mxu0 0
    %663 = vmatprep.subr.bf16.mxu0 0
    %664 = vmatpush2.bf16.msra.mxu0 0
    %665 = vmatprep.subr.bf16.mxu0 0
    %666 = vmatpush2.bf16.msra.mxu0 0
    %667 = vmatprep.subr.bf16.mxu0 0
    %668 = vmatpush2.bf16.msra.mxu0 0
    %669 = vmatprep.subr.bf16.mxu0 0
    %670 = vmatpush2.bf16.msra.mxu0 0
    %671 = vmatprep.subr.bf16.mxu0 0
    %672 = vmatpush2.bf16.msra.mxu0 0
    %673 = vmatprep.subr.bf16.mxu0 0
    %674 = vmatpush2.bf16.msra.mxu0 0
    %675 = vmatprep.mubr.bf16.mxu0 0
    %676 = vmatmul.mubr.bf16.gmra.mxu0 %v641
    %v677 = vpop.f32.mrf.mxu0
    %v678 = vadd.f32 0.0, %v677
    %v679 = vpop.f32.mrf.mxu0
    %v680 = vpop.f32.mrf.mxu0
    %v681 = vadd.f32 0.0, %v680
    %v682 = vpop.f32.mrf.mxu0
    %683 = vdwg.mxu0
    %684 = vrot.lane.b32.xlu0 %v229, 56
    %v685 = vpop.permute.xlu0 %684
    %v688 = vsel %vm81, %v636, 0
    %690 = vmatprep.subr.bf16.mxu0 0
    %691 = vmatpush1.bf16.msra.mxu0 0
    %692 = vmatprep.subr.bf16.mxu0 0
    %693 = vmatpush1.bf16.msra.mxu0 0
    %694 = vmatprep.subr.bf16.mxu0 0
    %695 = vmatpush1.bf16.msra.mxu0 0
    %696 = vmatprep.subr.bf16.mxu0 0
    %697 = vmatpush1.bf16.msra.mxu0 0
    %698 = vmatprep.subr.bf16.mxu0 0
    %699 = vmatpush1.bf16.msra.mxu0 0
    %700 = vmatprep.subr.bf16.mxu0 0
    %701 = vmatpush1.bf16.msra.mxu0 0
    %702 = vmatprep.subr.bf16.mxu0 0
    %703 = vmatpush1.bf16.msra.mxu0 0
    %704 = vmatprep.subr.bf16.mxu0 0
    %705 = vmatpush1.bf16.msra.mxu0 %v685
    %706 = vmatprep.subr.bf16.mxu0 0
    %707 = vmatpush2.bf16.msra.mxu0 0
    %708 = vmatprep.subr.bf16.mxu0 0
    %709 = vmatpush2.bf16.msra.mxu0 0
    %710 = vmatprep.subr.bf16.mxu0 0
    %711 = vmatpush2.bf16.msra.mxu0 0
    %712 = vmatprep.subr.bf16.mxu0 0
    %713 = vmatpush2.bf16.msra.mxu0 0
    %714 = vmatprep.subr.bf16.mxu0 0
    %715 = vmatpush2.bf16.msra.mxu0 0
    %716 = vmatprep.subr.bf16.mxu0 0
    %717 = vmatpush2.bf16.msra.mxu0 0
    %718 = vmatprep.subr.bf16.mxu0 0
    %719 = vmatpush2.bf16.msra.mxu0 0
    %720 = vmatprep.subr.bf16.mxu0 0
    %721 = vmatpush2.bf16.msra.mxu0 0
    %722 = vmatprep.mubr.bf16.mxu0 0
    %723 = vmatmul.mubr.bf16.gmra.mxu0 %v688
    %v724 = vpop.f32.mrf.mxu0
    %v725 = vadd.f32 0.0, %v724
    %v726 = vpop.f32.mrf.mxu0
    %v727 = vpop.f32.mrf.mxu0
    %v728 = vadd.f32 0.0, %v727
    %v729 = vpop.f32.mrf.mxu0
    %730 = vdwg.mxu0
    %v731 = vpack.c.bf16 %v681, %v678
    %v732 = vpack.c.bf16 %v728, %v725
    %v734 = vsel %vm233, %v731, 0
    %v737 = vsel %vm233, %v732, 0
    %vm739 = vcmask 1043456
    %v741 = vsel %vm739, %v225, 0
    %743 = vmatprep.subr.bf16.mxu0 0
    %744 = vmatpush1.bf16.msra.mxu0 0
    %745 = vmatprep.subr.bf16.mxu0 0
    %746 = vmatpush1.bf16.msra.mxu0 0
    %747 = vmatprep.subr.bf16.mxu0 0
    %748 = vmatpush1.bf16.msra.mxu0 0
    %749 = vmatprep.subr.bf16.mxu0 0
    %750 = vmatpush1.bf16.msra.mxu0 0
    %751 = vmatprep.subr.bf16.mxu0 0
    %752 = vmatpush1.bf16.msra.mxu0 0
    %753 = vmatprep.subr.bf16.mxu0 0
    %754 = vmatpush1.bf16.msra.mxu0 0
    %755 = vmatprep.subr.bf16.mxu0 0
    %756 = vmatpush1.bf16.msra.mxu0 0
    %757 = vmatprep.subr.bf16.mxu0 0
    %758 = vmatpush1.bf16.msra.mxu0 %v741
    %759 = vmatprep.subr.bf16.mxu0 0
    %760 = vmatpush2.bf16.msra.mxu0 0
    %761 = vmatprep.subr.bf16.mxu0 0
    %762 = vmatpush2.bf16.msra.mxu0 0
    %763 = vmatprep.subr.bf16.mxu0 0
    %764 = vmatpush2.bf16.msra.mxu0 0
    %765 = vmatprep.subr.bf16.mxu0 0
    %766 = vmatpush2.bf16.msra.mxu0 0
    %767 = vmatprep.subr.bf16.mxu0 0
    %768 = vmatpush2.bf16.msra.mxu0 0
    %769 = vmatprep.subr.bf16.mxu0 0
    %770 = vmatpush2.bf16.msra.mxu0 0
    %771 = vmatprep.subr.bf16.mxu0 0
    %772 = vmatpush2.bf16.msra.mxu0 0
    %773 = vmatprep.subr.bf16.mxu0 0
    %774 = vmatpush2.bf16.msra.mxu0 0
    %775 = vmatprep.mubr.bf16.mxu0 0
    %776 = vmatmul.mubr.bf16.gmra.mxu0 %v734
    %v777 = vpop.f32.mrf.mxu0
    %v778 = vadd.f32 0.0, %v777
    %v779 = vpop.f32.mrf.mxu0
    %v780 = vpop.f32.mrf.mxu0
    %v781 = vadd.f32 0.0, %v780
    %v782 = vpop.f32.mrf.mxu0
    %783 = vmatprep.mubr.bf16.mxu0 0
    %784 = vmatmul.mubr.bf16.gmra.mxu0 %v737
    %v785 = vpop.f32.mrf.mxu0
    %v786 = vadd.f32 0.0, %v785
    %v787 = vpop.f32.mrf.mxu0
    %v788 = vpop.f32.mrf.mxu0
    %v789 = vadd.f32 0.0, %v788
    %v790 = vpop.f32.mrf.mxu0
    %791 = vdwg.mxu0
    %v793 = vsel %vm233, %v479, 0
    %v796 = vsel %vm233, %v480, 0
    %v799 = vsel %vm739, %v224, 0
    %801 = vmatprep.subr.bf16.mxu0 0
    %802 = vmatpush1.bf16.msra.mxu0 0
    %803 = vmatprep.subr.bf16.mxu0 0
    %804 = vmatpush1.bf16.msra.mxu0 0
    %805 = vmatprep.subr.bf16.mxu0 0
    %806 = vmatpush1.bf16.msra.mxu0 0
    %807 = vmatprep.subr.bf16.mxu0 0
    %808 = vmatpush1.bf16.msra.mxu0 0
    %809 = vmatprep.subr.bf16.mxu0 0
    %810 = vmatpush1.bf16.msra.mxu0 0
    %811 = vmatprep.subr.bf16.mxu0 0
    %812 = vmatpush1.bf16.msra.mxu0 0
    %813 = vmatprep.subr.bf16.mxu0 0
    %814 = vmatpush1.bf16.msra.mxu0 0
    %815 = vmatprep.subr.bf16.mxu0 0
    %816 = vmatpush1.bf16.msra.mxu0 %v799
    %817 = vmatprep.subr.bf16.mxu0 0
    %818 = vmatpush2.bf16.msra.mxu0 0
    %819 = vmatprep.subr.bf16.mxu0 0
    %820 = vmatpush2.bf16.msra.mxu0 0
    %821 = vmatprep.subr.bf16.mxu0 0
    %822 = vmatpush2.bf16.msra.mxu0 0
    %823 = vmatprep.subr.bf16.mxu0 0
    %824 = vmatpush2.bf16.msra.mxu0 0
    %825 = vmatprep.subr.bf16.mxu0 0
    %826 = vmatpush2.bf16.msra.mxu0 0
    %827 = vmatprep.subr.bf16.mxu0 0
    %828 = vmatpush2.bf16.msra.mxu0 0
    %829 = vmatprep.subr.bf16.mxu0 0
    %830 = vmatpush2.bf16.msra.mxu0 0
    %831 = vmatprep.subr.bf16.mxu0 0
    %832 = vmatpush2.bf16.msra.mxu0 0
    %833 = vmatprep.mubr.bf16.mxu0 0
    %834 = vmatmul.mubr.bf16.gmra.mxu0 %v793
    %v835 = vpop.f32.mrf.mxu0
    %v836 = vadd.f32 %v778, %v835
    %v837 = vpop.f32.mrf.mxu0
    %v838 = vpop.f32.mrf.mxu0
    %v839 = vadd.f32 %v781, %v838
    %v840 = vpop.f32.mrf.mxu0
    %841 = vmatprep.mubr.bf16.mxu0 0
    %842 = vmatmul.mubr.bf16.gmra.mxu0 %v796
    %v843 = vpop.f32.mrf.mxu0
    %v844 = vadd.f32 %v786, %v843
    %v845 = vpop.f32.mrf.mxu0
    %v846 = vpop.f32.mrf.mxu0
    %v847 = vadd.f32 %v789, %v846
    %v848 = vpop.f32.mrf.mxu0
    %849 = vdwg.mxu0
    %850 = vrot.lane.b32.xlu0 %v228, 112
    %v851 = vpop.permute.xlu0 %850
    %852 = vrot.lane.b32.xlu0 %v228, 80
    %v853 = vpop.permute.xlu0 %852
    %v855 = vsel %vm233, %v851, 0
    %v858 = vsel %vm233, %v853, 0
    %860 = vmatprep.subr.bf16.mxu0 0
    %861 = vmatpush1.bf16.xpose.msra.mxu0 0
    %862 = vmatprep.subr.bf16.mxu0 0
    %863 = vmatpush1.bf16.xpose.msra.mxu0 0
    %864 = vmatprep.subr.bf16.mxu0 0
    %865 = vmatpush1.bf16.xpose.msra.mxu0 0
    %866 = vmatprep.subr.bf16.mxu0 0
    %867 = vmatpush1.bf16.xpose.msra.mxu0 0
    %868 = vmatprep.subr.bf16.mxu0 0
    %869 = vmatpush1.bf16.xpose.msra.mxu0 0
    %870 = vmatprep.subr.bf16.mxu0 0
    %871 = vmatpush1.bf16.xpose.msra.mxu0 0
    %872 = vmatprep.subr.bf16.mxu0 0
    %873 = vmatpush1.bf16.xpose.msra.mxu0 0
    %874 = vmatprep.subr.bf16.mxu0 0
    %875 = vmatpush1.bf16.xpose.msra.mxu0 %v858
    %876 = vmatprep.subr.bf16.mxu0 0
    %877 = vmatpush2.bf16.xpose.msra.mxu0 0
    %878 = vmatprep.subr.bf16.mxu0 0
    %879 = vmatpush2.bf16.xpose.msra.mxu0 0
    %880 = vmatprep.subr.bf16.mxu0 0
    %881 = vmatpush2.bf16.xpose.msra.mxu0 0
    %882 = vmatprep.subr.bf16.mxu0 0
    %883 = vmatpush2.bf16.xpose.msra.mxu0 0
    %884 = vmatprep.subr.bf16.mxu0 0
    %885 = vmatpush2.bf16.xpose.msra.mxu0 0
    %886 = vmatprep.subr.bf16.mxu0 0
    %887 = vmatpush2.bf16.xpose.msra.mxu0 0
    %888 = vmatprep.subr.bf16.mxu0 0
    %889 = vmatpush2.bf16.xpose.msra.mxu0 0
    %890 = vmatprep.subr.bf16.mxu0 0
    %891 = vmatpush2.bf16.xpose.msra.mxu0 0
    %892 = vmatprep.mubr.bf16.mxu0 0
    %893 = vmatmul.mubr.bf16.gmra.mxu0 %v855
    %v894 = vpop.f32.mrf.mxu0
    %v895 = vadd.f32 0.0, %v894
    %v896 = vpop.f32.mrf.mxu0
    %v897 = vpop.f32.mrf.mxu0
    %v898 = vadd.f32 0.0, %v897
    %v899 = vpop.f32.mrf.mxu0
    %900 = vdwg.mxu0
    %901 = vrot.lane.b32.xlu0 %v229, 112
    %v902 = vpop.permute.xlu0 %901
    %903 = vrot.lane.b32.xlu0 %v229, 80
    %v904 = vpop.permute.xlu0 %903
    %v906 = vsel %vm233, %v902, 0
    %v909 = vsel %vm233, %v904, 0
    %911 = vmatprep.subr.bf16.mxu0 0
    %912 = vmatpush1.bf16.xpose.msra.mxu0 0
    %913 = vmatprep.subr.bf16.mxu0 0
    %914 = vmatpush1.bf16.xpose.msra.mxu0 0
    %915 = vmatprep.subr.bf16.mxu0 0
    %916 = vmatpush1.bf16.xpose.msra.mxu0 0
    %917 = vmatprep.subr.bf16.mxu0 0
    %918 = vmatpush1.bf16.xpose.msra.mxu0 0
    %919 = vmatprep.subr.bf16.mxu0 0
    %920 = vmatpush1.bf16.xpose.msra.mxu0 0
    %921 = vmatprep.subr.bf16.mxu0 0
    %922 = vmatpush1.bf16.xpose.msra.mxu0 0
    %923 = vmatprep.subr.bf16.mxu0 0
    %924 = vmatpush1.bf16.xpose.msra.mxu0 0
    %925 = vmatprep.subr.bf16.mxu0 0
    %926 = vmatpush1.bf16.xpose.msra.mxu0 %v909
    %927 = vmatprep.subr.bf16.mxu0 0
    %928 = vmatpush2.bf16.xpose.msra.mxu0 0
    %929 = vmatprep.subr.bf16.mxu0 0
    %930 = vmatpush2.bf16.xpose.msra.mxu0 0
    %931 = vmatprep.subr.bf16.mxu0 0
    %932 = vmatpush2.bf16.xpose.msra.mxu0 0
    %933 = vmatprep.subr.bf16.mxu0 0
    %934 = vmatpush2.bf16.xpose.msra.mxu0 0
    %935 = vmatprep.subr.bf16.mxu0 0
    %936 = vmatpush2.bf16.xpose.msra.mxu0 0
    %937 = vmatprep.subr.bf16.mxu0 0
    %938 = vmatpush2.bf16.xpose.msra.mxu0 0
    %939 = vmatprep.subr.bf16.mxu0 0
    %940 = vmatpush2.bf16.xpose.msra.mxu0 0
    %941 = vmatprep.subr.bf16.mxu0 0
    %942 = vmatpush2.bf16.xpose.msra.mxu0 0
    %943 = vmatprep.mubr.bf16.mxu0 0
    %944 = vmatmul.mubr.bf16.gmra.mxu0 %v906
    %v945 = vpop.f32.mrf.mxu0
    %v946 = vadd.f32 0.0, %v945
    %v947 = vpop.f32.mrf.mxu0
    %v948 = vpop.f32.mrf.mxu0
    %v949 = vadd.f32 0.0, %v948
    %v950 = vpop.f32.mrf.mxu0
    %951 = vdwg.mxu0
    %v952 = vmul.f32 %v895, 0.35355338
    %v953 = vmul.f32 %v898, 0.35355338
    %v954 = vmul.f32 %v946, 0.35355338
    %v955 = vmul.f32 %v949, 0.35355338
    %v956 = vadd.f32 %v952, %v65
    %v957 = vadd.f32 %v953, %v66
    %v958 = vadd.f32 %v954, %v65
    %v959 = vadd.f32 %v955, %v66
    %v960 = vsel %vm81, %v956, -inf
    %961 = vmax.xlane.f32.xlu0 %v960
    %v962 = vpop.xlane.xlu0 %961
    %v963 = vsel %vm81, %v957, -inf
    %964 = vmax.xlane.f32.xlu0 %v963
    %v965 = vpop.xlane.xlu0 %964
    %v966 = vsel %vm81, %v958, -inf
    %967 = vmax.xlane.f32.xlu0 %v966
    %v968 = vpop.xlane.xlu0 %967
    %v969 = vsel %vm81, %v959, -inf
    %970 = vmax.xlane.f32.xlu0 %v969
    %v971 = vpop.xlane.xlu0 %970
    %v972 = vsub.f32 %v956, %v962
    %v973 = vsub.f32 %v957, %v965
    %v974 = vsub.f32 %v958, %v968
    %v975 = vsub.f32 %v959, %v971
    %v976 = vmul.f32 %v972, 1.442695
    %v977 = vpow.pop %v976
    %v978 = vmul.f32 %v973, 1.442695
    %v979 = vpow.pop %v978
    %v980 = vmul.f32 %v974, 1.442695
    %v981 = vpow.pop %v980
    %v982 = vmul.f32 %v975, 1.442695
    %v983 = vpow.pop %v982
    %v984 = vsel %vm81, %v977, 0.0
    %985 = vadd.xlane.f32.xlu0 %v984
    %v986 = vpop.xlane.xlu0 %985
    %v987 = vsel %vm81, %v979, 0.0
    %988 = vadd.xlane.f32.xlu0 %v987
    %v989 = vpop.xlane.xlu0 %988
    %v990 = vsel %vm81, %v981, 0.0
    %991 = vadd.xlane.f32.xlu0 %v990
    %v992 = vpop.xlane.xlu0 %991
    %v993 = vsel %vm81, %v983, 0.0
    %994 = vadd.xlane.f32.xlu0 %v993
    %v995 = vpop.xlane.xlu0 %994
    %v996 = vrcp.pop %v986
    %v997 = vrcp.pop %v989
    %v998 = vrcp.pop %v992
    %v999 = vrcp.pop %v995
    %v1000 = vmul.f32 %v977, %v996
    %v1001 = vmul.f32 %v979, %v997
    %v1002 = vmul.f32 %v981, %v998
    %v1003 = vmul.f32 %v983, %v999
    %v1004 = vpack.c.bf16 %v1001, %v1000
    %v1005 = vpack.c.bf16 %v1003, %v1002
    %1006 = vrot.lane.b32.xlu0 %v228, 48
    %v1007 = vpop.permute.xlu0 %1006
    %v1010 = vsel %vm81, %v1004, 0
    %1012 = vmatprep.subr.bf16.mxu0 0
    %1013 = vmatpush1.bf16.msra.mxu0 0
    %1014 = vmatprep.subr.bf16.mxu0 0
    %1015 = vmatpush1.bf16.msra.mxu0 0
    %1016 = vmatprep.subr.bf16.mxu0 0
    %1017 = vmatpush1.bf16.msra.mxu0 0
    %1018 = vmatprep.subr.bf16.mxu0 0
    %1019 = vmatpush1.bf16.msra.mxu0 0
    %1020 = vmatprep.subr.bf16.mxu0 0
    %1021 = vmatpush1.bf16.msra.mxu0 0
    %1022 = vmatprep.subr.bf16.mxu0 0
    %1023 = vmatpush1.bf16.msra.mxu0 0
    %1024 = vmatprep.subr.bf16.mxu0 0
    %1025 = vmatpush1.bf16.msra.mxu0 0
    %1026 = vmatprep.subr.bf16.mxu0 0
    %1027 = vmatpush1.bf16.msra.mxu0 %v1007
    %1028 = vmatprep.subr.bf16.mxu0 0
    %1029 = vmatpush2.bf16.msra.mxu0 0
    %1030 = vmatprep.subr.bf16.mxu0 0
    %1031 = vmatpush2.bf16.msra.mxu0 0
    %1032 = vmatprep.subr.bf16.mxu0 0
    %1033 = vmatpush2.bf16.msra.mxu0 0
    %1034 = vmatprep.subr.bf16.mxu0 0
    %1035 = vmatpush2.bf16.msra.mxu0 0
    %1036 = vmatprep.subr.bf16.mxu0 0
    %1037 = vmatpush2.bf16.msra.mxu0 0
    %1038 = vmatprep.subr.bf16.mxu0 0
    %1039 = vmatpush2.bf16.msra.mxu0 0
    %1040 = vmatprep.subr.bf16.mxu0 0
    %1041 = vmatpush2.bf16.msra.mxu0 0
    %1042 = vmatprep.subr.bf16.mxu0 0
    %1043 = vmatpush2.bf16.msra.mxu0 0
    %1044 = vmatprep.mubr.bf16.mxu0 0
    %1045 = vmatmul.mubr.bf16.gmra.mxu0 %v1010
    %v1046 = vpop.f32.mrf.mxu0
    %v1047 = vadd.f32 0.0, %v1046
    %v1048 = vpop.f32.mrf.mxu0
    %v1049 = vpop.f32.mrf.mxu0
    %v1050 = vadd.f32 0.0, %v1049
    %v1051 = vpop.f32.mrf.mxu0
    %1052 = vdwg.mxu0
    %1053 = vrot.lane.b32.xlu0 %v229, 48
    %v1054 = vpop.permute.xlu0 %1053
    %v1057 = vsel %vm81, %v1005, 0
    %1059 = vmatprep.subr.bf16.mxu0 0
    %1060 = vmatpush1.bf16.msra.mxu0 0
    %1061 = vmatprep.subr.bf16.mxu0 0
    %1062 = vmatpush1.bf16.msra.mxu0 0
    %1063 = vmatprep.subr.bf16.mxu0 0
    %1064 = vmatpush1.bf16.msra.mxu0 0
    %1065 = vmatprep.subr.bf16.mxu0 0
    %1066 = vmatpush1.bf16.msra.mxu0 0
    %1067 = vmatprep.subr.bf16.mxu0 0
    %1068 = vmatpush1.bf16.msra.mxu0 0
    %1069 = vmatprep.subr.bf16.mxu0 0
    %1070 = vmatpush1.bf16.msra.mxu0 0
    %1071 = vmatprep.subr.bf16.mxu0 0
    %1072 = vmatpush1.bf16.msra.mxu0 0
    %1073 = vmatprep.subr.bf16.mxu0 0
    %1074 = vmatpush1.bf16.msra.mxu0 %v1054
    %1075 = vmatprep.subr.bf16.mxu0 0
    %1076 = vmatpush2.bf16.msra.mxu0 0
    %1077 = vmatprep.subr.bf16.mxu0 0
    %1078 = vmatpush2.bf16.msra.mxu0 0
    %1079 = vmatprep.subr.bf16.mxu0 0
    %1080 = vmatpush2.bf16.msra.mxu0 0
    %1081 = vmatprep.subr.bf16.mxu0 0
    %1082 = vmatpush2.bf16.msra.mxu0 0
    %1083 = vmatprep.subr.bf16.mxu0 0
    %1084 = vmatpush2.bf16.msra.mxu0 0
    %1085 = vmatprep.subr.bf16.mxu0 0
    %1086 = vmatpush2.bf16.msra.mxu0 0
    %1087 = vmatprep.subr.bf16.mxu0 0
    %1088 = vmatpush2.bf16.msra.mxu0 0
    %1089 = vmatprep.subr.bf16.mxu0 0
    %1090 = vmatpush2.bf16.msra.mxu0 0
    %1091 = vmatprep.mubr.bf16.mxu0 0
    %1092 = vmatmul.mubr.bf16.gmra.mxu0 %v1057
    %v1093 = vpop.f32.mrf.mxu0
    %v1094 = vadd.f32 0.0, %v1093
    %v1095 = vpop.f32.mrf.mxu0
    %v1096 = vpop.f32.mrf.mxu0
    %v1097 = vadd.f32 0.0, %v1096
    %v1098 = vpop.f32.mrf.mxu0
    %1099 = vdwg.mxu0
    %v1100 = vpack.c.bf16 %v1050, %v1047
    %v1101 = vpack.c.bf16 %v1097, %v1094
    %v1103 = vsel %vm233, %v1100, 0
    %v1106 = vsel %vm233, %v1101, 0
    %v1109 = vsel %vm739, %v226, 0
    %1111 = vmatprep.subr.bf16.mxu0 0
    %1112 = vmatpush1.bf16.msra.mxu0 0
    %1113 = vmatprep.subr.bf16.mxu0 0
    %1114 = vmatpush1.bf16.msra.mxu0 0
    %1115 = vmatprep.subr.bf16.mxu0 0
    %1116 = vmatpush1.bf16.msra.mxu0 0
    %1117 = vmatprep.subr.bf16.mxu0 0
    %1118 = vmatpush1.bf16.msra.mxu0 0
    %1119 = vmatprep.subr.bf16.mxu0 0
    %1120 = vmatpush1.bf16.msra.mxu0 0
    %1121 = vmatprep.subr.bf16.mxu0 0
    %1122 = vmatpush1.bf16.msra.mxu0 0
    %1123 = vmatprep.subr.bf16.mxu0 0
    %1124 = vmatpush1.bf16.msra.mxu0 0
    %1125 = vmatprep.subr.bf16.mxu0 0
    %1126 = vmatpush1.bf16.msra.mxu0 %v1109
    %1127 = vmatprep.subr.bf16.mxu0 0
    %1128 = vmatpush2.bf16.msra.mxu0 0
    %1129 = vmatprep.subr.bf16.mxu0 0
    %1130 = vmatpush2.bf16.msra.mxu0 0
    %1131 = vmatprep.subr.bf16.mxu0 0
    %1132 = vmatpush2.bf16.msra.mxu0 0
    %1133 = vmatprep.subr.bf16.mxu0 0
    %1134 = vmatpush2.bf16.msra.mxu0 0
    %1135 = vmatprep.subr.bf16.mxu0 0
    %1136 = vmatpush2.bf16.msra.mxu0 0
    %1137 = vmatprep.subr.bf16.mxu0 0
    %1138 = vmatpush2.bf16.msra.mxu0 0
    %1139 = vmatprep.subr.bf16.mxu0 0
    %1140 = vmatpush2.bf16.msra.mxu0 0
    %1141 = vmatprep.subr.bf16.mxu0 0
    %1142 = vmatpush2.bf16.msra.mxu0 0
    %1143 = vmatprep.mubr.bf16.mxu0 0
    %1144 = vmatmul.mubr.bf16.gmra.mxu0 %v1103
    %v1145 = vpop.f32.mrf.mxu0
    %v1146 = vadd.f32 0.0, %v1145
    %v1147 = vpop.f32.mrf.mxu0
    %v1148 = vpop.f32.mrf.mxu0
    %v1149 = vadd.f32 0.0, %v1148
    %v1150 = vpop.f32.mrf.mxu0
    %1151 = vmatprep.mubr.bf16.mxu0 0
    %1152 = vmatmul.mubr.bf16.gmra.mxu0 %v1106
    %v1153 = vpop.f32.mrf.mxu0
    %v1154 = vadd.f32 0.0, %v1153
    %v1155 = vpop.f32.mrf.mxu0
    %v1156 = vpop.f32.mrf.mxu0
    %v1157 = vadd.f32 0.0, %v1156
    %v1158 = vpop.f32.mrf.mxu0
    %1159 = vdwg.mxu0
    %v1160 = vadd.f32 %v836, %v1146
    %v1161 = vadd.f32 %v839, %v1149
    %v1162 = vadd.f32 %v844, %v1154
    %v1163 = vadd.f32 %v847, %v1157
    %1164 = vrot.lane.b32.xlu0 %v228, 104
    %v1165 = vpop.permute.xlu0 %1164
    %1166 = vrot.lane.b32.xlu0 %v228, 72
    %v1167 = vpop.permute.xlu0 %1166
    %v1169 = vsel %vm233, %v1165, 0
    %v1172 = vsel %vm233, %v1167, 0
    %1174 = vmatprep.subr.bf16.mxu0 0
    %1175 = vmatpush1.bf16.xpose.msra.mxu0 0
    %1176 = vmatprep.subr.bf16.mxu0 0
    %1177 = vmatpush1.bf16.xpose.msra.mxu0 0
    %1178 = vmatprep.subr.bf16.mxu0 0
    %1179 = vmatpush1.bf16.xpose.msra.mxu0 0
    %1180 = vmatprep.subr.bf16.mxu0 0
    %1181 = vmatpush1.bf16.xpose.msra.mxu0 0
    %1182 = vmatprep.subr.bf16.mxu0 0
    %1183 = vmatpush1.bf16.xpose.msra.mxu0 0
    %1184 = vmatprep.subr.bf16.mxu0 0
    %1185 = vmatpush1.bf16.xpose.msra.mxu0 0
    %1186 = vmatprep.subr.bf16.mxu0 0
    %1187 = vmatpush1.bf16.xpose.msra.mxu0 0
    %1188 = vmatprep.subr.bf16.mxu0 0
    %1189 = vmatpush1.bf16.xpose.msra.mxu0 %v1172
    %1190 = vmatprep.subr.bf16.mxu0 0
    %1191 = vmatpush2.bf16.xpose.msra.mxu0 0
    %1192 = vmatprep.subr.bf16.mxu0 0
    %1193 = vmatpush2.bf16.xpose.msra.mxu0 0
    %1194 = vmatprep.subr.bf16.mxu0 0
    %1195 = vmatpush2.bf16.xpose.msra.mxu0 0
    %1196 = vmatprep.subr.bf16.mxu0 0
    %1197 = vmatpush2.bf16.xpose.msra.mxu0 0
    %1198 = vmatprep.subr.bf16.mxu0 0
    %1199 = vmatpush2.bf16.xpose.msra.mxu0 0
    %1200 = vmatprep.subr.bf16.mxu0 0
    %1201 = vmatpush2.bf16.xpose.msra.mxu0 0
    %1202 = vmatprep.subr.bf16.mxu0 0
    %1203 = vmatpush2.bf16.xpose.msra.mxu0 0
    %1204 = vmatprep.subr.bf16.mxu0 0
    %1205 = vmatpush2.bf16.xpose.msra.mxu0 0
    %1206 = vmatprep.mubr.bf16.mxu0 0
    %1207 = vmatmul.mubr.bf16.gmra.mxu0 %v1169
    %v1208 = vpop.f32.mrf.mxu0
    %v1209 = vadd.f32 0.0, %v1208
    %v1210 = vpop.f32.mrf.mxu0
    %v1211 = vpop.f32.mrf.mxu0
    %v1212 = vadd.f32 0.0, %v1211
    %v1213 = vpop.f32.mrf.mxu0
    %1214 = vdwg.mxu0
    %1215 = vrot.lane.b32.xlu0 %v229, 104
    %v1216 = vpop.permute.xlu0 %1215
    %1217 = vrot.lane.b32.xlu0 %v229, 72
    %v1218 = vpop.permute.xlu0 %1217
    %v1220 = vsel %vm233, %v1216, 0
    %v1223 = vsel %vm233, %v1218, 0
    %1225 = vmatprep.subr.bf16.mxu0 0
    %1226 = vmatpush1.bf16.xpose.msra.mxu0 0
    %1227 = vmatprep.subr.bf16.mxu0 0
    %1228 = vmatpush1.bf16.xpose.msra.mxu0 0
    %1229 = vmatprep.subr.bf16.mxu0 0
    %1230 = vmatpush1.bf16.xpose.msra.mxu0 0
    %1231 = vmatprep.subr.bf16.mxu0 0
    %1232 = vmatpush1.bf16.xpose.msra.mxu0 0
    %1233 = vmatprep.subr.bf16.mxu0 0
    %1234 = vmatpush1.bf16.xpose.msra.mxu0 0
    %1235 = vmatprep.subr.bf16.mxu0 0
    %1236 = vmatpush1.bf16.xpose.msra.mxu0 0
    %1237 = vmatprep.subr.bf16.mxu0 0
    %1238 = vmatpush1.bf16.xpose.msra.mxu0 0
    %1239 = vmatprep.subr.bf16.mxu0 0
    %1240 = vmatpush1.bf16.xpose.msra.mxu0 %v1223
    %1241 = vmatprep.subr.bf16.mxu0 0
    %1242 = vmatpush2.bf16.xpose.msra.mxu0 0
    %1243 = vmatprep.subr.bf16.mxu0 0
    %1244 = vmatpush2.bf16.xpose.msra.mxu0 0
    %1245 = vmatprep.subr.bf16.mxu0 0
    %1246 = vmatpush2.bf16.xpose.msra.mxu0 0
    %1247 = vmatprep.subr.bf16.mxu0 0
    %1248 = vmatpush2.bf16.xpose.msra.mxu0 0
    %1249 = vmatprep.subr.bf16.mxu0 0
    %1250 = vmatpush2.bf16.xpose.msra.mxu0 0
    %1251 = vmatprep.subr.bf16.mxu0 0
    %1252 = vmatpush2.bf16.xpose.msra.mxu0 0
    %1253 = vmatprep.subr.bf16.mxu0 0
    %1254 = vmatpush2.bf16.xpose.msra.mxu0 0
    %1255 = vmatprep.subr.bf16.mxu0 0
    %1256 = vmatpush2.bf16.xpose.msra.mxu0 0
    %1257 = vmatprep.mubr.bf16.mxu0 0
    %1258 = vmatmul.mubr.bf16.gmra.mxu0 %v1220
    %v1259 = vpop.f32.mrf.mxu0
    %v1260 = vadd.f32 0.0, %v1259
    %v1261 = vpop.f32.mrf.mxu0
    %v1262 = vpop.f32.mrf.mxu0
    %v1263 = vadd.f32 0.0, %v1262
    %v1264 = vpop.f32.mrf.mxu0
    %1265 = vdwg.mxu0
    %v1266 = vmul.f32 %v1209, 0.35355338
    %v1267 = vmul.f32 %v1212, 0.35355338
    %v1268 = vmul.f32 %v1260, 0.35355338
    %v1269 = vmul.f32 %v1263, 0.35355338
    %v1270 = vadd.f32 %v1266, %v65
    %v1271 = vadd.f32 %v1267, %v66
    %v1272 = vadd.f32 %v1268, %v65
    %v1273 = vadd.f32 %v1269, %v66
    %v1274 = vsel %vm81, %v1270, -inf
    %1275 = vmax.xlane.f32.xlu0 %v1274
    %v1276 = vpop.xlane.xlu0 %1275
    %v1277 = vsel %vm81, %v1271, -inf
    %1278 = vmax.xlane.f32.xlu0 %v1277
    %v1279 = vpop.xlane.xlu0 %1278
    %v1280 = vsel %vm81, %v1272, -inf
    %1281 = vmax.xlane.f32.xlu0 %v1280
    %v1282 = vpop.xlane.xlu0 %1281
    %v1283 = vsel %vm81, %v1273, -inf
    %1284 = vmax.xlane.f32.xlu0 %v1283
    %v1285 = vpop.xlane.xlu0 %1284
    %v1286 = vsub.f32 %v1270, %v1276
    %v1287 = vsub.f32 %v1271, %v1279
    %v1288 = vsub.f32 %v1272, %v1282
    %v1289 = vsub.f32 %v1273, %v1285
    %v1290 = vmul.f32 %v1286, 1.442695
    %v1291 = vpow.pop %v1290
    %v1292 = vmul.f32 %v1287, 1.442695
    %v1293 = vpow.pop %v1292
    %v1294 = vmul.f32 %v1288, 1.442695
    %v1295 = vpow.pop %v1294
    %v1296 = vmul.f32 %v1289, 1.442695
    %v1297 = vpow.pop %v1296
    %v1298 = vsel %vm81, %v1291, 0.0
    %1299 = vadd.xlane.f32.xlu0 %v1298
    %v1300 = vpop.xlane.xlu0 %1299
    %v1301 = vsel %vm81, %v1293, 0.0
    %1302 = vadd.xlane.f32.xlu0 %v1301
    %v1303 = vpop.xlane.xlu0 %1302
    %v1304 = vsel %vm81, %v1295, 0.0
    %1305 = vadd.xlane.f32.xlu0 %v1304
    %v1306 = vpop.xlane.xlu0 %1305
    %v1307 = vsel %vm81, %v1297, 0.0
    %1308 = vadd.xlane.f32.xlu0 %v1307
    %v1309 = vpop.xlane.xlu0 %1308
    %v1310 = vrcp.pop %v1300
    %v1311 = vrcp.pop %v1303
    %v1312 = vrcp.pop %v1306
    %v1313 = vrcp.pop %v1309
    %v1314 = vmul.f32 %v1291, %v1310
    %v1315 = vmul.f32 %v1293, %v1311
    %v1316 = vmul.f32 %v1295, %v1312
    %v1317 = vmul.f32 %v1297, %v1313
    %v1318 = vpack.c.bf16 %v1315, %v1314
    %v1319 = vpack.c.bf16 %v1317, %v1316
    %1320 = vrot.lane.b32.xlu0 %v228, 40
    %v1321 = vpop.permute.xlu0 %1320
    %v1324 = vsel %vm81, %v1318, 0
    %1326 = vmatprep.subr.bf16.mxu0 0
    %1327 = vmatpush1.bf16.msra.mxu0 0
    %1328 = vmatprep.subr.bf16.mxu0 0
    %1329 = vmatpush1.bf16.msra.mxu0 0
    %1330 = vmatprep.subr.bf16.mxu0 0
    %1331 = vmatpush1.bf16.msra.mxu0 0
    %1332 = vmatprep.subr.bf16.mxu0 0
    %1333 = vmatpush1.bf16.msra.mxu0 0
    %1334 = vmatprep.subr.bf16.mxu0 0
    %1335 = vmatpush1.bf16.msra.mxu0 0
    %1336 = vmatprep.subr.bf16.mxu0 0
    %1337 = vmatpush1.bf16.msra.mxu0 0
    %1338 = vmatprep.subr.bf16.mxu0 0
    %1339 = vmatpush1.bf16.msra.mxu0 0
    %1340 = vmatprep.subr.bf16.mxu0 0
    %1341 = vmatpush1.bf16.msra.mxu0 %v1321
    %1342 = vmatprep.subr.bf16.mxu0 0
    %1343 = vmatpush2.bf16.msra.mxu0 0
    %1344 = vmatprep.subr.bf16.mxu0 0
    %1345 = vmatpush2.bf16.msra.mxu0 0
    %1346 = vmatprep.subr.bf16.mxu0 0
    %1347 = vmatpush2.bf16.msra.mxu0 0
    %1348 = vmatprep.subr.bf16.mxu0 0
    %1349 = vmatpush2.bf16.msra.mxu0 0
    %1350 = vmatprep.subr.bf16.mxu0 0
    %1351 = vmatpush2.bf16.msra.mxu0 0
    %1352 = vmatprep.subr.bf16.mxu0 0
    %1353 = vmatpush2.bf16.msra.mxu0 0
    %1354 = vmatprep.subr.bf16.mxu0 0
    %1355 = vmatpush2.bf16.msra.mxu0 0
    %1356 = vmatprep.subr.bf16.mxu0 0
    %1357 = vmatpush2.bf16.msra.mxu0 0
    %1358 = vmatprep.mubr.bf16.mxu0 0
    %1359 = vmatmul.mubr.bf16.gmra.mxu0 %v1324
    %v1360 = vpop.f32.mrf.mxu0
    %v1361 = vadd.f32 0.0, %v1360
    %v1362 = vpop.f32.mrf.mxu0
    %v1363 = vpop.f32.mrf.mxu0
    %v1364 = vadd.f32 0.0, %v1363
    %v1365 = vpop.f32.mrf.mxu0
    %1366 = vdwg.mxu0
    %1367 = vrot.lane.b32.xlu0 %v229, 40
    %v1368 = vpop.permute.xlu0 %1367
    %v1371 = vsel %vm81, %v1319, 0
    %1373 = vmatprep.subr.bf16.mxu0 0
    %1374 = vmatpush1.bf16.msra.mxu0 0
    %1375 = vmatprep.subr.bf16.mxu0 0
    %1376 = vmatpush1.bf16.msra.mxu0 0
    %1377 = vmatprep.subr.bf16.mxu0 0
    %1378 = vmatpush1.bf16.msra.mxu0 0
    %1379 = vmatprep.subr.bf16.mxu0 0
    %1380 = vmatpush1.bf16.msra.mxu0 0
    %1381 = vmatprep.subr.bf16.mxu0 0
    %1382 = vmatpush1.bf16.msra.mxu0 0
    %1383 = vmatprep.subr.bf16.mxu0 0
    %1384 = vmatpush1.bf16.msra.mxu0 0
    %1385 = vmatprep.subr.bf16.mxu0 0
    %1386 = vmatpush1.bf16.msra.mxu0 0
    %1387 = vmatprep.subr.bf16.mxu0 0
    %1388 = vmatpush1.bf16.msra.mxu0 %v1368
    %1389 = vmatprep.subr.bf16.mxu0 0
    %1390 = vmatpush2.bf16.msra.mxu0 0
    %1391 = vmatprep.subr.bf16.mxu0 0
    %1392 = vmatpush2.bf16.msra.mxu0 0
    %1393 = vmatprep.subr.bf16.mxu0 0
    %1394 = vmatpush2.bf16.msra.mxu0 0
    %1395 = vmatprep.subr.bf16.mxu0 0
    %1396 = vmatpush2.bf16.msra.mxu0 0
    %1397 = vmatprep.subr.bf16.mxu0 0
    %1398 = vmatpush2.bf16.msra.mxu0 0
    %1399 = vmatprep.subr.bf16.mxu0 0
    %1400 = vmatpush2.bf16.msra.mxu0 0
    %1401 = vmatprep.subr.bf16.mxu0 0
    %1402 = vmatpush2.bf16.msra.mxu0 0
    %1403 = vmatprep.subr.bf16.mxu0 0
    %1404 = vmatpush2.bf16.msra.mxu0 0
    %1405 = vmatprep.mubr.bf16.mxu0 0
    %1406 = vmatmul.mubr.bf16.gmra.mxu0 %v1371
    %v1407 = vpop.f32.mrf.mxu0
    %v1408 = vadd.f32 0.0, %v1407
    %v1409 = vpop.f32.mrf.mxu0
    %v1410 = vpop.f32.mrf.mxu0
    %v1411 = vadd.f32 0.0, %v1410
    %v1412 = vpop.f32.mrf.mxu0
    %1413 = vdwg.mxu0
    %v1414 = vpack.c.bf16 %v1364, %v1361
    %v1415 = vpack.c.bf16 %v1411, %v1408
    %v1417 = vsel %vm233, %v1414, 0
    %v1420 = vsel %vm233, %v1415, 0
    %v1423 = vsel %vm739, %v227, 0
    %1425 = vmatprep.subr.bf16.mxu0 0
    %1426 = vmatpush1.bf16.msra.mxu0 0
    %1427 = vmatprep.subr.bf16.mxu0 0
    %1428 = vmatpush1.bf16.msra.mxu0 0
    %1429 = vmatprep.subr.bf16.mxu0 0
    %1430 = vmatpush1.bf16.msra.mxu0 0
    %1431 = vmatprep.subr.bf16.mxu0 0
    %1432 = vmatpush1.bf16.msra.mxu0 0
    %1433 = vmatprep.subr.bf16.mxu0 0
    %1434 = vmatpush1.bf16.msra.mxu0 0
    %1435 = vmatprep.subr.bf16.mxu0 0
    %1436 = vmatpush1.bf16.msra.mxu0 0
    %1437 = vmatprep.subr.bf16.mxu0 0
    %1438 = vmatpush1.bf16.msra.mxu0 0
    %1439 = vmatprep.subr.bf16.mxu0 0
    %1440 = vmatpush1.bf16.msra.mxu0 %v1423
    %1441 = vmatprep.subr.bf16.mxu0 0
    %1442 = vmatpush2.bf16.msra.mxu0 0
    %1443 = vmatprep.subr.bf16.mxu0 0
    %1444 = vmatpush2.bf16.msra.mxu0 0
    %1445 = vmatprep.subr.bf16.mxu0 0
    %1446 = vmatpush2.bf16.msra.mxu0 0
    %1447 = vmatprep.subr.bf16.mxu0 0
    %1448 = vmatpush2.bf16.msra.mxu0 0
    %1449 = vmatprep.subr.bf16.mxu0 0
    %1450 = vmatpush2.bf16.msra.mxu0 0
    %1451 = vmatprep.subr.bf16.mxu0 0
    %1452 = vmatpush2.bf16.msra.mxu0 0
    %1453 = vmatprep.subr.bf16.mxu0 0
    %1454 = vmatpush2.bf16.msra.mxu0 0
    %1455 = vmatprep.subr.bf16.mxu0 0
    %1456 = vmatpush2.bf16.msra.mxu0 0
    %1457 = vmatprep.mubr.bf16.mxu0 0
    %1458 = vmatmul.mubr.bf16.gmra.mxu0 %v1417
    %v1459 = vpop.f32.mrf.mxu0
    %v1460 = vadd.f32 0.0, %v1459
    %v1461 = vpop.f32.mrf.mxu0
    %v1462 = vpop.f32.mrf.mxu0
    %v1463 = vadd.f32 0.0, %v1462
    %v1464 = vpop.f32.mrf.mxu0
    %1465 = vmatprep.mubr.bf16.mxu0 0
    %1466 = vmatmul.mubr.bf16.gmra.mxu0 %v1420
    %v1467 = vpop.f32.mrf.mxu0
    %v1468 = vadd.f32 0.0, %v1467
    %v1469 = vpop.f32.mrf.mxu0
    %v1470 = vpop.f32.mrf.mxu0
    %v1471 = vadd.f32 0.0, %v1470
    %v1472 = vpop.f32.mrf.mxu0
    %1473 = vdwg.mxu0
    %v1474 = vadd.f32 %v1160, %v1460
    %v1475 = vadd.f32 %v1161, %v1463
    %v1476 = vadd.f32 %v1162, %v1468
    %v1477 = vadd.f32 %v1163, %v1471
    %v1478 = vld [vmem:[%s6] sm:$0x1]
    %v1480 = vlaneseq
    %v1481 = vshrl.u32 %v1480, 7
    %v1482 = vsub.s32 0, %v1481
    %v1483 = vrot.slane %v1478, %v1482
    %v1485 = vadd.f32 %v1474, %v1483
    %v1486 = vadd.f32 %v1475, %v1483
    %v1487 = vadd.f32 %v1476, %v1483
    %v1488 = vadd.f32 %v1477, %v1483
    %v1489 = vadd.f32 %v139, %v1485
    %v1490 = vadd.f32 %v140, %v1486
    %v1491 = vadd.f32 %v141, %v1487
    %v1492 = vadd.f32 %v142, %v1488
    %v1493 = vld [vmem:[%s7] sm:$0x1]
    %v1494 = vld [vmem:[%s8] sm:$0x1]
    %v1495 = vsel %vm168, %v1489, 0.0
    %1496 = vadd.xlane.f32.xlu0 %v1495
    %v1497 = vpop.xlane.xlu0 %1496
    %v1498 = vsel %vm168, %v1490, 0.0
    %1499 = vadd.xlane.f32.xlu0 %v1498
    %v1500 = vpop.xlane.xlu0 %1499
    %v1501 = vsel %vm168, %v1491, 0.0
    %1502 = vadd.xlane.f32.xlu0 %v1501
    %v1503 = vpop.xlane.xlu0 %1502
    %v1504 = vsel %vm168, %v1492, 0.0
    %1505 = vadd.xlane.f32.xlu0 %v1504
    %v1506 = vpop.xlane.xlu0 %1505
    %v1507 = vrcp.pop 32.0
    %v1508 = vmul.f32 %v1497, %v1507
    %v1509 = vmul.f32 %v1500, %v1507
    %v1510 = vmul.f32 %v1503, %v1507
    %v1511 = vmul.f32 %v1506, %v1507
    %v1512 = vsub.f32 %v1489, %v1508
    %v1513 = vsub.f32 %v1490, %v1509
    %v1514 = vsub.f32 %v1491, %v1510
    %v1515 = vsub.f32 %v1492, %v1511
    %v1516 = vmul.f32 %v1512, %v1512
    %v1517 = vmul.f32 %v1513, %v1513
    %v1518 = vmul.f32 %v1514, %v1514
    %v1519 = vmul.f32 %v1515, %v1515
    %v1520 = vsel %vm168, %v1516, 0.0
    %1521 = vadd.xlane.f32.xlu0 %v1520
    %v1522 = vpop.xlane.xlu0 %1521
    %v1523 = vsel %vm168, %v1517, 0.0
    %1524 = vadd.xlane.f32.xlu0 %v1523
    %v1525 = vpop.xlane.xlu0 %1524
    %v1526 = vsel %vm168, %v1518, 0.0
    %1527 = vadd.xlane.f32.xlu0 %v1526
    %v1528 = vpop.xlane.xlu0 %1527
    %v1529 = vsel %vm168, %v1519, 0.0
    %1530 = vadd.xlane.f32.xlu0 %v1529
    %v1531 = vpop.xlane.xlu0 %1530
    %v1532 = vmul.f32 %v1522, %v1507
    %v1533 = vmul.f32 %v1525, %v1507
    %v1534 = vmul.f32 %v1528, %v1507
    %v1535 = vmul.f32 %v1531, %v1507
    %v1536 = vadd.f32 %v1532, 1e-05
    %v1537 = vadd.f32 %v1533, 1e-05
    %v1538 = vadd.f32 %v1534, 1e-05
    %v1539 = vadd.f32 %v1535, 1e-05
    %v1540 = vrsqrt.pop %v1536
    %v1541 = vrsqrt.pop %v1537
    %v1542 = vrsqrt.pop %v1538
    %v1543 = vrsqrt.pop %v1539
    %v1544 = vmul.f32 %v1512, %v1540
    %v1545 = vmul.f32 %v1513, %v1541
    %v1546 = vmul.f32 %v1514, %v1542
    %v1547 = vmul.f32 %v1515, %v1543
    %v1549 = vlaneseq
    %v1550 = vshrl.u32 %v1549, 7
    %v1551 = vsub.s32 0, %v1550
    %v1552 = vrot.slane %v1493, %v1551
    %v1554 = vmul.f32 %v1544, %v1552
    %v1555 = vmul.f32 %v1545, %v1552
    %v1556 = vmul.f32 %v1546, %v1552
    %v1557 = vmul.f32 %v1547, %v1552
    %v1559 = vlaneseq
    %v1560 = vshrl.u32 %v1559, 7
    %v1561 = vsub.s32 0, %v1560
    %v1562 = vrot.slane %v1494, %v1561
    %v1564 = vadd.f32 %v1554, %v1562
    %v1565 = vadd.f32 %v1555, %v1562
    %v1566 = vadd.f32 %v1556, %v1562
    %v1567 = vadd.f32 %v1557, %v1562
    %v1568 = vpack.c.bf16 %v1565, %v1564
    %v1569 = vpack.c.bf16 %v1567, %v1566
    %v1570 = vld [vmem:[%s9] sm:$0xf]
    %v1571 = vld [vmem:[%s9 + $0x4] sm:$0xf]
    %v1572 = vld [vmem:[%s9 + $0x8] sm:$0xf]
    %v1573 = vld [vmem:[%s9 + $0xc] sm:$0xf]
    %v1574 = vld [vmem:[%s10] sm:$0x1]
    %v1576 = vlaneseq
    %v1577 = vshrl.u32 %v1576, 7
    %v1578 = vsub.s32 0, %v1577
    %v1579 = vrot.slane %v1574, %v1578
    %v1585 = vunpack.c.l.b16 %v1570
    %v1586 = vunpack.c.l.b16 %v1571
    %v1587 = vunpack.c.l.b16 %v1572
    %v1588 = vunpack.c.l.b16 %v1573
    %v1589 = vpack.c.b16 %v1586, %v1585
    %v1590 = vpack.c.b16 %v1588, %v1587
    %v1594 = vsel %vm168, %v1568, 0
    %v1597 = vsel %vm168, %v1569, 0
    %1599 = vmatprep.subr.bf16.mxu0 0
    %1600 = vmatpush1.bf16.msra.mxu0 0
    %1601 = vmatprep.subr.bf16.mxu0 0
    %1602 = vmatpush1.bf16.msra.mxu0 0
    %1603 = vmatprep.subr.bf16.mxu0 0
    %1604 = vmatpush1.bf16.msra.mxu0 0
    %1605 = vmatprep.subr.bf16.mxu0 0
    %1606 = vmatpush1.bf16.msra.mxu0 0
    %1607 = vmatprep.subr.bf16.mxu0 0
    %1608 = vmatpush1.bf16.msra.mxu0 0
    %1609 = vmatprep.subr.bf16.mxu0 0
    %1610 = vmatpush1.bf16.msra.mxu0 0
    %1611 = vmatprep.subr.bf16.mxu0 0
    %1612 = vmatpush1.bf16.msra.mxu0 %v1590
    %1613 = vmatprep.subr.bf16.mxu0 0
    %1614 = vmatpush1.bf16.msra.mxu0 %v1589
    %1615 = vmatprep.subr.bf16.mxu0 0
    %1616 = vmatpush2.bf16.msra.mxu0 0
    %1617 = vmatprep.subr.bf16.mxu0 0
    %1618 = vmatpush2.bf16.msra.mxu0 0
    %1619 = vmatprep.subr.bf16.mxu0 0
    %1620 = vmatpush2.bf16.msra.mxu0 0
    %1621 = vmatprep.subr.bf16.mxu0 0
    %1622 = vmatpush2.bf16.msra.mxu0 0
    %1623 = vmatprep.subr.bf16.mxu0 0
    %1624 = vmatpush2.bf16.msra.mxu0 0
    %1625 = vmatprep.subr.bf16.mxu0 0
    %1626 = vmatpush2.bf16.msra.mxu0 0
    %1627 = vmatprep.subr.bf16.mxu0 0
    %1628 = vmatpush2.bf16.msra.mxu0 0
    %1629 = vmatprep.subr.bf16.mxu0 0
    %1630 = vmatpush2.bf16.msra.mxu0 0
    %1631 = vmatprep.mubr.bf16.mxu0 0
    %1632 = vmatmul.mubr.bf16.gmra.mxu0 %v1594
    %v1633 = vpop.f32.mrf.mxu0
    %v1634 = vadd.f32 %v1579, %v1633
    %v1635 = vpop.f32.mrf.mxu0
    %v1636 = vpop.f32.mrf.mxu0
    %v1637 = vadd.f32 %v1579, %v1636
    %v1638 = vpop.f32.mrf.mxu0
    %1639 = vmatprep.mubr.bf16.mxu0 0
    %1640 = vmatmul.mubr.bf16.gmra.mxu0 %v1597
    %v1641 = vpop.f32.mrf.mxu0
    %v1642 = vadd.f32 %v1579, %v1641
    %v1643 = vpop.f32.mrf.mxu0
    %v1644 = vpop.f32.mrf.mxu0
    %v1645 = vadd.f32 %v1579, %v1644
    %v1646 = vpop.f32.mrf.mxu0
    %1647 = vdwg.mxu0
    %v1648 = vmax.f32 %v1634, 0.0
    %v1649 = vmax.f32 %v1637, 0.0
    %v1650 = vmax.f32 %v1642, 0.0
    %v1651 = vmax.f32 %v1645, 0.0
    %v1652 = vpack.c.bf16 %v1649, %v1648
    %v1653 = vpack.c.bf16 %v1651, %v1650
    %v1654 = vld [vmem:[%s11] sm:$0xf]
    %v1655 = vld [vmem:[%s11 + $0x4] sm:$0xf]
    %v1656 = vld [vmem:[%s11 + $0x8] sm:$0xf]
    %v1657 = vld [vmem:[%s11 + $0xc] sm:$0xf]
    %v1658 = vld [vmem:[%s11 + $0x10] sm:$0xf]
    %v1659 = vld [vmem:[%s11 + $0x14] sm:$0xf]
    %v1660 = vld [vmem:[%s11 + $0x18] sm:$0xf]
    %v1661 = vld [vmem:[%s11 + $0x1c] sm:$0xf]
    %v1662 = vld [vmem:[%s11 + $0x20] sm:$0xf]
    %v1663 = vld [vmem:[%s11 + $0x24] sm:$0xf]
    %v1664 = vld [vmem:[%s11 + $0x28] sm:$0xf]
    %v1665 = vld [vmem:[%s11 + $0x2c] sm:$0xf]
    %v1666 = vld [vmem:[%s11 + $0x30] sm:$0xf]
    %v1667 = vld [vmem:[%s11 + $0x34] sm:$0xf]
    %v1668 = vld [vmem:[%s11 + $0x38] sm:$0xf]
    %v1669 = vld [vmem:[%s11 + $0x3c] sm:$0xf]
    %v1670 = vld [vmem:[%s12] sm:$0x1]
    %v1672 = vlaneseq
    %v1673 = vshrl.u32 %v1672, 7
    %v1674 = vsub.s32 0, %v1673
    %v1675 = vrot.slane %v1670, %v1674
    %v1693 = vunpack.c.l.b16 %v1654
    %v1694 = vunpack.c.l.b16 %v1655
    %v1695 = vunpack.c.l.b16 %v1656
    %v1696 = vunpack.c.l.b16 %v1657
    %v1697 = vunpack.c.l.b16 %v1658
    %v1698 = vunpack.c.l.b16 %v1659
    %v1699 = vunpack.c.l.b16 %v1660
    %v1700 = vunpack.c.l.b16 %v1661
    %v1701 = vunpack.c.l.b16 %v1662
    %v1702 = vunpack.c.l.b16 %v1663
    %v1703 = vunpack.c.l.b16 %v1664
    %v1704 = vunpack.c.l.b16 %v1665
    %v1705 = vunpack.c.l.b16 %v1666
    %v1706 = vunpack.c.l.b16 %v1667
    %v1707 = vunpack.c.l.b16 %v1668
    %v1708 = vunpack.c.l.b16 %v1669
    %v1709 = vpack.c.b16 %v1694, %v1693
    %v1710 = vpack.c.b16 %v1696, %v1695
    %v1711 = vpack.c.b16 %v1698, %v1697
    %v1712 = vpack.c.b16 %v1700, %v1699
    %v1713 = vpack.c.b16 %v1702, %v1701
    %v1714 = vpack.c.b16 %v1704, %v1703
    %v1715 = vpack.c.b16 %v1706, %v1705
    %v1716 = vpack.c.b16 %v1708, %v1707
    %1725 = vmatprep.subr.bf16.mxu0 0
    %1726 = vmatpush1.bf16.msra.mxu0 %v1716
    %1727 = vmatprep.subr.bf16.mxu0 0
    %1728 = vmatpush1.bf16.msra.mxu0 %v1715
    %1729 = vmatprep.subr.bf16.mxu0 0
    %1730 = vmatpush1.bf16.msra.mxu0 %v1714
    %1731 = vmatprep.subr.bf16.mxu0 0
    %1732 = vmatpush1.bf16.msra.mxu0 %v1713
    %1733 = vmatprep.subr.bf16.mxu0 0
    %1734 = vmatpush1.bf16.msra.mxu0 %v1712
    %1735 = vmatprep.subr.bf16.mxu0 0
    %1736 = vmatpush1.bf16.msra.mxu0 %v1711
    %1737 = vmatprep.subr.bf16.mxu0 0
    %1738 = vmatpush1.bf16.msra.mxu0 %v1710
    %1739 = vmatprep.subr.bf16.mxu0 0
    %1740 = vmatpush1.bf16.msra.mxu0 %v1709
    %1741 = vmatprep.subr.bf16.mxu0 0
    %1742 = vmatpush2.bf16.msra.mxu0 0
    %1743 = vmatprep.subr.bf16.mxu0 0
    %1744 = vmatpush2.bf16.msra.mxu0 0
    %1745 = vmatprep.subr.bf16.mxu0 0
    %1746 = vmatpush2.bf16.msra.mxu0 0
    %1747 = vmatprep.subr.bf16.mxu0 0
    %1748 = vmatpush2.bf16.msra.mxu0 0
    %1749 = vmatprep.subr.bf16.mxu0 0
    %1750 = vmatpush2.bf16.msra.mxu0 0
    %1751 = vmatprep.subr.bf16.mxu0 0
    %1752 = vmatpush2.bf16.msra.mxu0 0
    %1753 = vmatprep.subr.bf16.mxu0 0
    %1754 = vmatpush2.bf16.msra.mxu0 0
    %1755 = vmatprep.subr.bf16.mxu0 0
    %1756 = vmatpush2.bf16.msra.mxu0 0
    %1757 = vmatprep.mubr.bf16.mxu0 0
    %1758 = vmatmul.mubr.bf16.gmra.mxu0 %v1652
    %v1759 = vpop.f32.mrf.mxu0
    %v1760 = vadd.f32 %v1675, %v1759
    %v1761 = vpop.f32.mrf.mxu0
    %v1762 = vpop.f32.mrf.mxu0
    %v1763 = vadd.f32 %v1675, %v1762
    %v1764 = vpop.f32.mrf.mxu0
    %1765 = vmatprep.mubr.bf16.mxu0 0
    %1766 = vmatmul.mubr.bf16.gmra.mxu0 %v1653
    %v1767 = vpop.f32.mrf.mxu0
    %v1768 = vadd.f32 %v1675, %v1767
    %v1769 = vpop.f32.mrf.mxu0
    %v1770 = vpop.f32.mrf.mxu0
    %v1771 = vadd.f32 %v1675, %v1770
    %v1772 = vpop.f32.mrf.mxu0
    %1773 = vdwg.mxu0
    %v1774 = vadd.f32 %v1564, %v1760
    %v1775 = vadd.f32 %v1565, %v1763
    %v1776 = vadd.f32 %v1566, %v1768
    %v1777 = vadd.f32 %v1567, %v1771
    %v1778 = vld [vmem:[%s13] sm:$0x1]
    %v1779 = vld [vmem:[%s14] sm:$0x1]
    %v1780 = vsel %vm168, %v1774, 0.0
    %1781 = vadd.xlane.f32.xlu0 %v1780
    %v1782 = vpop.xlane.xlu0 %1781
    %v1783 = vsel %vm168, %v1775, 0.0
    %1784 = vadd.xlane.f32.xlu0 %v1783
    %v1785 = vpop.xlane.xlu0 %1784
    %v1786 = vsel %vm168, %v1776, 0.0
    %1787 = vadd.xlane.f32.xlu0 %v1786
    %v1788 = vpop.xlane.xlu0 %1787
    %v1789 = vsel %vm168, %v1777, 0.0
    %1790 = vadd.xlane.f32.xlu0 %v1789
    %v1791 = vpop.xlane.xlu0 %1790
    %v1792 = vmul.f32 %v1782, %v1507
    %v1793 = vmul.f32 %v1785, %v1507
    %v1794 = vmul.f32 %v1788, %v1507
    %v1795 = vmul.f32 %v1791, %v1507
    %v1796 = vsub.f32 %v1774, %v1792
    %v1797 = vsub.f32 %v1775, %v1793
    %v1798 = vsub.f32 %v1776, %v1794
    %v1799 = vsub.f32 %v1777, %v1795
    %v1800 = vmul.f32 %v1796, %v1796
    %v1801 = vmul.f32 %v1797, %v1797
    %v1802 = vmul.f32 %v1798, %v1798
    %v1803 = vmul.f32 %v1799, %v1799
    %v1804 = vsel %vm168, %v1800, 0.0
    %1805 = vadd.xlane.f32.xlu0 %v1804
    %v1806 = vpop.xlane.xlu0 %1805
    %v1807 = vsel %vm168, %v1801, 0.0
    %1808 = vadd.xlane.f32.xlu0 %v1807
    %v1809 = vpop.xlane.xlu0 %1808
    %v1810 = vsel %vm168, %v1802, 0.0
    %1811 = vadd.xlane.f32.xlu0 %v1810
    %v1812 = vpop.xlane.xlu0 %1811
    %v1813 = vsel %vm168, %v1803, 0.0
    %1814 = vadd.xlane.f32.xlu0 %v1813
    %v1815 = vpop.xlane.xlu0 %1814
    %v1816 = vmul.f32 %v1806, %v1507
    %v1817 = vmul.f32 %v1809, %v1507
    %v1818 = vmul.f32 %v1812, %v1507
    %v1819 = vmul.f32 %v1815, %v1507
    %v1820 = vadd.f32 %v1816, 1e-05
    %v1821 = vadd.f32 %v1817, 1e-05
    %v1822 = vadd.f32 %v1818, 1e-05
    %v1823 = vadd.f32 %v1819, 1e-05
    %v1824 = vrsqrt.pop %v1820
    %v1825 = vrsqrt.pop %v1821
    %v1826 = vrsqrt.pop %v1822
    %v1827 = vrsqrt.pop %v1823
    %v1828 = vmul.f32 %v1796, %v1824
    %v1829 = vmul.f32 %v1797, %v1825
    %v1830 = vmul.f32 %v1798, %v1826
    %v1831 = vmul.f32 %v1799, %v1827
    %v1833 = vlaneseq
    %v1834 = vshrl.u32 %v1833, 7
    %v1835 = vsub.s32 0, %v1834
    %v1836 = vrot.slane %v1778, %v1835
    %v1838 = vmul.f32 %v1828, %v1836
    %v1839 = vmul.f32 %v1829, %v1836
    %v1840 = vmul.f32 %v1830, %v1836
    %v1841 = vmul.f32 %v1831, %v1836
    %v1843 = vlaneseq
    %v1844 = vshrl.u32 %v1843, 7
    %v1845 = vsub.s32 0, %v1844
    %v1846 = vrot.slane %v1779, %v1845
    %v1848 = vadd.f32 %v1838, %v1846
    %v1849 = vadd.f32 %v1839, %v1846
    %v1850 = vadd.f32 %v1840, %v1846
    %v1851 = vadd.f32 %v1841, %v1846
    %v1852 = vpack.c.bf16 %v1849, %v1848
    %v1853 = vpack.c.bf16 %v1851, %v1850
    %s1854 = scalar_lea.vmem %s3, 16
    %v1855 = vld [vmem:[%s1854] sm:$0xf]
    %v1856 = vld [vmem:[%s1854 + $0x4] sm:$0xf]
    %v1857 = vld [vmem:[%s1854 + $0x8] sm:$0xf]
    %v1858 = vld [vmem:[%s1854 + $0xc] sm:$0xf]
    %s1859 = scalar_lea.vmem %s4, 1
    %v1860 = vld [vmem:[%s1859] sm:$0x1]
    %v1862 = vlaneseq
    %v1863 = vshrl.u32 %v1862, 7
    %v1864 = vsub.s32 0, %v1863
    %v1865 = vrot.slane %v1860, %v1864
    %v1871 = vunpack.c.l.b16 %v1855
    %v1872 = vunpack.c.l.b16 %v1856
    %v1873 = vunpack.c.l.b16 %v1857
    %v1874 = vunpack.c.l.b16 %v1858
    %v1875 = vpack.c.b16 %v1872, %v1871
    %v1876 = vpack.c.b16 %v1874, %v1873
    %v1880 = vsel %vm168, %v1852, 0
    %v1883 = vsel %vm168, %v1853, 0
    %1885 = vmatprep.subr.bf16.mxu0 0
    %1886 = vmatpush1.bf16.msra.mxu0 0
    %1887 = vmatprep.subr.bf16.mxu0 0
    %1888 = vmatpush1.bf16.msra.mxu0 0
    %1889 = vmatprep.subr.bf16.mxu0 0
    %1890 = vmatpush1.bf16.msra.mxu0 0
    %1891 = vmatprep.subr.bf16.mxu0 0
    %1892 = vmatpush1.bf16.msra.mxu0 0
    %1893 = vmatprep.subr.bf16.mxu0 0
    %1894 = vmatpush1.bf16.msra.mxu0 0
    %1895 = vmatprep.subr.bf16.mxu0 0
    %1896 = vmatpush1.bf16.msra.mxu0 0
    %1897 = vmatprep.subr.bf16.mxu0 0
    %1898 = vmatpush1.bf16.msra.mxu0 %v1876
    %1899 = vmatprep.subr.bf16.mxu0 0
    %1900 = vmatpush1.bf16.msra.mxu0 %v1875
    %1901 = vmatprep.subr.bf16.mxu0 0
    %1902 = vmatpush2.bf16.msra.mxu0 0
    %1903 = vmatprep.subr.bf16.mxu0 0
    %1904 = vmatpush2.bf16.msra.mxu0 0
    %1905 = vmatprep.subr.bf16.mxu0 0
    %1906 = vmatpush2.bf16.msra.mxu0 0
    %1907 = vmatprep.subr.bf16.mxu0 0
    %1908 = vmatpush2.bf16.msra.mxu0 0
    %1909 = vmatprep.subr.bf16.mxu0 0
    %1910 = vmatpush2.bf16.msra.mxu0 0
    %1911 = vmatprep.subr.bf16.mxu0 0
    %1912 = vmatpush2.bf16.msra.mxu0 0
    %1913 = vmatprep.subr.bf16.mxu0 0
    %1914 = vmatpush2.bf16.msra.mxu0 0
    %1915 = vmatprep.subr.bf16.mxu0 0
    %1916 = vmatpush2.bf16.msra.mxu0 0
    %1917 = vmatprep.mubr.bf16.mxu0 0
    %1918 = vmatmul.mubr.bf16.gmra.mxu0 %v1880
    %v1919 = vpop.f32.mrf.mxu0
    %v1920 = vadd.f32 %v1865, %v1919
    %v1921 = vpop.f32.mrf.mxu0
    %v1922 = vpop.f32.mrf.mxu0
    %v1923 = vadd.f32 %v1865, %v1922
    %v1924 = vpop.f32.mrf.mxu0
    %1925 = vmatprep.mubr.bf16.mxu0 0
    %1926 = vmatmul.mubr.bf16.gmra.mxu0 %v1883
    %v1927 = vpop.f32.mrf.mxu0
    %v1928 = vadd.f32 %v1865, %v1927
    %v1929 = vpop.f32.mrf.mxu0
    %v1930 = vpop.f32.mrf.mxu0
    %v1931 = vadd.f32 %v1865, %v1930
    %v1932 = vpop.f32.mrf.mxu0
    %1933 = vdwg.mxu0
    %s1934 = scalar_lea.vmem %s5, 16
    %v1935 = vld [vmem:[%s1934] sm:$0xf]
    %v1936 = vld [vmem:[%s1934 + $0x4] sm:$0xf]
    %v1937 = vld [vmem:[%s1934 + $0x8] sm:$0xf]
    %v1938 = vld [vmem:[%s1934 + $0xc] sm:$0xf]
    %v1939 = vpack.c.bf16 %v1923, %v1920
    %v1940 = vpack.c.bf16 %v1931, %v1928
    %1942 = vrot.lane.b32.xlu0 %v1939, 96
    %v1943 = vpop.permute.xlu0 %1942
    %v1945 = vsel %vm233, %v1939, 0
    %v1948 = vsel %vm233, %v1943, 0
    %1950 = vmatprep.subr.bf16.mxu0 0
    %1951 = vmatpush1.bf16.xpose.msra.mxu0 0
    %1952 = vmatprep.subr.bf16.mxu0 0
    %1953 = vmatpush1.bf16.xpose.msra.mxu0 0
    %1954 = vmatprep.subr.bf16.mxu0 0
    %1955 = vmatpush1.bf16.xpose.msra.mxu0 0
    %1956 = vmatprep.subr.bf16.mxu0 0
    %1957 = vmatpush1.bf16.xpose.msra.mxu0 0
    %1958 = vmatprep.subr.bf16.mxu0 0
    %1959 = vmatpush1.bf16.xpose.msra.mxu0 0
    %1960 = vmatprep.subr.bf16.mxu0 0
    %1961 = vmatpush1.bf16.xpose.msra.mxu0 0
    %1962 = vmatprep.subr.bf16.mxu0 0
    %1963 = vmatpush1.bf16.xpose.msra.mxu0 0
    %1964 = vmatprep.subr.bf16.mxu0 0
    %1965 = vmatpush1.bf16.xpose.msra.mxu0 %v1948
    %1966 = vmatprep.subr.bf16.mxu0 0
    %1967 = vmatpush2.bf16.xpose.msra.mxu0 0
    %1968 = vmatprep.subr.bf16.mxu0 0
    %1969 = vmatpush2.bf16.xpose.msra.mxu0 0
    %1970 = vmatprep.subr.bf16.mxu0 0
    %1971 = vmatpush2.bf16.xpose.msra.mxu0 0
    %1972 = vmatprep.subr.bf16.mxu0 0
    %1973 = vmatpush2.bf16.xpose.msra.mxu0 0
    %1974 = vmatprep.subr.bf16.mxu0 0
    %1975 = vmatpush2.bf16.xpose.msra.mxu0 0
    %1976 = vmatprep.subr.bf16.mxu0 0
    %1977 = vmatpush2.bf16.xpose.msra.mxu0 0
    %1978 = vmatprep.subr.bf16.mxu0 0
    %1979 = vmatpush2.bf16.xpose.msra.mxu0 0
    %1980 = vmatprep.subr.bf16.mxu0 0
    %1981 = vmatpush2.bf16.xpose.msra.mxu0 0
    %1982 = vmatprep.mubr.bf16.mxu0 0
    %1983 = vmatmul.mubr.bf16.gmra.mxu0 %v1945
    %v1984 = vpop.f32.mrf.mxu0
    %v1985 = vadd.f32 0.0, %v1984
    %v1986 = vpop.f32.mrf.mxu0
    %v1987 = vpop.f32.mrf.mxu0
    %v1988 = vadd.f32 0.0, %v1987
    %v1989 = vpop.f32.mrf.mxu0
    %1990 = vdwg.mxu0
    %1992 = vrot.lane.b32.xlu0 %v1940, 96
    %v1993 = vpop.permute.xlu0 %1992
    %v1995 = vsel %vm233, %v1940, 0
    %v1998 = vsel %vm233, %v1993, 0
    %2000 = vmatprep.subr.bf16.mxu0 0
    %2001 = vmatpush1.bf16.xpose.msra.mxu0 0
    %2002 = vmatprep.subr.bf16.mxu0 0
    %2003 = vmatpush1.bf16.xpose.msra.mxu0 0
    %2004 = vmatprep.subr.bf16.mxu0 0
    %2005 = vmatpush1.bf16.xpose.msra.mxu0 0
    %2006 = vmatprep.subr.bf16.mxu0 0
    %2007 = vmatpush1.bf16.xpose.msra.mxu0 0
    %2008 = vmatprep.subr.bf16.mxu0 0
    %2009 = vmatpush1.bf16.xpose.msra.mxu0 0
    %2010 = vmatprep.subr.bf16.mxu0 0
    %2011 = vmatpush1.bf16.xpose.msra.mxu0 0
    %2012 = vmatprep.subr.bf16.mxu0 0
    %2013 = vmatpush1.bf16.xpose.msra.mxu0 0
    %2014 = vmatprep.subr.bf16.mxu0 0
    %2015 = vmatpush1.bf16.xpose.msra.mxu0 %v1998
    %2016 = vmatprep.subr.bf16.mxu0 0
    %2017 = vmatpush2.bf16.xpose.msra.mxu0 0
    %2018 = vmatprep.subr.bf16.mxu0 0
    %2019 = vmatpush2.bf16.xpose.msra.mxu0 0
    %2020 = vmatprep.subr.bf16.mxu0 0
    %2021 = vmatpush2.bf16.xpose.msra.mxu0 0
    %2022 = vmatprep.subr.bf16.mxu0 0
    %2023 = vmatpush2.bf16.xpose.msra.mxu0 0
    %2024 = vmatprep.subr.bf16.mxu0 0
    %2025 = vmatpush2.bf16.xpose.msra.mxu0 0
    %2026 = vmatprep.subr.bf16.mxu0 0
    %2027 = vmatpush2.bf16.xpose.msra.mxu0 0
    %2028 = vmatprep.subr.bf16.mxu0 0
    %2029 = vmatpush2.bf16.xpose.msra.mxu0 0
    %2030 = vmatprep.subr.bf16.mxu0 0
    %2031 = vmatpush2.bf16.xpose.msra.mxu0 0
    %2032 = vmatprep.mubr.bf16.mxu0 0
    %2033 = vmatmul.mubr.bf16.gmra.mxu0 %v1995
    %v2034 = vpop.f32.mrf.mxu0
    %v2035 = vadd.f32 0.0, %v2034
    %v2036 = vpop.f32.mrf.mxu0
    %v2037 = vpop.f32.mrf.mxu0
    %v2038 = vadd.f32 0.0, %v2037
    %v2039 = vpop.f32.mrf.mxu0
    %2040 = vdwg.mxu0
    %v2041 = vmul.f32 %v1985, 0.35355338
    %v2042 = vmul.f32 %v1988, 0.35355338
    %v2043 = vmul.f32 %v2035, 0.35355338
    %v2044 = vmul.f32 %v2038, 0.35355338
    %v2045 = vadd.f32 %v2041, %v65
    %v2046 = vadd.f32 %v2042, %v66
    %v2047 = vadd.f32 %v2043, %v65
    %v2048 = vadd.f32 %v2044, %v66
    %v2049 = vsel %vm81, %v2045, -inf
    %2050 = vmax.xlane.f32.xlu0 %v2049
    %v2051 = vpop.xlane.xlu0 %2050
    %v2052 = vsel %vm81, %v2046, -inf
    %2053 = vmax.xlane.f32.xlu0 %v2052
    %v2054 = vpop.xlane.xlu0 %2053
    %v2055 = vsel %vm81, %v2047, -inf
    %2056 = vmax.xlane.f32.xlu0 %v2055
    %v2057 = vpop.xlane.xlu0 %2056
    %v2058 = vsel %vm81, %v2048, -inf
    %2059 = vmax.xlane.f32.xlu0 %v2058
    %v2060 = vpop.xlane.xlu0 %2059
    %v2061 = vsub.f32 %v2045, %v2051
    %v2062 = vsub.f32 %v2046, %v2054
    %v2063 = vsub.f32 %v2047, %v2057
    %v2064 = vsub.f32 %v2048, %v2060
    %v2065 = vmul.f32 %v2061, 1.442695
    %v2066 = vpow.pop %v2065
    %v2067 = vmul.f32 %v2062, 1.442695
    %v2068 = vpow.pop %v2067
    %v2069 = vmul.f32 %v2063, 1.442695
    %v2070 = vpow.pop %v2069
    %v2071 = vmul.f32 %v2064, 1.442695
    %v2072 = vpow.pop %v2071
    %v2073 = vsel %vm81, %v2066, 0.0
    %2074 = vadd.xlane.f32.xlu0 %v2073
    %v2075 = vpop.xlane.xlu0 %2074
    %v2076 = vsel %vm81, %v2068, 0.0
    %2077 = vadd.xlane.f32.xlu0 %v2076
    %v2078 = vpop.xlane.xlu0 %2077
    %v2079 = vsel %vm81, %v2070, 0.0
    %2080 = vadd.xlane.f32.xlu0 %v2079
    %v2081 = vpop.xlane.xlu0 %2080
    %v2082 = vsel %vm81, %v2072, 0.0
    %2083 = vadd.xlane.f32.xlu0 %v2082
    %v2084 = vpop.xlane.xlu0 %2083
    %v2085 = vrcp.pop %v2075
    %v2086 = vrcp.pop %v2078
    %v2087 = vrcp.pop %v2081
    %v2088 = vrcp.pop %v2084
    %v2089 = vmul.f32 %v2066, %v2085
    %v2090 = vmul.f32 %v2068, %v2086
    %v2091 = vmul.f32 %v2070, %v2087
    %v2092 = vmul.f32 %v2072, %v2088
    %v2093 = vpack.c.bf16 %v2090, %v2089
    %v2094 = vpack.c.bf16 %v2092, %v2091
    %2095 = vrot.lane.b32.xlu0 %v1939, 64
    %v2096 = vpop.permute.xlu0 %2095
    %v2099 = vsel %vm81, %v2093, 0
    %2101 = vmatprep.subr.bf16.mxu0 0
    %2102 = vmatpush1.bf16.msra.mxu0 0
    %2103 = vmatprep.subr.bf16.mxu0 0
    %2104 = vmatpush1.bf16.msra.mxu0 0
    %2105 = vmatprep.subr.bf16.mxu0 0
    %2106 = vmatpush1.bf16.msra.mxu0 0
    %2107 = vmatprep.subr.bf16.mxu0 0
    %2108 = vmatpush1.bf16.msra.mxu0 0
    %2109 = vmatprep.subr.bf16.mxu0 0
    %2110 = vmatpush1.bf16.msra.mxu0 0
    %2111 = vmatprep.subr.bf16.mxu0 0
    %2112 = vmatpush1.bf16.msra.mxu0 0
    %2113 = vmatprep.subr.bf16.mxu0 0
    %2114 = vmatpush1.bf16.msra.mxu0 0
    %2115 = vmatprep.subr.bf16.mxu0 0
    %2116 = vmatpush1.bf16.msra.mxu0 %v2096
    %2117 = vmatprep.subr.bf16.mxu0 0
    %2118 = vmatpush2.bf16.msra.mxu0 0
    %2119 = vmatprep.subr.bf16.mxu0 0
    %2120 = vmatpush2.bf16.msra.mxu0 0
    %2121 = vmatprep.subr.bf16.mxu0 0
    %2122 = vmatpush2.bf16.msra.mxu0 0
    %2123 = vmatprep.subr.bf16.mxu0 0
    %2124 = vmatpush2.bf16.msra.mxu0 0
    %2125 = vmatprep.subr.bf16.mxu0 0
    %2126 = vmatpush2.bf16.msra.mxu0 0
    %2127 = vmatprep.subr.bf16.mxu0 0
    %2128 = vmatpush2.bf16.msra.mxu0 0
    %2129 = vmatprep.subr.bf16.mxu0 0
    %2130 = vmatpush2.bf16.msra.mxu0 0
    %2131 = vmatprep.subr.bf16.mxu0 0
    %2132 = vmatpush2.bf16.msra.mxu0 0
    %2133 = vmatprep.mubr.bf16.mxu0 0
    %2134 = vmatmul.mubr.bf16.gmra.mxu0 %v2099
    %v2135 = vpop.f32.mrf.mxu0
    %v2136 = vadd.f32 0.0, %v2135
    %v2137 = vpop.f32.mrf.mxu0
    %v2138 = vpop.f32.mrf.mxu0
    %v2139 = vadd.f32 0.0, %v2138
    %v2140 = vpop.f32.mrf.mxu0
    %2141 = vdwg.mxu0
    %2142 = vrot.lane.b32.xlu0 %v1940, 64
    %v2143 = vpop.permute.xlu0 %2142
    %v2146 = vsel %vm81, %v2094, 0
    %2148 = vmatprep.subr.bf16.mxu0 0
    %2149 = vmatpush1.bf16.msra.mxu0 0
    %2150 = vmatprep.subr.bf16.mxu0 0
    %2151 = vmatpush1.bf16.msra.mxu0 0
    %2152 = vmatprep.subr.bf16.mxu0 0
    %2153 = vmatpush1.bf16.msra.mxu0 0
    %2154 = vmatprep.subr.bf16.mxu0 0
    %2155 = vmatpush1.bf16.msra.mxu0 0
    %2156 = vmatprep.subr.bf16.mxu0 0
    %2157 = vmatpush1.bf16.msra.mxu0 0
    %2158 = vmatprep.subr.bf16.mxu0 0
    %2159 = vmatpush1.bf16.msra.mxu0 0
    %2160 = vmatprep.subr.bf16.mxu0 0
    %2161 = vmatpush1.bf16.msra.mxu0 0
    %2162 = vmatprep.subr.bf16.mxu0 0
    %2163 = vmatpush1.bf16.msra.mxu0 %v2143
    %2164 = vmatprep.subr.bf16.mxu0 0
    %2165 = vmatpush2.bf16.msra.mxu0 0
    %2166 = vmatprep.subr.bf16.mxu0 0
    %2167 = vmatpush2.bf16.msra.mxu0 0
    %2168 = vmatprep.subr.bf16.mxu0 0
    %2169 = vmatpush2.bf16.msra.mxu0 0
    %2170 = vmatprep.subr.bf16.mxu0 0
    %2171 = vmatpush2.bf16.msra.mxu0 0
    %2172 = vmatprep.subr.bf16.mxu0 0
    %2173 = vmatpush2.bf16.msra.mxu0 0
    %2174 = vmatprep.subr.bf16.mxu0 0
    %2175 = vmatpush2.bf16.msra.mxu0 0
    %2176 = vmatprep.subr.bf16.mxu0 0
    %2177 = vmatpush2.bf16.msra.mxu0 0
    %2178 = vmatprep.subr.bf16.mxu0 0
    %2179 = vmatpush2.bf16.msra.mxu0 0
    %2180 = vmatprep.mubr.bf16.mxu0 0
    %2181 = vmatmul.mubr.bf16.gmra.mxu0 %v2146
    %v2182 = vpop.f32.mrf.mxu0
    %v2183 = vadd.f32 0.0, %v2182
    %v2184 = vpop.f32.mrf.mxu0
    %v2185 = vpop.f32.mrf.mxu0
    %v2186 = vadd.f32 0.0, %v2185
    %v2187 = vpop.f32.mrf.mxu0
    %2188 = vdwg.mxu0
    %v2189 = vpack.c.bf16 %v2139, %v2136
    %v2190 = vpack.c.bf16 %v2186, %v2183
    %2191 = vrot.lane.b32.xlu0 %v1939, 120
    %v2192 = vpop.permute.xlu0 %2191
    %2193 = vrot.lane.b32.xlu0 %v1939, 88
    %v2194 = vpop.permute.xlu0 %2193
    %v2196 = vsel %vm233, %v2192, 0
    %v2199 = vsel %vm233, %v2194, 0
    %2201 = vmatprep.subr.bf16.mxu0 0
    %2202 = vmatpush1.bf16.xpose.msra.mxu0 0
    %2203 = vmatprep.subr.bf16.mxu0 0
    %2204 = vmatpush1.bf16.xpose.msra.mxu0 0
    %2205 = vmatprep.subr.bf16.mxu0 0
    %2206 = vmatpush1.bf16.xpose.msra.mxu0 0
    %2207 = vmatprep.subr.bf16.mxu0 0
    %2208 = vmatpush1.bf16.xpose.msra.mxu0 0
    %2209 = vmatprep.subr.bf16.mxu0 0
    %2210 = vmatpush1.bf16.xpose.msra.mxu0 0
    %2211 = vmatprep.subr.bf16.mxu0 0
    %2212 = vmatpush1.bf16.xpose.msra.mxu0 0
    %2213 = vmatprep.subr.bf16.mxu0 0
    %2214 = vmatpush1.bf16.xpose.msra.mxu0 0
    %2215 = vmatprep.subr.bf16.mxu0 0
    %2216 = vmatpush1.bf16.xpose.msra.mxu0 %v2199
    %2217 = vmatprep.subr.bf16.mxu0 0
    %2218 = vmatpush2.bf16.xpose.msra.mxu0 0
    %2219 = vmatprep.subr.bf16.mxu0 0
    %2220 = vmatpush2.bf16.xpose.msra.mxu0 0
    %2221 = vmatprep.subr.bf16.mxu0 0
    %2222 = vmatpush2.bf16.xpose.msra.mxu0 0
    %2223 = vmatprep.subr.bf16.mxu0 0
    %2224 = vmatpush2.bf16.xpose.msra.mxu0 0
    %2225 = vmatprep.subr.bf16.mxu0 0
    %2226 = vmatpush2.bf16.xpose.msra.mxu0 0
    %2227 = vmatprep.subr.bf16.mxu0 0
    %2228 = vmatpush2.bf16.xpose.msra.mxu0 0
    %2229 = vmatprep.subr.bf16.mxu0 0
    %2230 = vmatpush2.bf16.xpose.msra.mxu0 0
    %2231 = vmatprep.subr.bf16.mxu0 0
    %2232 = vmatpush2.bf16.xpose.msra.mxu0 0
    %2233 = vmatprep.mubr.bf16.mxu0 0
    %2234 = vmatmul.mubr.bf16.gmra.mxu0 %v2196
    %v2235 = vpop.f32.mrf.mxu0
    %v2236 = vadd.f32 0.0, %v2235
    %v2237 = vpop.f32.mrf.mxu0
    %v2238 = vpop.f32.mrf.mxu0
    %v2239 = vadd.f32 0.0, %v2238
    %v2240 = vpop.f32.mrf.mxu0
    %2241 = vdwg.mxu0
    %2242 = vrot.lane.b32.xlu0 %v1940, 120
    %v2243 = vpop.permute.xlu0 %2242
    %2244 = vrot.lane.b32.xlu0 %v1940, 88
    %v2245 = vpop.permute.xlu0 %2244
    %v2247 = vsel %vm233, %v2243, 0
    %v2250 = vsel %vm233, %v2245, 0
    %2252 = vmatprep.subr.bf16.mxu0 0
    %2253 = vmatpush1.bf16.xpose.msra.mxu0 0
    %2254 = vmatprep.subr.bf16.mxu0 0
    %2255 = vmatpush1.bf16.xpose.msra.mxu0 0
    %2256 = vmatprep.subr.bf16.mxu0 0
    %2257 = vmatpush1.bf16.xpose.msra.mxu0 0
    %2258 = vmatprep.subr.bf16.mxu0 0
    %2259 = vmatpush1.bf16.xpose.msra.mxu0 0
    %2260 = vmatprep.subr.bf16.mxu0 0
    %2261 = vmatpush1.bf16.xpose.msra.mxu0 0
    %2262 = vmatprep.subr.bf16.mxu0 0
    %2263 = vmatpush1.bf16.xpose.msra.mxu0 0
    %2264 = vmatprep.subr.bf16.mxu0 0
    %2265 = vmatpush1.bf16.xpose.msra.mxu0 0
    %2266 = vmatprep.subr.bf16.mxu0 0
    %2267 = vmatpush1.bf16.xpose.msra.mxu0 %v2250
    %2268 = vmatprep.subr.bf16.mxu0 0
    %2269 = vmatpush2.bf16.xpose.msra.mxu0 0
    %2270 = vmatprep.subr.bf16.mxu0 0
    %2271 = vmatpush2.bf16.xpose.msra.mxu0 0
    %2272 = vmatprep.subr.bf16.mxu0 0
    %2273 = vmatpush2.bf16.xpose.msra.mxu0 0
    %2274 = vmatprep.subr.bf16.mxu0 0
    %2275 = vmatpush2.bf16.xpose.msra.mxu0 0
    %2276 = vmatprep.subr.bf16.mxu0 0
    %2277 = vmatpush2.bf16.xpose.msra.mxu0 0
    %2278 = vmatprep.subr.bf16.mxu0 0
    %2279 = vmatpush2.bf16.xpose.msra.mxu0 0
    %2280 = vmatprep.subr.bf16.mxu0 0
    %2281 = vmatpush2.bf16.xpose.msra.mxu0 0
    %2282 = vmatprep.subr.bf16.mxu0 0
    %2283 = vmatpush2.bf16.xpose.msra.mxu0 0
    %2284 = vmatprep.mubr.bf16.mxu0 0
    %2285 = vmatmul.mubr.bf16.gmra.mxu0 %v2247
    %v2286 = vpop.f32.mrf.mxu0
    %v2287 = vadd.f32 0.0, %v2286
    %v2288 = vpop.f32.mrf.mxu0
    %v2289 = vpop.f32.mrf.mxu0
    %v2290 = vadd.f32 0.0, %v2289
    %v2291 = vpop.f32.mrf.mxu0
    %2292 = vdwg.mxu0
    %v2293 = vmul.f32 %v2236, 0.35355338
    %v2294 = vmul.f32 %v2239, 0.35355338
    %v2295 = vmul.f32 %v2287, 0.35355338
    %v2296 = vmul.f32 %v2290, 0.35355338
    %v2297 = vadd.f32 %v2293, %v65
    %v2298 = vadd.f32 %v2294, %v66
    %v2299 = vadd.f32 %v2295, %v65
    %v2300 = vadd.f32 %v2296, %v66
    %v2301 = vsel %vm81, %v2297, -inf
    %2302 = vmax.xlane.f32.xlu0 %v2301
    %v2303 = vpop.xlane.xlu0 %2302
    %v2304 = vsel %vm81, %v2298, -inf
    %2305 = vmax.xlane.f32.xlu0 %v2304
    %v2306 = vpop.xlane.xlu0 %2305
    %v2307 = vsel %vm81, %v2299, -inf
    %2308 = vmax.xlane.f32.xlu0 %v2307
    %v2309 = vpop.xlane.xlu0 %2308
    %v2310 = vsel %vm81, %v2300, -inf
    %2311 = vmax.xlane.f32.xlu0 %v2310
    %v2312 = vpop.xlane.xlu0 %2311
    %v2313 = vsub.f32 %v2297, %v2303
    %v2314 = vsub.f32 %v2298, %v2306
    %v2315 = vsub.f32 %v2299, %v2309
    %v2316 = vsub.f32 %v2300, %v2312
    %v2317 = vmul.f32 %v2313, 1.442695
    %v2318 = vpow.pop %v2317
    %v2319 = vmul.f32 %v2314, 1.442695
    %v2320 = vpow.pop %v2319
    %v2321 = vmul.f32 %v2315, 1.442695
    %v2322 = vpow.pop %v2321
    %v2323 = vmul.f32 %v2316, 1.442695
    %v2324 = vpow.pop %v2323
    %v2325 = vsel %vm81, %v2318, 0.0
    %2326 = vadd.xlane.f32.xlu0 %v2325
    %v2327 = vpop.xlane.xlu0 %2326
    %v2328 = vsel %vm81, %v2320, 0.0
    %2329 = vadd.xlane.f32.xlu0 %v2328
    %v2330 = vpop.xlane.xlu0 %2329
    %v2331 = vsel %vm81, %v2322, 0.0
    %2332 = vadd.xlane.f32.xlu0 %v2331
    %v2333 = vpop.xlane.xlu0 %2332
    %v2334 = vsel %vm81, %v2324, 0.0
    %2335 = vadd.xlane.f32.xlu0 %v2334
    %v2336 = vpop.xlane.xlu0 %2335
    %v2337 = vrcp.pop %v2327
    %v2338 = vrcp.pop %v2330
    %v2339 = vrcp.pop %v2333
    %v2340 = vrcp.pop %v2336
    %v2341 = vmul.f32 %v2318, %v2337
    %v2342 = vmul.f32 %v2320, %v2338
    %v2343 = vmul.f32 %v2322, %v2339
    %v2344 = vmul.f32 %v2324, %v2340
    %v2345 = vpack.c.bf16 %v2342, %v2341
    %v2346 = vpack.c.bf16 %v2344, %v2343
    %2347 = vrot.lane.b32.xlu0 %v1939, 56
    %v2348 = vpop.permute.xlu0 %2347
    %v2351 = vsel %vm81, %v2345, 0
    %2353 = vmatprep.subr.bf16.mxu0 0
    %2354 = vmatpush1.bf16.msra.mxu0 0
    %2355 = vmatprep.subr.bf16.mxu0 0
    %2356 = vmatpush1.bf16.msra.mxu0 0
    %2357 = vmatprep.subr.bf16.mxu0 0
    %2358 = vmatpush1.bf16.msra.mxu0 0
    %2359 = vmatprep.subr.bf16.mxu0 0
    %2360 = vmatpush1.bf16.msra.mxu0 0
    %2361 = vmatprep.subr.bf16.mxu0 0
    %2362 = vmatpush1.bf16.msra.mxu0 0
    %2363 = vmatprep.subr.bf16.mxu0 0
    %2364 = vmatpush1.bf16.msra.mxu0 0
    %2365 = vmatprep.subr.bf16.mxu0 0
    %2366 = vmatpush1.bf16.msra.mxu0 0
    %2367 = vmatprep.subr.bf16.mxu0 0
    %2368 = vmatpush1.bf16.msra.mxu0 %v2348
    %2369 = vmatprep.subr.bf16.mxu0 0
    %2370 = vmatpush2.bf16.msra.mxu0 0
    %2371 = vmatprep.subr.bf16.mxu0 0
    %2372 = vmatpush2.bf16.msra.mxu0 0
    %2373 = vmatprep.subr.bf16.mxu0 0
    %2374 = vmatpush2.bf16.msra.mxu0 0
    %2375 = vmatprep.subr.bf16.mxu0 0
    %2376 = vmatpush2.bf16.msra.mxu0 0
    %2377 = vmatprep.subr.bf16.mxu0 0
    %2378 = vmatpush2.bf16.msra.mxu0 0
    %2379 = vmatprep.subr.bf16.mxu0 0
    %2380 = vmatpush2.bf16.msra.mxu0 0
    %2381 = vmatprep.subr.bf16.mxu0 0
    %2382 = vmatpush2.bf16.msra.mxu0 0
    %2383 = vmatprep.subr.bf16.mxu0 0
    %2384 = vmatpush2.bf16.msra.mxu0 0
    %2385 = vmatprep.mubr.bf16.mxu0 0
    %2386 = vmatmul.mubr.bf16.gmra.mxu0 %v2351
    %v2387 = vpop.f32.mrf.mxu0
    %v2388 = vadd.f32 0.0, %v2387
    %v2389 = vpop.f32.mrf.mxu0
    %v2390 = vpop.f32.mrf.mxu0
    %v2391 = vadd.f32 0.0, %v2390
    %v2392 = vpop.f32.mrf.mxu0
    %2393 = vdwg.mxu0
    %2394 = vrot.lane.b32.xlu0 %v1940, 56
    %v2395 = vpop.permute.xlu0 %2394
    %v2398 = vsel %vm81, %v2346, 0
    %2400 = vmatprep.subr.bf16.mxu0 0
    %2401 = vmatpush1.bf16.msra.mxu0 0
    %2402 = vmatprep.subr.bf16.mxu0 0
    %2403 = vmatpush1.bf16.msra.mxu0 0
    %2404 = vmatprep.subr.bf16.mxu0 0
    %2405 = vmatpush1.bf16.msra.mxu0 0
    %2406 = vmatprep.subr.bf16.mxu0 0
    %2407 = vmatpush1.bf16.msra.mxu0 0
    %2408 = vmatprep.subr.bf16.mxu0 0
    %2409 = vmatpush1.bf16.msra.mxu0 0
    %2410 = vmatprep.subr.bf16.mxu0 0
    %2411 = vmatpush1.bf16.msra.mxu0 0
    %2412 = vmatprep.subr.bf16.mxu0 0
    %2413 = vmatpush1.bf16.msra.mxu0 0
    %2414 = vmatprep.subr.bf16.mxu0 0
    %2415 = vmatpush1.bf16.msra.mxu0 %v2395
    %2416 = vmatprep.subr.bf16.mxu0 0
    %2417 = vmatpush2.bf16.msra.mxu0 0
    %2418 = vmatprep.subr.bf16.mxu0 0
    %2419 = vmatpush2.bf16.msra.mxu0 0
    %2420 = vmatprep.subr.bf16.mxu0 0
    %2421 = vmatpush2.bf16.msra.mxu0 0
    %2422 = vmatprep.subr.bf16.mxu0 0
    %2423 = vmatpush2.bf16.msra.mxu0 0
    %2424 = vmatprep.subr.bf16.mxu0 0
    %2425 = vmatpush2.bf16.msra.mxu0 0
    %2426 = vmatprep.subr.bf16.mxu0 0
    %2427 = vmatpush2.bf16.msra.mxu0 0
    %2428 = vmatprep.subr.bf16.mxu0 0
    %2429 = vmatpush2.bf16.msra.mxu0 0
    %2430 = vmatprep.subr.bf16.mxu0 0
    %2431 = vmatpush2.bf16.msra.mxu0 0
    %2432 = vmatprep.mubr.bf16.mxu0 0
    %2433 = vmatmul.mubr.bf16.gmra.mxu0 %v2398
    %v2434 = vpop.f32.mrf.mxu0
    %v2435 = vadd.f32 0.0, %v2434
    %v2436 = vpop.f32.mrf.mxu0
    %v2437 = vpop.f32.mrf.mxu0
    %v2438 = vadd.f32 0.0, %v2437
    %v2439 = vpop.f32.mrf.mxu0
    %2440 = vdwg.mxu0
    %v2441 = vpack.c.bf16 %v2391, %v2388
    %v2442 = vpack.c.bf16 %v2438, %v2435
    %v2444 = vsel %vm233, %v2441, 0
    %v2447 = vsel %vm233, %v2442, 0
    %v2450 = vsel %vm739, %v1936, 0
    %2452 = vmatprep.subr.bf16.mxu0 0
    %2453 = vmatpush1.bf16.msra.mxu0 0
    %2454 = vmatprep.subr.bf16.mxu0 0
    %2455 = vmatpush1.bf16.msra.mxu0 0
    %2456 = vmatprep.subr.bf16.mxu0 0
    %2457 = vmatpush1.bf16.msra.mxu0 0
    %2458 = vmatprep.subr.bf16.mxu0 0
    %2459 = vmatpush1.bf16.msra.mxu0 0
    %2460 = vmatprep.subr.bf16.mxu0 0
    %2461 = vmatpush1.bf16.msra.mxu0 0
    %2462 = vmatprep.subr.bf16.mxu0 0
    %2463 = vmatpush1.bf16.msra.mxu0 0
    %2464 = vmatprep.subr.bf16.mxu0 0
    %2465 = vmatpush1.bf16.msra.mxu0 0
    %2466 = vmatprep.subr.bf16.mxu0 0
    %2467 = vmatpush1.bf16.msra.mxu0 %v2450
    %2468 = vmatprep.subr.bf16.mxu0 0
    %2469 = vmatpush2.bf16.msra.mxu0 0
    %2470 = vmatprep.subr.bf16.mxu0 0
    %2471 = vmatpush2.bf16.msra.mxu0 0
    %2472 = vmatprep.subr.bf16.mxu0 0
    %2473 = vmatpush2.bf16.msra.mxu0 0
    %2474 = vmatprep.subr.bf16.mxu0 0
    %2475 = vmatpush2.bf16.msra.mxu0 0
    %2476 = vmatprep.subr.bf16.mxu0 0
    %2477 = vmatpush2.bf16.msra.mxu0 0
    %2478 = vmatprep.subr.bf16.mxu0 0
    %2479 = vmatpush2.bf16.msra.mxu0 0
    %2480 = vmatprep.subr.bf16.mxu0 0
    %2481 = vmatpush2.bf16.msra.mxu0 0
    %2482 = vmatprep.subr.bf16.mxu0 0
    %2483 = vmatpush2.bf16.msra.mxu0 0
    %2484 = vmatprep.mubr.bf16.mxu0 0
    %2485 = vmatmul.mubr.bf16.gmra.mxu0 %v2444
    %v2486 = vpop.f32.mrf.mxu0
    %v2487 = vadd.f32 0.0, %v2486
    %v2488 = vpop.f32.mrf.mxu0
    %v2489 = vpop.f32.mrf.mxu0
    %v2490 = vadd.f32 0.0, %v2489
    %v2491 = vpop.f32.mrf.mxu0
    %2492 = vmatprep.mubr.bf16.mxu0 0
    %2493 = vmatmul.mubr.bf16.gmra.mxu0 %v2447
    %v2494 = vpop.f32.mrf.mxu0
    %v2495 = vadd.f32 0.0, %v2494
    %v2496 = vpop.f32.mrf.mxu0
    %v2497 = vpop.f32.mrf.mxu0
    %v2498 = vadd.f32 0.0, %v2497
    %v2499 = vpop.f32.mrf.mxu0
    %2500 = vdwg.mxu0
    %v2502 = vsel %vm233, %v2189, 0
    %v2505 = vsel %vm233, %v2190, 0
    %v2508 = vsel %vm739, %v1935, 0
    %2510 = vmatprep.subr.bf16.mxu0 0
    %2511 = vmatpush1.bf16.msra.mxu0 0
    %2512 = vmatprep.subr.bf16.mxu0 0
    %2513 = vmatpush1.bf16.msra.mxu0 0
    %2514 = vmatprep.subr.bf16.mxu0 0
    %2515 = vmatpush1.bf16.msra.mxu0 0
    %2516 = vmatprep.subr.bf16.mxu0 0
    %2517 = vmatpush1.bf16.msra.mxu0 0
    %2518 = vmatprep.subr.bf16.mxu0 0
    %2519 = vmatpush1.bf16.msra.mxu0 0
    %2520 = vmatprep.subr.bf16.mxu0 0
    %2521 = vmatpush1.bf16.msra.mxu0 0
    %2522 = vmatprep.subr.bf16.mxu0 0
    %2523 = vmatpush1.bf16.msra.mxu0 0
    %2524 = vmatprep.subr.bf16.mxu0 0
    %2525 = vmatpush1.bf16.msra.mxu0 %v2508
    %2526 = vmatprep.subr.bf16.mxu0 0
    %2527 = vmatpush2.bf16.msra.mxu0 0
    %2528 = vmatprep.subr.bf16.mxu0 0
    %2529 = vmatpush2.bf16.msra.mxu0 0
    %2530 = vmatprep.subr.bf16.mxu0 0
    %2531 = vmatpush2.bf16.msra.mxu0 0
    %2532 = vmatprep.subr.bf16.mxu0 0
    %2533 = vmatpush2.bf16.msra.mxu0 0
    %2534 = vmatprep.subr.bf16.mxu0 0
    %2535 = vmatpush2.bf16.msra.mxu0 0
    %2536 = vmatprep.subr.bf16.mxu0 0
    %2537 = vmatpush2.bf16.msra.mxu0 0
    %2538 = vmatprep.subr.bf16.mxu0 0
    %2539 = vmatpush2.bf16.msra.mxu0 0
    %2540 = vmatprep.subr.bf16.mxu0 0
    %2541 = vmatpush2.bf16.msra.mxu0 0
    %2542 = vmatprep.mubr.bf16.mxu0 0
    %2543 = vmatmul.mubr.bf16.gmra.mxu0 %v2502
    %v2544 = vpop.f32.mrf.mxu0
    %v2545 = vadd.f32 %v2487, %v2544
    %v2546 = vpop.f32.mrf.mxu0
    %v2547 = vpop.f32.mrf.mxu0
    %v2548 = vadd.f32 %v2490, %v2547
    %v2549 = vpop.f32.mrf.mxu0
    %2550 = vmatprep.mubr.bf16.mxu0 0
    %2551 = vmatmul.mubr.bf16.gmra.mxu0 %v2505
    %v2552 = vpop.f32.mrf.mxu0
    %v2553 = vadd.f32 %v2495, %v2552
    %v2554 = vpop.f32.mrf.mxu0
    %v2555 = vpop.f32.mrf.mxu0
    %v2556 = vadd.f32 %v2498, %v2555
    %v2557 = vpop.f32.mrf.mxu0
    %2558 = vdwg.mxu0
    %2559 = vrot.lane.b32.xlu0 %v1939, 112
    %v2560 = vpop.permute.xlu0 %2559
    %2561 = vrot.lane.b32.xlu0 %v1939, 80
    %v2562 = vpop.permute.xlu0 %2561
    %v2564 = vsel %vm233, %v2560, 0
    %v2567 = vsel %vm233, %v2562, 0
    %2569 = vmatprep.subr.bf16.mxu0 0
    %2570 = vmatpush1.bf16.xpose.msra.mxu0 0
    %2571 = vmatprep.subr.bf16.mxu0 0
    %2572 = vmatpush1.bf16.xpose.msra.mxu0 0
    %2573 = vmatprep.subr.bf16.mxu0 0
    %2574 = vmatpush1.bf16.xpose.msra.mxu0 0
    %2575 = vmatprep.subr.bf16.mxu0 0
    %2576 = vmatpush1.bf16.xpose.msra.mxu0 0
    %2577 = vmatprep.subr.bf16.mxu0 0
    %2578 = vmatpush1.bf16.xpose.msra.mxu0 0
    %2579 = vmatprep.subr.bf16.mxu0 0
    %2580 = vmatpush1.bf16.xpose.msra.mxu0 0
    %2581 = vmatprep.subr.bf16.mxu0 0
    %2582 = vmatpush1.bf16.xpose.msra.mxu0 0
    %2583 = vmatprep.subr.bf16.mxu0 0
    %2584 = vmatpush1.bf16.xpose.msra.mxu0 %v2567
    %2585 = vmatprep.subr.bf16.mxu0 0
    %2586 = vmatpush2.bf16.xpose.msra.mxu0 0
    %2587 = vmatprep.subr.bf16.mxu0 0
    %2588 = vmatpush2.bf16.xpose.msra.mxu0 0
    %2589 = vmatprep.subr.bf16.mxu0 0
    %2590 = vmatpush2.bf16.xpose.msra.mxu0 0
    %2591 = vmatprep.subr.bf16.mxu0 0
    %2592 = vmatpush2.bf16.xpose.msra.mxu0 0
    %2593 = vmatprep.subr.bf16.mxu0 0
    %2594 = vmatpush2.bf16.xpose.msra.mxu0 0
    %2595 = vmatprep.subr.bf16.mxu0 0
    %2596 = vmatpush2.bf16.xpose.msra.mxu0 0
    %2597 = vmatprep.subr.bf16.mxu0 0
    %2598 = vmatpush2.bf16.xpose.msra.mxu0 0
    %2599 = vmatprep.subr.bf16.mxu0 0
    %2600 = vmatpush2.bf16.xpose.msra.mxu0 0
    %2601 = vmatprep.mubr.bf16.mxu0 0
    %2602 = vmatmul.mubr.bf16.gmra.mxu0 %v2564
    %v2603 = vpop.f32.mrf.mxu0
    %v2604 = vadd.f32 0.0, %v2603
    %v2605 = vpop.f32.mrf.mxu0
    %v2606 = vpop.f32.mrf.mxu0
    %v2607 = vadd.f32 0.0, %v2606
    %v2608 = vpop.f32.mrf.mxu0
    %2609 = vdwg.mxu0
    %2610 = vrot.lane.b32.xlu0 %v1940, 112
    %v2611 = vpop.permute.xlu0 %2610
    %2612 = vrot.lane.b32.xlu0 %v1940, 80
    %v2613 = vpop.permute.xlu0 %2612
    %v2615 = vsel %vm233, %v2611, 0
    %v2618 = vsel %vm233, %v2613, 0
    %2620 = vmatprep.subr.bf16.mxu0 0
    %2621 = vmatpush1.bf16.xpose.msra.mxu0 0
    %2622 = vmatprep.subr.bf16.mxu0 0
    %2623 = vmatpush1.bf16.xpose.msra.mxu0 0
    %2624 = vmatprep.subr.bf16.mxu0 0
    %2625 = vmatpush1.bf16.xpose.msra.mxu0 0
    %2626 = vmatprep.subr.bf16.mxu0 0
    %2627 = vmatpush1.bf16.xpose.msra.mxu0 0
    %2628 = vmatprep.subr.bf16.mxu0 0
    %2629 = vmatpush1.bf16.xpose.msra.mxu0 0
    %2630 = vmatprep.subr.bf16.mxu0 0
    %2631 = vmatpush1.bf16.xpose.msra.mxu0 0
    %2632 = vmatprep.subr.bf16.mxu0 0
    %2633 = vmatpush1.bf16.xpose.msra.mxu0 0
    %2634 = vmatprep.subr.bf16.mxu0 0
    %2635 = vmatpush1.bf16.xpose.msra.mxu0 %v2618
    %2636 = vmatprep.subr.bf16.mxu0 0
    %2637 = vmatpush2.bf16.xpose.msra.mxu0 0
    %2638 = vmatprep.subr.bf16.mxu0 0
    %2639 = vmatpush2.bf16.xpose.msra.mxu0 0
    %2640 = vmatprep.subr.bf16.mxu0 0
    %2641 = vmatpush2.bf16.xpose.msra.mxu0 0
    %2642 = vmatprep.subr.bf16.mxu0 0
    %2643 = vmatpush2.bf16.xpose.msra.mxu0 0
    %2644 = vmatprep.subr.bf16.mxu0 0
    %2645 = vmatpush2.bf16.xpose.msra.mxu0 0
    %2646 = vmatprep.subr.bf16.mxu0 0
    %2647 = vmatpush2.bf16.xpose.msra.mxu0 0
    %2648 = vmatprep.subr.bf16.mxu0 0
    %2649 = vmatpush2.bf16.xpose.msra.mxu0 0
    %2650 = vmatprep.subr.bf16.mxu0 0
    %2651 = vmatpush2.bf16.xpose.msra.mxu0 0
    %2652 = vmatprep.mubr.bf16.mxu0 0
    %2653 = vmatmul.mubr.bf16.gmra.mxu0 %v2615
    %v2654 = vpop.f32.mrf.mxu0
    %v2655 = vadd.f32 0.0, %v2654
    %v2656 = vpop.f32.mrf.mxu0
    %v2657 = vpop.f32.mrf.mxu0
    %v2658 = vadd.f32 0.0, %v2657
    %v2659 = vpop.f32.mrf.mxu0
    %2660 = vdwg.mxu0
    %v2661 = vmul.f32 %v2604, 0.35355338
    %v2662 = vmul.f32 %v2607, 0.35355338
    %v2663 = vmul.f32 %v2655, 0.35355338
    %v2664 = vmul.f32 %v2658, 0.35355338
    %v2665 = vadd.f32 %v2661, %v65
    %v2666 = vadd.f32 %v2662, %v66
    %v2667 = vadd.f32 %v2663, %v65
    %v2668 = vadd.f32 %v2664, %v66
    %v2669 = vsel %vm81, %v2665, -inf
    %2670 = vmax.xlane.f32.xlu0 %v2669
    %v2671 = vpop.xlane.xlu0 %2670
    %v2672 = vsel %vm81, %v2666, -inf
    %2673 = vmax.xlane.f32.xlu0 %v2672
    %v2674 = vpop.xlane.xlu0 %2673
    %v2675 = vsel %vm81, %v2667, -inf
    %2676 = vmax.xlane.f32.xlu0 %v2675
    %v2677 = vpop.xlane.xlu0 %2676
    %v2678 = vsel %vm81, %v2668, -inf
    %2679 = vmax.xlane.f32.xlu0 %v2678
    %v2680 = vpop.xlane.xlu0 %2679
    %v2681 = vsub.f32 %v2665, %v2671
    %v2682 = vsub.f32 %v2666, %v2674
    %v2683 = vsub.f32 %v2667, %v2677
    %v2684 = vsub.f32 %v2668, %v2680
    %v2685 = vmul.f32 %v2681, 1.442695
    %v2686 = vpow.pop %v2685
    %v2687 = vmul.f32 %v2682, 1.442695
    %v2688 = vpow.pop %v2687
    %v2689 = vmul.f32 %v2683, 1.442695
    %v2690 = vpow.pop %v2689
    %v2691 = vmul.f32 %v2684, 1.442695
    %v2692 = vpow.pop %v2691
    %v2693 = vsel %vm81, %v2686, 0.0
    %2694 = vadd.xlane.f32.xlu0 %v2693
    %v2695 = vpop.xlane.xlu0 %2694
    %v2696 = vsel %vm81, %v2688, 0.0
    %2697 = vadd.xlane.f32.xlu0 %v2696
    %v2698 = vpop.xlane.xlu0 %2697
    %v2699 = vsel %vm81, %v2690, 0.0
    %2700 = vadd.xlane.f32.xlu0 %v2699
    %v2701 = vpop.xlane.xlu0 %2700
    %v2702 = vsel %vm81, %v2692, 0.0
    %2703 = vadd.xlane.f32.xlu0 %v2702
    %v2704 = vpop.xlane.xlu0 %2703
    %v2705 = vrcp.pop %v2695
    %v2706 = vrcp.pop %v2698
    %v2707 = vrcp.pop %v2701
    %v2708 = vrcp.pop %v2704
    %v2709 = vmul.f32 %v2686, %v2705
    %v2710 = vmul.f32 %v2688, %v2706
    %v2711 = vmul.f32 %v2690, %v2707
    %v2712 = vmul.f32 %v2692, %v2708
    %v2713 = vpack.c.bf16 %v2710, %v2709
    %v2714 = vpack.c.bf16 %v2712, %v2711
    %2715 = vrot.lane.b32.xlu0 %v1939, 48
    %v2716 = vpop.permute.xlu0 %2715
    %v2719 = vsel %vm81, %v2713, 0
    %2721 = vmatprep.subr.bf16.mxu0 0
    %2722 = vmatpush1.bf16.msra.mxu0 0
    %2723 = vmatprep.subr.bf16.mxu0 0
    %2724 = vmatpush1.bf16.msra.mxu0 0
    %2725 = vmatprep.subr.bf16.mxu0 0
    %2726 = vmatpush1.bf16.msra.mxu0 0
    %2727 = vmatprep.subr.bf16.mxu0 0
    %2728 = vmatpush1.bf16.msra.mxu0 0
    %2729 = vmatprep.subr.bf16.mxu0 0
    %2730 = vmatpush1.bf16.msra.mxu0 0
    %2731 = vmatprep.subr.bf16.mxu0 0
    %2732 = vmatpush1.bf16.msra.mxu0 0
    %2733 = vmatprep.subr.bf16.mxu0 0
    %2734 = vmatpush1.bf16.msra.mxu0 0
    %2735 = vmatprep.subr.bf16.mxu0 0
    %2736 = vmatpush1.bf16.msra.mxu0 %v2716
    %2737 = vmatprep.subr.bf16.mxu0 0
    %2738 = vmatpush2.bf16.msra.mxu0 0
    %2739 = vmatprep.subr.bf16.mxu0 0
    %2740 = vmatpush2.bf16.msra.mxu0 0
    %2741 = vmatprep.subr.bf16.mxu0 0
    %2742 = vmatpush2.bf16.msra.mxu0 0
    %2743 = vmatprep.subr.bf16.mxu0 0
    %2744 = vmatpush2.bf16.msra.mxu0 0
    %2745 = vmatprep.subr.bf16.mxu0 0
    %2746 = vmatpush2.bf16.msra.mxu0 0
    %2747 = vmatprep.subr.bf16.mxu0 0
    %2748 = vmatpush2.bf16.msra.mxu0 0
    %2749 = vmatprep.subr.bf16.mxu0 0
    %2750 = vmatpush2.bf16.msra.mxu0 0
    %2751 = vmatprep.subr.bf16.mxu0 0
    %2752 = vmatpush2.bf16.msra.mxu0 0
    %2753 = vmatprep.mubr.bf16.mxu0 0
    %2754 = vmatmul.mubr.bf16.gmra.mxu0 %v2719
    %v2755 = vpop.f32.mrf.mxu0
    %v2756 = vadd.f32 0.0, %v2755
    %v2757 = vpop.f32.mrf.mxu0
    %v2758 = vpop.f32.mrf.mxu0
    %v2759 = vadd.f32 0.0, %v2758
    %v2760 = vpop.f32.mrf.mxu0
    %2761 = vdwg.mxu0
    %2762 = vrot.lane.b32.xlu0 %v1940, 48
    %v2763 = vpop.permute.xlu0 %2762
    %v2766 = vsel %vm81, %v2714, 0
    %2768 = vmatprep.subr.bf16.mxu0 0
    %2769 = vmatpush1.bf16.msra.mxu0 0
    %2770 = vmatprep.subr.bf16.mxu0 0
    %2771 = vmatpush1.bf16.msra.mxu0 0
    %2772 = vmatprep.subr.bf16.mxu0 0
    %2773 = vmatpush1.bf16.msra.mxu0 0
    %2774 = vmatprep.subr.bf16.mxu0 0
    %2775 = vmatpush1.bf16.msra.mxu0 0
    %2776 = vmatprep.subr.bf16.mxu0 0
    %2777 = vmatpush1.bf16.msra.mxu0 0
    %2778 = vmatprep.subr.bf16.mxu0 0
    %2779 = vmatpush1.bf16.msra.mxu0 0
    %2780 = vmatprep.subr.bf16.mxu0 0
    %2781 = vmatpush1.bf16.msra.mxu0 0
    %2782 = vmatprep.subr.bf16.mxu0 0
    %2783 = vmatpush1.bf16.msra.mxu0 %v2763
    %2784 = vmatprep.subr.bf16.mxu0 0
    %2785 = vmatpush2.bf16.msra.mxu0 0
    %2786 = vmatprep.subr.bf16.mxu0 0
    %2787 = vmatpush2.bf16.msra.mxu0 0
    %2788 = vmatprep.subr.bf16.mxu0 0
    %2789 = vmatpush2.bf16.msra.mxu0 0
    %2790 = vmatprep.subr.bf16.mxu0 0
    %2791 = vmatpush2.bf16.msra.mxu0 0
    %2792 = vmatprep.subr.bf16.mxu0 0
    %2793 = vmatpush2.bf16.msra.mxu0 0
    %2794 = vmatprep.subr.bf16.mxu0 0
    %2795 = vmatpush2.bf16.msra.mxu0 0
    %2796 = vmatprep.subr.bf16.mxu0 0
    %2797 = vmatpush2.bf16.msra.mxu0 0
    %2798 = vmatprep.subr.bf16.mxu0 0
    %2799 = vmatpush2.bf16.msra.mxu0 0
    %2800 = vmatprep.mubr.bf16.mxu0 0
    %2801 = vmatmul.mubr.bf16.gmra.mxu0 %v2766
    %v2802 = vpop.f32.mrf.mxu0
    %v2803 = vadd.f32 0.0, %v2802
    %v2804 = vpop.f32.mrf.mxu0
    %v2805 = vpop.f32.mrf.mxu0
    %v2806 = vadd.f32 0.0, %v2805
    %v2807 = vpop.f32.mrf.mxu0
    %2808 = vdwg.mxu0
    %v2809 = vpack.c.bf16 %v2759, %v2756
    %v2810 = vpack.c.bf16 %v2806, %v2803
    %v2812 = vsel %vm233, %v2809, 0
    %v2815 = vsel %vm233, %v2810, 0
    %v2818 = vsel %vm739, %v1937, 0
    %2820 = vmatprep.subr.bf16.mxu0 0
    %2821 = vmatpush1.bf16.msra.mxu0 0
    %2822 = vmatprep.subr.bf16.mxu0 0
    %2823 = vmatpush1.bf16.msra.mxu0 0
    %2824 = vmatprep.subr.bf16.mxu0 0
    %2825 = vmatpush1.bf16.msra.mxu0 0
    %2826 = vmatprep.subr.bf16.mxu0 0
    %2827 = vmatpush1.bf16.msra.mxu0 0
    %2828 = vmatprep.subr.bf16.mxu0 0
    %2829 = vmatpush1.bf16.msra.mxu0 0
    %2830 = vmatprep.subr.bf16.mxu0 0
    %2831 = vmatpush1.bf16.msra.mxu0 0
    %2832 = vmatprep.subr.bf16.mxu0 0
    %2833 = vmatpush1.bf16.msra.mxu0 0
    %2834 = vmatprep.subr.bf16.mxu0 0
    %2835 = vmatpush1.bf16.msra.mxu0 %v2818
    %2836 = vmatprep.subr.bf16.mxu0 0
    %2837 = vmatpush2.bf16.msra.mxu0 0
    %2838 = vmatprep.subr.bf16.mxu0 0
    %2839 = vmatpush2.bf16.msra.mxu0 0
    %2840 = vmatprep.subr.bf16.mxu0 0
    %2841 = vmatpush2.bf16.msra.mxu0 0
    %2842 = vmatprep.subr.bf16.mxu0 0
    %2843 = vmatpush2.bf16.msra.mxu0 0
    %2844 = vmatprep.subr.bf16.mxu0 0
    %2845 = vmatpush2.bf16.msra.mxu0 0
    %2846 = vmatprep.subr.bf16.mxu0 0
    %2847 = vmatpush2.bf16.msra.mxu0 0
    %2848 = vmatprep.subr.bf16.mxu0 0
    %2849 = vmatpush2.bf16.msra.mxu0 0
    %2850 = vmatprep.subr.bf16.mxu0 0
    %2851 = vmatpush2.bf16.msra.mxu0 0
    %2852 = vmatprep.mubr.bf16.mxu0 0
    %2853 = vmatmul.mubr.bf16.gmra.mxu0 %v2812
    %v2854 = vpop.f32.mrf.mxu0
    %v2855 = vadd.f32 0.0, %v2854
    %v2856 = vpop.f32.mrf.mxu0
    %v2857 = vpop.f32.mrf.mxu0
    %v2858 = vadd.f32 0.0, %v2857
    %v2859 = vpop.f32.mrf.mxu0
    %2860 = vmatprep.mubr.bf16.mxu0 0
    %2861 = vmatmul.mubr.bf16.gmra.mxu0 %v2815
    %v2862 = vpop.f32.mrf.mxu0
    %v2863 = vadd.f32 0.0, %v2862
    %v2864 = vpop.f32.mrf.mxu0
    %v2865 = vpop.f32.mrf.mxu0
    %v2866 = vadd.f32 0.0, %v2865
    %v2867 = vpop.f32.mrf.mxu0
    %2868 = vdwg.mxu0
    %v2869 = vadd.f32 %v2545, %v2855
    %v2870 = vadd.f32 %v2548, %v2858
    %v2871 = vadd.f32 %v2553, %v2863
    %v2872 = vadd.f32 %v2556, %v2866
    %2873 = vrot.lane.b32.xlu0 %v1939, 104
    %v2874 = vpop.permute.xlu0 %2873
    %2875 = vrot.lane.b32.xlu0 %v1939, 72
    %v2876 = vpop.permute.xlu0 %2875
    %v2878 = vsel %vm233, %v2874, 0
    %v2881 = vsel %vm233, %v2876, 0
    %2883 = vmatprep.subr.bf16.mxu0 0
    %2884 = vmatpush1.bf16.xpose.msra.mxu0 0
    %2885 = vmatprep.subr.bf16.mxu0 0
    %2886 = vmatpush1.bf16.xpose.msra.mxu0 0
    %2887 = vmatprep.subr.bf16.mxu0 0
    %2888 = vmatpush1.bf16.xpose.msra.mxu0 0
    %2889 = vmatprep.subr.bf16.mxu0 0
    %2890 = vmatpush1.bf16.xpose.msra.mxu0 0
    %2891 = vmatprep.subr.bf16.mxu0 0
    %2892 = vmatpush1.bf16.xpose.msra.mxu0 0
    %2893 = vmatprep.subr.bf16.mxu0 0
    %2894 = vmatpush1.bf16.xpose.msra.mxu0 0
    %2895 = vmatprep.subr.bf16.mxu0 0
    %2896 = vmatpush1.bf16.xpose.msra.mxu0 0
    %2897 = vmatprep.subr.bf16.mxu0 0
    %2898 = vmatpush1.bf16.xpose.msra.mxu0 %v2881
    %2899 = vmatprep.subr.bf16.mxu0 0
    %2900 = vmatpush2.bf16.xpose.msra.mxu0 0
    %2901 = vmatprep.subr.bf16.mxu0 0
    %2902 = vmatpush2.bf16.xpose.msra.mxu0 0
    %2903 = vmatprep.subr.bf16.mxu0 0
    %2904 = vmatpush2.bf16.xpose.msra.mxu0 0
    %2905 = vmatprep.subr.bf16.mxu0 0
    %2906 = vmatpush2.bf16.xpose.msra.mxu0 0
    %2907 = vmatprep.subr.bf16.mxu0 0
    %2908 = vmatpush2.bf16.xpose.msra.mxu0 0
    %2909 = vmatprep.subr.bf16.mxu0 0
    %2910 = vmatpush2.bf16.xpose.msra.mxu0 0
    %2911 = vmatprep.subr.bf16.mxu0 0
    %2912 = vmatpush2.bf16.xpose.msra.mxu0 0
    %2913 = vmatprep.subr.bf16.mxu0 0
    %2914 = vmatpush2.bf16.xpose.msra.mxu0 0
    %2915 = vmatprep.mubr.bf16.mxu0 0
    %2916 = vmatmul.mubr.bf16.gmra.mxu0 %v2878
    %v2917 = vpop.f32.mrf.mxu0
    %v2918 = vadd.f32 0.0, %v2917
    %v2919 = vpop.f32.mrf.mxu0
    %v2920 = vpop.f32.mrf.mxu0
    %v2921 = vadd.f32 0.0, %v2920
    %v2922 = vpop.f32.mrf.mxu0
    %2923 = vdwg.mxu0
    %2924 = vrot.lane.b32.xlu0 %v1940, 104
    %v2925 = vpop.permute.xlu0 %2924
    %2926 = vrot.lane.b32.xlu0 %v1940, 72
    %v2927 = vpop.permute.xlu0 %2926
    %v2929 = vsel %vm233, %v2925, 0
    %v2932 = vsel %vm233, %v2927, 0
    %2934 = vmatprep.subr.bf16.mxu0 0
    %2935 = vmatpush1.bf16.xpose.msra.mxu0 0
    %2936 = vmatprep.subr.bf16.mxu0 0
    %2937 = vmatpush1.bf16.xpose.msra.mxu0 0
    %2938 = vmatprep.subr.bf16.mxu0 0
    %2939 = vmatpush1.bf16.xpose.msra.mxu0 0
    %2940 = vmatprep.subr.bf16.mxu0 0
    %2941 = vmatpush1.bf16.xpose.msra.mxu0 0
    %2942 = vmatprep.subr.bf16.mxu0 0
    %2943 = vmatpush1.bf16.xpose.msra.mxu0 0
    %2944 = vmatprep.subr.bf16.mxu0 0
    %2945 = vmatpush1.bf16.xpose.msra.mxu0 0
    %2946 = vmatprep.subr.bf16.mxu0 0
    %2947 = vmatpush1.bf16.xpose.msra.mxu0 0
    %2948 = vmatprep.subr.bf16.mxu0 0
    %2949 = vmatpush1.bf16.xpose.msra.mxu0 %v2932
    %2950 = vmatprep.subr.bf16.mxu0 0
    %2951 = vmatpush2.bf16.xpose.msra.mxu0 0
    %2952 = vmatprep.subr.bf16.mxu0 0
    %2953 = vmatpush2.bf16.xpose.msra.mxu0 0
    %2954 = vmatprep.subr.bf16.mxu0 0
    %2955 = vmatpush2.bf16.xpose.msra.mxu0 0
    %2956 = vmatprep.subr.bf16.mxu0 0
    %2957 = vmatpush2.bf16.xpose.msra.mxu0 0
    %2958 = vmatprep.subr.bf16.mxu0 0
    %2959 = vmatpush2.bf16.xpose.msra.mxu0 0
    %2960 = vmatprep.subr.bf16.mxu0 0
    %2961 = vmatpush2.bf16.xpose.msra.mxu0 0
    %2962 = vmatprep.subr.bf16.mxu0 0
    %2963 = vmatpush2.bf16.xpose.msra.mxu0 0
    %2964 = vmatprep.subr.bf16.mxu0 0
    %2965 = vmatpush2.bf16.xpose.msra.mxu0 0
    %2966 = vmatprep.mubr.bf16.mxu0 0
    %2967 = vmatmul.mubr.bf16.gmra.mxu0 %v2929
    %v2968 = vpop.f32.mrf.mxu0
    %v2969 = vadd.f32 0.0, %v2968
    %v2970 = vpop.f32.mrf.mxu0
    %v2971 = vpop.f32.mrf.mxu0
    %v2972 = vadd.f32 0.0, %v2971
    %v2973 = vpop.f32.mrf.mxu0
    %2974 = vdwg.mxu0
    %v2975 = vmul.f32 %v2918, 0.35355338
    %v2976 = vmul.f32 %v2921, 0.35355338
    %v2977 = vmul.f32 %v2969, 0.35355338
    %v2978 = vmul.f32 %v2972, 0.35355338
    %v2979 = vadd.f32 %v2975, %v65
    %v2980 = vadd.f32 %v2976, %v66
    %v2981 = vadd.f32 %v2977, %v65
    %v2982 = vadd.f32 %v2978, %v66
    %v2983 = vsel %vm81, %v2979, -inf
    %2984 = vmax.xlane.f32.xlu0 %v2983
    %v2985 = vpop.xlane.xlu0 %2984
    %v2986 = vsel %vm81, %v2980, -inf
    %2987 = vmax.xlane.f32.xlu0 %v2986
    %v2988 = vpop.xlane.xlu0 %2987
    %v2989 = vsel %vm81, %v2981, -inf
    %2990 = vmax.xlane.f32.xlu0 %v2989
    %v2991 = vpop.xlane.xlu0 %2990
    %v2992 = vsel %vm81, %v2982, -inf
    %2993 = vmax.xlane.f32.xlu0 %v2992
    %v2994 = vpop.xlane.xlu0 %2993
    %v2995 = vsub.f32 %v2979, %v2985
    %v2996 = vsub.f32 %v2980, %v2988
    %v2997 = vsub.f32 %v2981, %v2991
    %v2998 = vsub.f32 %v2982, %v2994
    %v2999 = vmul.f32 %v2995, 1.442695
    %v3000 = vpow.pop %v2999
    %v3001 = vmul.f32 %v2996, 1.442695
    %v3002 = vpow.pop %v3001
    %v3003 = vmul.f32 %v2997, 1.442695
    %v3004 = vpow.pop %v3003
    %v3005 = vmul.f32 %v2998, 1.442695
    %v3006 = vpow.pop %v3005
    %v3007 = vsel %vm81, %v3000, 0.0
    %3008 = vadd.xlane.f32.xlu0 %v3007
    %v3009 = vpop.xlane.xlu0 %3008
    %v3010 = vsel %vm81, %v3002, 0.0
    %3011 = vadd.xlane.f32.xlu0 %v3010
    %v3012 = vpop.xlane.xlu0 %3011
    %v3013 = vsel %vm81, %v3004, 0.0
    %3014 = vadd.xlane.f32.xlu0 %v3013
    %v3015 = vpop.xlane.xlu0 %3014
    %v3016 = vsel %vm81, %v3006, 0.0
    %3017 = vadd.xlane.f32.xlu0 %v3016
    %v3018 = vpop.xlane.xlu0 %3017
    %v3019 = vrcp.pop %v3009
    %v3020 = vrcp.pop %v3012
    %v3021 = vrcp.pop %v3015
    %v3022 = vrcp.pop %v3018
    %v3023 = vmul.f32 %v3000, %v3019
    %v3024 = vmul.f32 %v3002, %v3020
    %v3025 = vmul.f32 %v3004, %v3021
    %v3026 = vmul.f32 %v3006, %v3022
    %v3027 = vpack.c.bf16 %v3024, %v3023
    %v3028 = vpack.c.bf16 %v3026, %v3025
    %3029 = vrot.lane.b32.xlu0 %v1939, 40
    %v3030 = vpop.permute.xlu0 %3029
    %v3033 = vsel %vm81, %v3027, 0
    %3035 = vmatprep.subr.bf16.mxu0 0
    %3036 = vmatpush1.bf16.msra.mxu0 0
    %3037 = vmatprep.subr.bf16.mxu0 0
    %3038 = vmatpush1.bf16.msra.mxu0 0
    %3039 = vmatprep.subr.bf16.mxu0 0
    %3040 = vmatpush1.bf16.msra.mxu0 0
    %3041 = vmatprep.subr.bf16.mxu0 0
    %3042 = vmatpush1.bf16.msra.mxu0 0
    %3043 = vmatprep.subr.bf16.mxu0 0
    %3044 = vmatpush1.bf16.msra.mxu0 0
    %3045 = vmatprep.subr.bf16.mxu0 0
    %3046 = vmatpush1.bf16.msra.mxu0 0
    %3047 = vmatprep.subr.bf16.mxu0 0
    %3048 = vmatpush1.bf16.msra.mxu0 0
    %3049 = vmatprep.subr.bf16.mxu0 0
    %3050 = vmatpush1.bf16.msra.mxu0 %v3030
    %3051 = vmatprep.subr.bf16.mxu0 0
    %3052 = vmatpush2.bf16.msra.mxu0 0
    %3053 = vmatprep.subr.bf16.mxu0 0
    %3054 = vmatpush2.bf16.msra.mxu0 0
    %3055 = vmatprep.subr.bf16.mxu0 0
    %3056 = vmatpush2.bf16.msra.mxu0 0
    %3057 = vmatprep.subr.bf16.mxu0 0
    %3058 = vmatpush2.bf16.msra.mxu0 0
    %3059 = vmatprep.subr.bf16.mxu0 0
    %3060 = vmatpush2.bf16.msra.mxu0 0
    %3061 = vmatprep.subr.bf16.mxu0 0
    %3062 = vmatpush2.bf16.msra.mxu0 0
    %3063 = vmatprep.subr.bf16.mxu0 0
    %3064 = vmatpush2.bf16.msra.mxu0 0
    %3065 = vmatprep.subr.bf16.mxu0 0
    %3066 = vmatpush2.bf16.msra.mxu0 0
    %3067 = vmatprep.mubr.bf16.mxu0 0
    %3068 = vmatmul.mubr.bf16.gmra.mxu0 %v3033
    %v3069 = vpop.f32.mrf.mxu0
    %v3070 = vadd.f32 0.0, %v3069
    %v3071 = vpop.f32.mrf.mxu0
    %v3072 = vpop.f32.mrf.mxu0
    %v3073 = vadd.f32 0.0, %v3072
    %v3074 = vpop.f32.mrf.mxu0
    %3075 = vdwg.mxu0
    %3076 = vrot.lane.b32.xlu0 %v1940, 40
    %v3077 = vpop.permute.xlu0 %3076
    %v3080 = vsel %vm81, %v3028, 0
    %3082 = vmatprep.subr.bf16.mxu0 0
    %3083 = vmatpush1.bf16.msra.mxu0 0
    %3084 = vmatprep.subr.bf16.mxu0 0
    %3085 = vmatpush1.bf16.msra.mxu0 0
    %3086 = vmatprep.subr.bf16.mxu0 0
    %3087 = vmatpush1.bf16.msra.mxu0 0
    %3088 = vmatprep.subr.bf16.mxu0 0
    %3089 = vmatpush1.bf16.msra.mxu0 0
    %3090 = vmatprep.subr.bf16.mxu0 0
    %3091 = vmatpush1.bf16.msra.mxu0 0
    %3092 = vmatprep.subr.bf16.mxu0 0
    %3093 = vmatpush1.bf16.msra.mxu0 0
    %3094 = vmatprep.subr.bf16.mxu0 0
    %3095 = vmatpush1.bf16.msra.mxu0 0
    %3096 = vmatprep.subr.bf16.mxu0 0
    %3097 = vmatpush1.bf16.msra.mxu0 %v3077
    %3098 = vmatprep.subr.bf16.mxu0 0
    %3099 = vmatpush2.bf16.msra.mxu0 0
    %3100 = vmatprep.subr.bf16.mxu0 0
    %3101 = vmatpush2.bf16.msra.mxu0 0
    %3102 = vmatprep.subr.bf16.mxu0 0
    %3103 = vmatpush2.bf16.msra.mxu0 0
    %3104 = vmatprep.subr.bf16.mxu0 0
    %3105 = vmatpush2.bf16.msra.mxu0 0
    %3106 = vmatprep.subr.bf16.mxu0 0
    %3107 = vmatpush2.bf16.msra.mxu0 0
    %3108 = vmatprep.subr.bf16.mxu0 0
    %3109 = vmatpush2.bf16.msra.mxu0 0
    %3110 = vmatprep.subr.bf16.mxu0 0
    %3111 = vmatpush2.bf16.msra.mxu0 0
    %3112 = vmatprep.subr.bf16.mxu0 0
    %3113 = vmatpush2.bf16.msra.mxu0 0
    %3114 = vmatprep.mubr.bf16.mxu0 0
    %3115 = vmatmul.mubr.bf16.gmra.mxu0 %v3080
    %v3116 = vpop.f32.mrf.mxu0
    %v3117 = vadd.f32 0.0, %v3116
    %v3118 = vpop.f32.mrf.mxu0
    %v3119 = vpop.f32.mrf.mxu0
    %v3120 = vadd.f32 0.0, %v3119
    %v3121 = vpop.f32.mrf.mxu0
    %3122 = vdwg.mxu0
    %v3123 = vpack.c.bf16 %v3073, %v3070
    %v3124 = vpack.c.bf16 %v3120, %v3117
    %v3126 = vsel %vm233, %v3123, 0
    %v3129 = vsel %vm233, %v3124, 0
    %v3132 = vsel %vm739, %v1938, 0
    %3134 = vmatprep.subr.bf16.mxu0 0
    %3135 = vmatpush1.bf16.msra.mxu0 0
    %3136 = vmatprep.subr.bf16.mxu0 0
    %3137 = vmatpush1.bf16.msra.mxu0 0
    %3138 = vmatprep.subr.bf16.mxu0 0
    %3139 = vmatpush1.bf16.msra.mxu0 0
    %3140 = vmatprep.subr.bf16.mxu0 0
    %3141 = vmatpush1.bf16.msra.mxu0 0
    %3142 = vmatprep.subr.bf16.mxu0 0
    %3143 = vmatpush1.bf16.msra.mxu0 0
    %3144 = vmatprep.subr.bf16.mxu0 0
    %3145 = vmatpush1.bf16.msra.mxu0 0
    %3146 = vmatprep.subr.bf16.mxu0 0
    %3147 = vmatpush1.bf16.msra.mxu0 0
    %3148 = vmatprep.subr.bf16.mxu0 0
    %3149 = vmatpush1.bf16.msra.mxu0 %v3132
    %3150 = vmatprep.subr.bf16.mxu0 0
    %3151 = vmatpush2.bf16.msra.mxu0 0
    %3152 = vmatprep.subr.bf16.mxu0 0
    %3153 = vmatpush2.bf16.msra.mxu0 0
    %3154 = vmatprep.subr.bf16.mxu0 0
    %3155 = vmatpush2.bf16.msra.mxu0 0
    %3156 = vmatprep.subr.bf16.mxu0 0
    %3157 = vmatpush2.bf16.msra.mxu0 0
    %3158 = vmatprep.subr.bf16.mxu0 0
    %3159 = vmatpush2.bf16.msra.mxu0 0
    %3160 = vmatprep.subr.bf16.mxu0 0
    %3161 = vmatpush2.bf16.msra.mxu0 0
    %3162 = vmatprep.subr.bf16.mxu0 0
    %3163 = vmatpush2.bf16.msra.mxu0 0
    %3164 = vmatprep.subr.bf16.mxu0 0
    %3165 = vmatpush2.bf16.msra.mxu0 0
    %3166 = vmatprep.mubr.bf16.mxu0 0
    %3167 = vmatmul.mubr.bf16.gmra.mxu0 %v3126
    %v3168 = vpop.f32.mrf.mxu0
    %v3169 = vadd.f32 0.0, %v3168
    %v3170 = vpop.f32.mrf.mxu0
    %v3171 = vpop.f32.mrf.mxu0
    %v3172 = vadd.f32 0.0, %v3171
    %v3173 = vpop.f32.mrf.mxu0
    %3174 = vmatprep.mubr.bf16.mxu0 0
    %3175 = vmatmul.mubr.bf16.gmra.mxu0 %v3129
    %v3176 = vpop.f32.mrf.mxu0
    %v3177 = vadd.f32 0.0, %v3176
    %v3178 = vpop.f32.mrf.mxu0
    %v3179 = vpop.f32.mrf.mxu0
    %v3180 = vadd.f32 0.0, %v3179
    %v3181 = vpop.f32.mrf.mxu0
    %3182 = vdwg.mxu0
    %v3183 = vadd.f32 %v2869, %v3169
    %v3184 = vadd.f32 %v2870, %v3172
    %v3185 = vadd.f32 %v2871, %v3177
    %v3186 = vadd.f32 %v2872, %v3180
    %s3187 = scalar_lea.vmem %s6, 1
    %v3188 = vld [vmem:[%s3187] sm:$0x1]
    %v3190 = vlaneseq
    %v3191 = vshrl.u32 %v3190, 7
    %v3192 = vsub.s32 0, %v3191
    %v3193 = vrot.slane %v3188, %v3192
    %v3195 = vadd.f32 %v3183, %v3193
    %v3196 = vadd.f32 %v3184, %v3193
    %v3197 = vadd.f32 %v3185, %v3193
    %v3198 = vadd.f32 %v3186, %v3193
    %v3199 = vadd.f32 %v1848, %v3195
    %v3200 = vadd.f32 %v1849, %v3196
    %v3201 = vadd.f32 %v1850, %v3197
    %v3202 = vadd.f32 %v1851, %v3198
    %s3203 = scalar_lea.vmem %s7, 1
    %v3204 = vld [vmem:[%s3203] sm:$0x1]
    %s3205 = scalar_lea.vmem %s8, 1
    %v3206 = vld [vmem:[%s3205] sm:$0x1]
    %v3207 = vsel %vm168, %v3199, 0.0
    %3208 = vadd.xlane.f32.xlu0 %v3207
    %v3209 = vpop.xlane.xlu0 %3208
    %v3210 = vsel %vm168, %v3200, 0.0
    %3211 = vadd.xlane.f32.xlu0 %v3210
    %v3212 = vpop.xlane.xlu0 %3211
    %v3213 = vsel %vm168, %v3201, 0.0
    %3214 = vadd.xlane.f32.xlu0 %v3213
    %v3215 = vpop.xlane.xlu0 %3214
    %v3216 = vsel %vm168, %v3202, 0.0
    %3217 = vadd.xlane.f32.xlu0 %v3216
    %v3218 = vpop.xlane.xlu0 %3217
    %v3219 = vmul.f32 %v3209, %v1507
    %v3220 = vmul.f32 %v3212, %v1507
    %v3221 = vmul.f32 %v3215, %v1507
    %v3222 = vmul.f32 %v3218, %v1507
    %v3223 = vsub.f32 %v3199, %v3219
    %v3224 = vsub.f32 %v3200, %v3220
    %v3225 = vsub.f32 %v3201, %v3221
    %v3226 = vsub.f32 %v3202, %v3222
    %v3227 = vmul.f32 %v3223, %v3223
    %v3228 = vmul.f32 %v3224, %v3224
    %v3229 = vmul.f32 %v3225, %v3225
    %v3230 = vmul.f32 %v3226, %v3226
    %v3231 = vsel %vm168, %v3227, 0.0
    %3232 = vadd.xlane.f32.xlu0 %v3231
    %v3233 = vpop.xlane.xlu0 %3232
    %v3234 = vsel %vm168, %v3228, 0.0
    %3235 = vadd.xlane.f32.xlu0 %v3234
    %v3236 = vpop.xlane.xlu0 %3235
    %v3237 = vsel %vm168, %v3229, 0.0
    %3238 = vadd.xlane.f32.xlu0 %v3237
    %v3239 = vpop.xlane.xlu0 %3238
    %v3240 = vsel %vm168, %v3230, 0.0
    %3241 = vadd.xlane.f32.xlu0 %v3240
    %v3242 = vpop.xlane.xlu0 %3241
    %v3243 = vmul.f32 %v3233, %v1507
    %v3244 = vmul.f32 %v3236, %v1507
    %v3245 = vmul.f32 %v3239, %v1507
    %v3246 = vmul.f32 %v3242, %v1507
    %v3247 = vadd.f32 %v3243, 1e-05
    %v3248 = vadd.f32 %v3244, 1e-05
    %v3249 = vadd.f32 %v3245, 1e-05
    %v3250 = vadd.f32 %v3246, 1e-05
    %v3251 = vrsqrt.pop %v3247
    %v3252 = vrsqrt.pop %v3248
    %v3253 = vrsqrt.pop %v3249
    %v3254 = vrsqrt.pop %v3250
    %v3255 = vmul.f32 %v3223, %v3251
    %v3256 = vmul.f32 %v3224, %v3252
    %v3257 = vmul.f32 %v3225, %v3253
    %v3258 = vmul.f32 %v3226, %v3254
    %v3260 = vlaneseq
    %v3261 = vshrl.u32 %v3260, 7
    %v3262 = vsub.s32 0, %v3261
    %v3263 = vrot.slane %v3204, %v3262
    %v3265 = vmul.f32 %v3255, %v3263
    %v3266 = vmul.f32 %v3256, %v3263
    %v3267 = vmul.f32 %v3257, %v3263
    %v3268 = vmul.f32 %v3258, %v3263
    %v3270 = vlaneseq
    %v3271 = vshrl.u32 %v3270, 7
    %v3272 = vsub.s32 0, %v3271
    %v3273 = vrot.slane %v3206, %v3272
    %v3275 = vadd.f32 %v3265, %v3273
    %v3276 = vadd.f32 %v3266, %v3273
    %v3277 = vadd.f32 %v3267, %v3273
    %v3278 = vadd.f32 %v3268, %v3273
    %v3279 = vpack.c.bf16 %v3276, %v3275
    %v3280 = vpack.c.bf16 %v3278, %v3277
    %s3281 = scalar_lea.vmem %s9, 16
    %v3282 = vld [vmem:[%s3281] sm:$0xf]
    %v3283 = vld [vmem:[%s3281 + $0x4] sm:$0xf]
    %v3284 = vld [vmem:[%s3281 + $0x8] sm:$0xf]
    %v3285 = vld [vmem:[%s3281 + $0xc] sm:$0xf]
    %s3286 = scalar_lea.vmem %s10, 1
    %v3287 = vld [vmem:[%s3286] sm:$0x1]
    %v3289 = vlaneseq
    %v3290 = vshrl.u32 %v3289, 7
    %v3291 = vsub.s32 0, %v3290
    %v3292 = vrot.slane %v3287, %v3291
    %v3298 = vunpack.c.l.b16 %v3282
    %v3299 = vunpack.c.l.b16 %v3283
    %v3300 = vunpack.c.l.b16 %v3284
    %v3301 = vunpack.c.l.b16 %v3285
    %v3302 = vpack.c.b16 %v3299, %v3298
    %v3303 = vpack.c.b16 %v3301, %v3300
    %v3307 = vsel %vm168, %v3279, 0
    %v3310 = vsel %vm168, %v3280, 0
    %3312 = vmatprep.subr.bf16.mxu0 0
    %3313 = vmatpush1.bf16.msra.mxu0 0
    %3314 = vmatprep.subr.bf16.mxu0 0
    %3315 = vmatpush1.bf16.msra.mxu0 0
    %3316 = vmatprep.subr.bf16.mxu0 0
    %3317 = vmatpush1.bf16.msra.mxu0 0
    %3318 = vmatprep.subr.bf16.mxu0 0
    %3319 = vmatpush1.bf16.msra.mxu0 0
    %3320 = vmatprep.subr.bf16.mxu0 0
    %3321 = vmatpush1.bf16.msra.mxu0 0
    %3322 = vmatprep.subr.bf16.mxu0 0
    %3323 = vmatpush1.bf16.msra.mxu0 0
    %3324 = vmatprep.subr.bf16.mxu0 0
    %3325 = vmatpush1.bf16.msra.mxu0 %v3303
    %3326 = vmatprep.subr.bf16.mxu0 0
    %3327 = vmatpush1.bf16.msra.mxu0 %v3302
    %3328 = vmatprep.subr.bf16.mxu0 0
    %3329 = vmatpush2.bf16.msra.mxu0 0
    %3330 = vmatprep.subr.bf16.mxu0 0
    %3331 = vmatpush2.bf16.msra.mxu0 0
    %3332 = vmatprep.subr.bf16.mxu0 0
    %3333 = vmatpush2.bf16.msra.mxu0 0
    %3334 = vmatprep.subr.bf16.mxu0 0
    %3335 = vmatpush2.bf16.msra.mxu0 0
    %3336 = vmatprep.subr.bf16.mxu0 0
    %3337 = vmatpush2.bf16.msra.mxu0 0
    %3338 = vmatprep.subr.bf16.mxu0 0
    %3339 = vmatpush2.bf16.msra.mxu0 0
    %3340 = vmatprep.subr.bf16.mxu0 0
    %3341 = vmatpush2.bf16.msra.mxu0 0
    %3342 = vmatprep.subr.bf16.mxu0 0
    %3343 = vmatpush2.bf16.msra.mxu0 0
    %3344 = vmatprep.mubr.bf16.mxu0 0
    %3345 = vmatmul.mubr.bf16.gmra.mxu0 %v3307
    %v3346 = vpop.f32.mrf.mxu0
    %v3347 = vadd.f32 %v3292, %v3346
    %v3348 = vpop.f32.mrf.mxu0
    %v3349 = vpop.f32.mrf.mxu0
    %v3350 = vadd.f32 %v3292, %v3349
    %v3351 = vpop.f32.mrf.mxu0
    %3352 = vmatprep.mubr.bf16.mxu0 0
    %3353 = vmatmul.mubr.bf16.gmra.mxu0 %v3310
    %v3354 = vpop.f32.mrf.mxu0
    %v3355 = vadd.f32 %v3292, %v3354
    %v3356 = vpop.f32.mrf.mxu0
    %v3357 = vpop.f32.mrf.mxu0
    %v3358 = vadd.f32 %v3292, %v3357
    %v3359 = vpop.f32.mrf.mxu0
    %3360 = vdwg.mxu0
    %v3361 = vmax.f32 %v3347, 0.0
    %v3362 = vmax.f32 %v3350, 0.0
    %v3363 = vmax.f32 %v3355, 0.0
    %v3364 = vmax.f32 %v3358, 0.0
    %v3365 = vpack.c.bf16 %v3362, %v3361
    %v3366 = vpack.c.bf16 %v3364, %v3363
    %s3367 = scalar_lea.vmem %s11, 64
    %v3368 = vld [vmem:[%s3367] sm:$0xf]
    %v3369 = vld [vmem:[%s3367 + $0x4] sm:$0xf]
    %v3370 = vld [vmem:[%s3367 + $0x8] sm:$0xf]
    %v3371 = vld [vmem:[%s3367 + $0xc] sm:$0xf]
    %v3372 = vld [vmem:[%s3367 + $0x10] sm:$0xf]
    %v3373 = vld [vmem:[%s3367 + $0x14] sm:$0xf]
    %v3374 = vld [vmem:[%s3367 + $0x18] sm:$0xf]
    %v3375 = vld [vmem:[%s3367 + $0x1c] sm:$0xf]
    %v3376 = vld [vmem:[%s3367 + $0x20] sm:$0xf]
    %v3377 = vld [vmem:[%s3367 + $0x24] sm:$0xf]
    %v3378 = vld [vmem:[%s3367 + $0x28] sm:$0xf]
    %v3379 = vld [vmem:[%s3367 + $0x2c] sm:$0xf]
    %v3380 = vld [vmem:[%s3367 + $0x30] sm:$0xf]
    %v3381 = vld [vmem:[%s3367 + $0x34] sm:$0xf]
    %v3382 = vld [vmem:[%s3367 + $0x38] sm:$0xf]
    %v3383 = vld [vmem:[%s3367 + $0x3c] sm:$0xf]
    %s3384 = scalar_lea.vmem %s12, 1
    %v3385 = vld [vmem:[%s3384] sm:$0x1]
    %v3387 = vlaneseq
    %v3388 = vshrl.u32 %v3387, 7
    %v3389 = vsub.s32 0, %v3388
    %v3390 = vrot.slane %v3385, %v3389
    %v3408 = vunpack.c.l.b16 %v3368
    %v3409 = vunpack.c.l.b16 %v3369
    %v3410 = vunpack.c.l.b16 %v3370
    %v3411 = vunpack.c.l.b16 %v3371
    %v3412 = vunpack.c.l.b16 %v3372
    %v3413 = vunpack.c.l.b16 %v3373
    %v3414 = vunpack.c.l.b16 %v3374
    %v3415 = vunpack.c.l.b16 %v3375
    %v3416 = vunpack.c.l.b16 %v3376
    %v3417 = vunpack.c.l.b16 %v3377
    %v3418 = vunpack.c.l.b16 %v3378
    %v3419 = vunpack.c.l.b16 %v3379
    %v3420 = vunpack.c.l.b16 %v3380
    %v3421 = vunpack.c.l.b16 %v3381
    %v3422 = vunpack.c.l.b16 %v3382
    %v3423 = vunpack.c.l.b16 %v3383
    %v3424 = vpack.c.b16 %v3409, %v3408
    %v3425 = vpack.c.b16 %v3411, %v3410
    %v3426 = vpack.c.b16 %v3413, %v3412
    %v3427 = vpack.c.b16 %v3415, %v3414
    %v3428 = vpack.c.b16 %v3417, %v3416
    %v3429 = vpack.c.b16 %v3419, %v3418
    %v3430 = vpack.c.b16 %v3421, %v3420
    %v3431 = vpack.c.b16 %v3423, %v3422
    %3440 = vmatprep.subr.bf16.mxu0 0
    %3441 = vmatpush1.bf16.msra.mxu0 %v3431
    %3442 = vmatprep.subr.bf16.mxu0 0
    %3443 = vmatpush1.bf16.msra.mxu0 %v3430
    %3444 = vmatprep.subr.bf16.mxu0 0
    %3445 = vmatpush1.bf16.msra.mxu0 %v3429
    %3446 = vmatprep.subr.bf16.mxu0 0
    %3447 = vmatpush1.bf16.msra.mxu0 %v3428
    %3448 = vmatprep.subr.bf16.mxu0 0
    %3449 = vmatpush1.bf16.msra.mxu0 %v3427
    %3450 = vmatprep.subr.bf16.mxu0 0
    %3451 = vmatpush1.bf16.msra.mxu0 %v3426
    %3452 = vmatprep.subr.bf16.mxu0 0
    %3453 = vmatpush1.bf16.msra.mxu0 %v3425
    %3454 = vmatprep.subr.bf16.mxu0 0
    %3455 = vmatpush1.bf16.msra.mxu0 %v3424
    %3456 = vmatprep.subr.bf16.mxu0 0
    %3457 = vmatpush2.bf16.msra.mxu0 0
    %3458 = vmatprep.subr.bf16.mxu0 0
    %3459 = vmatpush2.bf16.msra.mxu0 0
    %3460 = vmatprep.subr.bf16.mxu0 0
    %3461 = vmatpush2.bf16.msra.mxu0 0
    %3462 = vmatprep.subr.bf16.mxu0 0
    %3463 = vmatpush2.bf16.msra.mxu0 0
    %3464 = vmatprep.subr.bf16.mxu0 0
    %3465 = vmatpush2.bf16.msra.mxu0 0
    %3466 = vmatprep.subr.bf16.mxu0 0
    %3467 = vmatpush2.bf16.msra.mxu0 0
    %3468 = vmatprep.subr.bf16.mxu0 0
    %3469 = vmatpush2.bf16.msra.mxu0 0
    %3470 = vmatprep.subr.bf16.mxu0 0
    %3471 = vmatpush2.bf16.msra.mxu0 0
    %3472 = vmatprep.mubr.bf16.mxu0 0
    %3473 = vmatmul.mubr.bf16.gmra.mxu0 %v3365
    %v3474 = vpop.f32.mrf.mxu0
    %v3475 = vpop.f32.mrf.mxu0
    %v3476 = vpop.f32.mrf.mxu0
    %v3477 = vadd.f32 %v3390, %v3476
    %v3478 = vpop.f32.mrf.mxu0
    %3479 = vmatprep.mubr.bf16.mxu0 0
    %3480 = vmatmul.mubr.bf16.gmra.mxu0 %v3366
    %v3481 = vpop.f32.mrf.mxu0
    %v3482 = vpop.f32.mrf.mxu0
    %v3483 = vpop.f32.mrf.mxu0
    %v3484 = vadd.f32 %v3390, %v3483
    %v3485 = vpop.f32.mrf.mxu0
    %3486 = vdwg.mxu0
    %v3487 = vadd.f32 %v3276, %v3477
    %v3488 = vadd.f32 %v3278, %v3484
    %s3489 = scalar_lea.vmem %s13, 1
    %v3490 = vld [vmem:[%s3489] sm:$0x1]
    %s3491 = scalar_lea.vmem %s14, 1
    %v3492 = vld [vmem:[%s3491] sm:$0x1]
    %v3493 = vsel %vm168, %v3487, 0.0
    %3494 = vadd.xlane.f32.xlu0 %v3493
    %v3495 = vpop.xlane.xlu0 %3494
    %v3496 = vsel %vm168, %v3488, 0.0
    %3497 = vadd.xlane.f32.xlu0 %v3496
    %v3498 = vpop.xlane.xlu0 %3497
    %v3499 = vmul.f32 %v3495, %v1507
    %v3500 = vmul.f32 %v3498, %v1507
    %v3501 = vsub.f32 %v3487, %v3499
    %v3502 = vsub.f32 %v3488, %v3500
    %v3503 = vmul.f32 %v3501, %v3501
    %v3504 = vmul.f32 %v3502, %v3502
    %v3505 = vsel %vm168, %v3503, 0.0
    %3506 = vadd.xlane.f32.xlu0 %v3505
    %v3507 = vpop.xlane.xlu0 %3506
    %v3508 = vsel %vm168, %v3504, 0.0
    %3509 = vadd.xlane.f32.xlu0 %v3508
    %v3510 = vpop.xlane.xlu0 %3509
    %v3511 = vmul.f32 %v3507, %v1507
    %v3512 = vmul.f32 %v3510, %v1507
    %v3513 = vadd.f32 %v3511, 1e-05
    %v3514 = vadd.f32 %v3512, 1e-05
    %v3515 = vrsqrt.pop %v3513
    %v3516 = vrsqrt.pop %v3514
    %v3517 = vmul.f32 %v3501, %v3515
    %v3518 = vmul.f32 %v3502, %v3516
    %v3520 = vlaneseq
    %v3521 = vshrl.u32 %v3520, 7
    %v3522 = vsub.s32 0, %v3521
    %v3523 = vrot.slane %v3490, %v3522
    %v3525 = vmul.f32 %v3517, %v3523
    %v3526 = vmul.f32 %v3518, %v3523
    %v3528 = vlaneseq
    %v3529 = vshrl.u32 %v3528, 7
    %v3530 = vsub.s32 0, %v3529
    %v3531 = vrot.slane %v3492, %v3530
    %v3533 = vadd.f32 %v3525, %v3531
    %v3534 = vadd.f32 %v3526, %v3531
    %v3535 = vpack.c.bf16 %v3533, %v3533
    %v3536 = vpack.c.bf16 %v3534, %v3534
    %v3537 = vld [vmem:[%s15] sm:$0xf]
    %v3538 = vld [vmem:[%s15 + $0x4] sm:$0xf]
    %v3539 = vld [vmem:[%s15 + $0x8] sm:$0xf]
    %v3540 = vld [vmem:[%s15 + $0xc] sm:$0xf]
    %v3541 = vld [vmem:[%s16] sm:$0x1]
    %v3543 = vlaneseq
    %v3544 = vshrl.u32 %v3543, 7
    %v3545 = vsub.s32 0, %v3544
    %v3546 = vrot.slane %v3541, %v3545
    %v3550 = vunpack.c.l.b16 %v3535
    %v3551 = vunpack.c.l.b16 %v3536
    %v3552 = vrot.slane %v3551, 7
    %vm3553 = vcmask 1041409
    %v3554 = vsel %vm3553, %v3552, %v3550
    %v3555 = vpack.c.b16 %v3554, %v3554
    %v3560 = vunpack.c.l.b16 %v3537
    %v3561 = vunpack.c.l.b16 %v3538
    %v3562 = vunpack.c.l.b16 %v3539
    %v3563 = vunpack.c.l.b16 %v3540
    %v3564 = vpack.c.b16 %v3561, %v3560
    %v3565 = vpack.c.b16 %v3563, %v3562
    %v3569 = vsel %vm168, %v3555, 0
    %3571 = vmatprep.subr.bf16.mxu0 0
    %3572 = vmatpush1.bf16.msra.mxu0 0
    %3573 = vmatprep.subr.bf16.mxu0 0
    %3574 = vmatpush1.bf16.msra.mxu0 0
    %3575 = vmatprep.subr.bf16.mxu0 0
    %3576 = vmatpush1.bf16.msra.mxu0 0
    %3577 = vmatprep.subr.bf16.mxu0 0
    %3578 = vmatpush1.bf16.msra.mxu0 0
    %3579 = vmatprep.subr.bf16.mxu0 0
    %3580 = vmatpush1.bf16.msra.mxu0 0
    %3581 = vmatprep.subr.bf16.mxu0 0
    %3582 = vmatpush1.bf16.msra.mxu0 0
    %3583 = vmatprep.subr.bf16.mxu0 0
    %3584 = vmatpush1.bf16.msra.mxu0 %v3565
    %3585 = vmatprep.subr.bf16.mxu0 0
    %3586 = vmatpush1.bf16.msra.mxu0 %v3564
    %3587 = vmatprep.subr.bf16.mxu0 0
    %3588 = vmatpush2.bf16.msra.mxu0 0
    %3589 = vmatprep.subr.bf16.mxu0 0
    %3590 = vmatpush2.bf16.msra.mxu0 0
    %3591 = vmatprep.subr.bf16.mxu0 0
    %3592 = vmatpush2.bf16.msra.mxu0 0
    %3593 = vmatprep.subr.bf16.mxu0 0
    %3594 = vmatpush2.bf16.msra.mxu0 0
    %3595 = vmatprep.subr.bf16.mxu0 0
    %3596 = vmatpush2.bf16.msra.mxu0 0
    %3597 = vmatprep.subr.bf16.mxu0 0
    %3598 = vmatpush2.bf16.msra.mxu0 0
    %3599 = vmatprep.subr.bf16.mxu0 0
    %3600 = vmatpush2.bf16.msra.mxu0 0
    %3601 = vmatprep.subr.bf16.mxu0 0
    %3602 = vmatpush2.bf16.msra.mxu0 0
    %3603 = vmatprep.mubr.bf16.mxu0 0
    %3604 = vmatmul.mubr.bf16.gmra.mxu0 %v3569
    %v3605 = vpop.f32.mrf.mxu0
    %v3606 = vadd.f32 %v3546, %v3605
    %v3607 = vpop.f32.mrf.mxu0
    %v3608 = vpop.f32.mrf.mxu0
    %v3609 = vpop.f32.mrf.mxu0
    %3610 = vdwg.mxu0
    %3611 = vst [vmem:[#allocation2] sm:$0x3] %v3606
    // Predicated region
    $region70: #{tsd_forward.1} parent=1 // pred_check
      _
    $region71: #{tsd_forward.1} parent=1 // pred_check_branch
      %3613 = sbr.rel (0) target = $region73
    $region72: #{tsd_forward.1} parent=1 // pred_region
      %s3615 = ssub.s32 32, 32
      %3616 = vsyncadd [#allocation3], %s3615
      %s3618 = sshll.u32 [#allocation2], 4
      %s3619 = int_to_ptr.vmem [resolvable:$true] %s3618
      %3621 = dma.vmem_to_hbm [thread:$0]  %s3619, 32, %s17, [#allocation3]
    $region73: #{tsd_forward.1} parent=1 // pred_fallthru
      _
    // Predicated region
    $region74: #{tsd_forward.1} parent=1 // pred_check
      _
    $region75: #{tsd_forward.1} parent=1 // pred_check_branch
      %3623 = sbr.rel (0) target = $region77
    $region76: #{tsd_forward.1} parent=1 // pred_region
      %3624 = dma.done [#allocation3], 32
    $region77: #{tsd_forward.1} parent=1 // pred_fallthru
      _
    %3625 = vsyncpa [#allocation3], 1

</llo_original>
